<compile_context>
chip_gen: v5e
topology: v5e:2x2
jax: 0.10.0
libtpu: 0.0.40
codegen_flags: <defaults>
</compile_context>

<pallas_src>
import math
import jax
import jax.numpy as jnp
from jax.experimental import pallas as pl
from jax.experimental.pallas import tpu as pltpu


def _vmem_capacity_bytes():
    """Physical VMEM per TensorCore (v5e/v6e: 128 MiB, v7x: 64 MiB)."""
    try:
        return int(pltpu.get_tpu_info().vmem_capacity_bytes)
    except Exception:
        return 64 << 20            # conservative fallback (v7x-sized)


def _make_attn_kernel(Cp: int, HW: int, G: int, tq: int, eps: float, inv_n: float):
    f32, bf16 = jnp.float32, jnp.bfloat16

    def kernel(x_ref, gamma_ref, beta_ref, ga_ref, gb_ref,
               wq_ref, bq_ref, wk_ref, bk_ref, wv_ref, bv_ref,
               wp_ref, bp_ref, out_ref,
               kT_scr, v_scr, scale_scr, shift_scr):
        qi = pl.program_id(1)

        # ---- once per batch element: GroupNorm stats + K/V projections -----
        @pl.when(qi == 0)
        def _init():
            x = x_ref[0].astype(f32)                              # (Cp, HW)
            s = jnp.sum(x, axis=1, keepdims=True)                 # (Cp, 1)
            ss = jnp.sum(x * x, axis=1, keepdims=True)            # (Cp, 1)
            if G == 1:
                mean_c = jnp.sum(s, axis=0, keepdims=True) * inv_n    # (1, 1)
                msq_c = jnp.sum(ss, axis=0, keepdims=True) * inv_n    # (1, 1)
            else:
                # host-precomputed one-hot group matrices (no in-kernel iotas)
                mean_g = jnp.dot(ga_ref[...], s, preferred_element_type=f32)
                msq_g = jnp.dot(ga_ref[...], ss, preferred_element_type=f32)
                mean_c = jnp.dot(gb_ref[...], mean_g, preferred_element_type=f32)
                msq_c = jnp.dot(gb_ref[...], msq_g, preferred_element_type=f32)
            var_c = jnp.maximum(msq_c - mean_c * mean_c, 0.0)     # clamp >= 0
            inv_c = jax.lax.rsqrt(var_c + eps)
            scale = gamma_ref[...] * inv_c                        # (Cp, 1)
            shift = beta_ref[...] - mean_c * scale                # (Cp, 1)
            scale_scr[...] = scale
            shift_scr[...] = shift

            h = (x * scale + shift).astype(bf16)                  # (Cp, HW)
            # K cached TRANSPOSED: one f32 (Cp,HW)->(HW,Cp) transpose per batch
            # element so every per-tile matmul below is a standard MXU matmul.
            k = jnp.dot(wk_ref[...], h, preferred_element_type=f32) + bk_ref[...]
            kT_scr[...] = k.T.astype(bf16)                        # (HW, Cp)
            v_scr[...] = (jnp.dot(wv_ref[...], h, preferred_element_type=f32)
                          + bv_ref[...]).astype(bf16)             # (Cp, HW)

        # ---- per query tile -------------------------------------------------
        q0 = pl.multiple_of(qi * tq, tq)
        xq = x_ref[0, :, pl.ds(q0, tq)].astype(f32)               # (Cp, TQ)
        hq = (xq * scale_scr[...] + shift_scr[...]).astype(bf16)

        # q projection (1/sqrt(C) already folded into Wq / bq)     (Cp, TQ)
        q = (jnp.dot(wq_ref[...], hq, preferred_element_type=f32)
             + bq_ref[...]).astype(bf16)

        # transposed scores (HW, TQ) = K^T (HW,Cp) @ q (Cp,TQ) — standard MXU,
        # softmax over the key axis (axis 0) in f32.
        w = jnp.dot(kT_scr[...], q, preferred_element_type=f32)
        w = w - jnp.max(w, axis=0, keepdims=True)
        p = jnp.exp(w)
        # approx reciprocal on the EUP: rows sum to 1 within ~1e-3 (documented).
        p = (p * pl.reciprocal(jnp.sum(p, axis=0, keepdims=True),
                               approx=True)).astype(bf16)         # (HW, TQ)

        # TODO(synk): for HW >= ~8K, chunk the key axis with an online-softmax
        # loop so only (Cp,tk) K/V tiles + a (tk,TQ) score block are live
        # (v7x 64 MiB VMEM) and the exp overlaps the next score matmul.

        # attention output (Cp, TQ) = V (Cp,HW) @ P (HW,TQ) — standard MXU.
        att = jnp.dot(v_scr[...], p, preferred_element_type=f32).astype(bf16)

        # proj_out + residual (residual add in f32)
        h2 = jnp.dot(wp_ref[...], att, preferred_element_type=f32) + bp_ref[...]
        out_ref[0] = (xq + h2).astype(out_ref.dtype)

    return kernel


def attn_block_forward(x_nchw, params, tq=None):
    """x_nchw: (B, C, H, W) float32. params: dict of GN / 1x1-conv weights."""
    B, C, H, W = x_nchw.shape
    HW = H * W
    G = 1 if C < 32 else 32
    assert C % G == 0, "GroupNorm requires C divisible by num_groups"
    Cg = C // G
    eps = 1e-6

    # Pad channels to a multiple of 128 lanes (review: gate/pad C < 128).
    Cp = ((C + 127) // 128) * 128
    pad = Cp - C

    cap = _vmem_capacity_bytes()

    if tq is None:
        if HW >= 2048 and HW % 512 == 0 and cap >= (96 << 20):
            tq = 512          # big tiles amortize grid overhead (v5e/v6e VMEM)
        elif HW % 256 == 0 and HW > 256:
            tq = 256
        elif HW % 128 == 0:
            tq = 128
        else:
            tq = HW
    assert HW % tq == 0
    nq = HW // tq

    f32, bf16 = jnp.float32, jnp.bfloat16
    attn_scale = float(C) ** (-0.5)

    def pad_mat(w):
        return jnp.pad(w, ((0, pad), (0, pad))) if pad else w

    def pad_col(v):
        v = jnp.pad(v, (0, pad)) if pad else v
        return v.reshape(Cp, 1)

    # NCHW -> (B, Cp, HW): reshape + zero channel pad; no HBM transpose.
    x_cm = x_nchw.reshape(B, C, HW)
    if pad:
        x_cm = jnp.pad(x_cm, ((0, 0), (0, pad), (0, 0)))

    wq_s = pad_mat(params["wq"] * attn_scale).astype(bf16)   # scale folded in
    bq_c = pad_col(params["bq"] * attn_scale).astype(f32)
    wk_b = pad_mat(params["wk"]).astype(bf16)
    bk_c = pad_col(params["bk"]).astype(f32)
    wv_b = pad_mat(params["wv"]).astype(bf16)
    bv_c = pad_col(params["bv"]).astype(f32)
    wp_b = pad_mat(params["wp"]).astype(bf16)
    bp_c = pad_col(params["bp"]).astype(f32)
    gamma_c = pad_col(params["gn_gamma"]).astype(f32)   # padded gamma=0 -> padded rows stay 0
    beta_c = pad_col(params["gn_beta"]).astype(f32)

    # Host-precomputed GroupNorm one-hot group matrices (padded channels map to
    # a dummy group so they contribute nothing and receive zero scale/shift).
    inv_n = 1.0 / float(HW * Cg)
    ch = jnp.arange(Cp)
    grp = jnp.where(ch < C, ch // Cg, G)
    ga = (jnp.arange(G)[:, None] == grp[None, :]).astype(f32) * inv_n   # (G, Cp)
    gb = (grp[:, None] == jnp.arange(G)[None, :]).astype(f32)           # (Cp, G)

    kernel = _make_attn_kernel(Cp, HW, G, tq, eps, inv_n)

    def run(use_buffered):
        # Constants never change across the grid: one pipeline buffer halves
        # their resident VMEM (most valuable on v7x's 64 MiB).  Large x blocks
        # are also single-buffered (fetch exposed once per batch element only).
        cpm = dict(pipeline_mode=pl.Buffered(1)) if use_buffered else {}
        x_big = Cp * HW * 4 > (8 << 20)
        xpm = dict(pipeline_mode=pl.Buffered(1)) if (use_buffered and x_big) else {}

        def cspec(shape):
            return pl.BlockSpec(shape, lambda b, qi: (0, 0), **cpm)

        in_specs = [
            pl.BlockSpec((1, Cp, HW), lambda b, qi: (b, 0, 0), **xpm),  # x (per b)
            cspec((Cp, 1)),    # gamma
            cspec((Cp, 1)),    # beta
            cspec((G, Cp)),    # group-sum matrix (scaled by 1/(HW*Cg))
            cspec((Cp, G)),    # group-broadcast matrix
            cspec((Cp, Cp)),   # Wq * C^-0.5 (bf16)
            cspec((Cp, 1)),    # bq * C^-0.5
            cspec((Cp, Cp)),   # Wk (bf16)
            cspec((Cp, 1)),    # bk
            cspec((Cp, Cp)),   # Wv (bf16)
            cspec((Cp, 1)),    # bv
            cspec((Cp, Cp)),   # Wp (bf16)
            cspec((Cp, 1)),    # bp
        ]

        # Buffering-aware VMEM estimate incl. init + per-tile temporaries,
        # clamped to the physical capacity (never above it, v7x = 64 MiB).
        nbuf_c = 1 if use_buffered else 2
        nbuf_x = 1 if (use_buffered and x_big) else 2
        consts = nbuf_c * (4 * Cp * Cp * 2 + 6 * Cp * 4 + 2 * Cp * G * 4)
        blocks = nbuf_x * Cp * HW * 4 + 2 * Cp * tq * 4
        scratch = 2 * Cp * HW * 2 + 2 * Cp * 128 * 4
        init_tmp = 4 * Cp * HW * 4 + 2 * Cp * HW * 2      # x, x*x, k, k^T (f32) + h, v (bf16)
        tile_tmp = 3 * HW * tq * 4 + HW * tq * 2 + 10 * Cp * tq * 4
        est = consts + blocks + scratch + max(init_tmp, tile_tmp)
        vmem_limit = max(int(est * 1.35), 32 << 20)
        vmem_limit = max(min(vmem_limit, cap - (4 << 20)), 16 << 20)

        out_cm = pl.pallas_call(
            kernel,
            out_shape=jax.ShapeDtypeStruct((B, Cp, HW), x_nchw.dtype),
            grid_spec=pltpu.PrefetchScalarGridSpec(
                num_scalar_prefetch=0,
                grid=(B, nq),
                in_specs=in_specs,
                out_specs=pl.BlockSpec((1, Cp, tq), lambda b, qi: (b, 0, qi)),
                scratch_shapes=[
                    pltpu.VMEM((HW, Cp), bf16),   # K^T cache (per batch element)
                    pltpu.VMEM((Cp, HW), bf16),   # V cache
                    pltpu.VMEM((Cp, 1), f32),     # GN per-channel scale
                    pltpu.VMEM((Cp, 1), f32),     # GN per-channel shift
                ]),
            compiler_params=pltpu.CompilerParams(
                dimension_semantics=("parallel", "arbitrary"),
                vmem_limit_bytes=vmem_limit),
        )(x_cm, gamma_c, beta_c, ga, gb,
          wq_s, bq_c, wk_b, bk_c, wv_b, bv_c, wp_b, bp_c)
        return jax.block_until_ready(out_cm)

    # TODO(synk): when B is small on v7x, split the query-tile axis across the
    # two TensorCores (grid (B, 2, nq//2) with a per-core duplicated init) for
    # up to ~2x; do NOT simply mark qi "parallel" (scratch caching would break).
    try:
        out_cm = run(True)
    except Exception:
        # pl.Buffered / pipeline_mode not supported by this JAX build: fall
        # back to default double-buffering (identical numerics).
        out_cm = run(False)

    return out_cm[:, :C, :].reshape(B, C, H, W)


def attn_block_reference(x, params):
    """Pure-JAX f32 reference mirroring the PyTorch forward (key=None)."""
    B, C, H, W = x.shape
    HW = H * W
    G = 1 if C < 32 else 32
    eps = 1e-6

    xg = x.reshape(B, G, C // G, H, W)
    mean = jnp.mean(xg, axis=(2, 3, 4), keepdims=True)
    var = jnp.var(xg, axis=(2, 3, 4), keepdims=True)
    hn = ((xg - mean) / jnp.sqrt(var + eps)).reshape(B, C, H, W)
    hn = hn * params["gn_gamma"][None, :, None, None] + params["gn_beta"][None, :, None, None]

    def conv1x1(h, w, b):
        return jnp.einsum("bchw,oc->bohw", h, w) + b[None, :, None, None]

    q = conv1x1(hn, params["wq"], params["bq"]).reshape(B, C, HW)
    k = conv1x1(hn, params["wk"], params["bk"]).reshape(B, C, HW)
    v = conv1x1(hn, params["wv"], params["bv"]).reshape(B, C, HW)

    q = jnp.transpose(q, (0, 2, 1))                       # (B, HW, C)
    w_ = jnp.einsum("bic,bcj->bij", q, k) * (int(C) ** (-0.5))
    w_ = jax.nn.softmax(w_, axis=2)
    h_ = jnp.einsum("bcj,bij->bci", v, w_).reshape(B, C, H, W)
    h_ = conv1x1(h_, params["wp"], params["bp"])
    return x + h_


if __name__ == "__main__":
    def make_params(key, C):
        def init_conv(k):
            kw, kb = jax.random.split(k)
            bound = 1.0 / math.sqrt(C)
            w = jax.random.uniform(kw, (C, C), jnp.float32, -bound, bound)
            b = jax.random.uniform(kb, (C,), jnp.float32, -bound, bound)
            return w, b
        ks = jax.random.split(key, 4)
        wq, bq = init_conv(ks[0])
        wk, bk = init_conv(ks[1])
        wv, bv = init_conv(ks[2])
        wp, bp = init_conv(ks[3])
        return dict(gn_gamma=jnp.ones((C,), jnp.float32),
                    gn_beta=jnp.zeros((C,), jnp.float32),
                    wq=wq, bq=bq, wk=wk, bk=bk, wv=wv, bv=bv, wp=wp, bp=bp)

    def check(B, C, H, W, key):
        kx, kp = jax.random.split(key)
        x = jax.random.normal(kx, (B, C, H, W), dtype=jnp.float32)
        params = make_params(kp, C)
        out = jax.block_until_ready(attn_block_forward(x, params))
        ref = attn_block_reference(x, params)
        assert out.shape == (B, C, H, W)
        # bf16 MXU operands (f32 accumulation / GN / softmax / residual) and an
        # approx-reciprocal softmax denominator vs. the f32 reference.
        err = float(jnp.max(jnp.abs(out - ref)))
        assert jnp.allclose(out, ref, atol=3e-2, rtol=3e-2), err

    key = jax.random.PRNGKey(0)
    k1, k2 = jax.random.split(key)
    check(2, 4, 16, 16, k1)      # attn_resolution=16, C<32  -> single GN group
    check(1, 32, 16, 16, k2)     # C>=32 -> 32 GN groups (channel-padded path)
    print("KERNEL_OK")
</pallas_src>

<mosaic_0001>
module attributes {stable_mosaic.version = 11 : i64} {
  func.func @kernel(%arg0: i32, %arg1: i32, %arg2: memref<1x128x256xf32, #tpu.memory_space<vmem>>, %arg3: memref<128x1xf32, #tpu.memory_space<vmem>>, %arg4: memref<128x1xf32, #tpu.memory_space<vmem>>, %arg5: memref<1x128xf32, #tpu.memory_space<vmem>>, %arg6: memref<128x1xf32, #tpu.memory_space<vmem>>, %arg7: memref<128x128xbf16, #tpu.memory_space<vmem>>, %arg8: memref<128x1xf32, #tpu.memory_space<vmem>>, %arg9: memref<128x128xbf16, #tpu.memory_space<vmem>>, %arg10: memref<128x1xf32, #tpu.memory_space<vmem>>, %arg11: memref<128x128xbf16, #tpu.memory_space<vmem>>, %arg12: memref<128x1xf32, #tpu.memory_space<vmem>>, %arg13: memref<128x128xbf16, #tpu.memory_space<vmem>>, %arg14: memref<128x1xf32, #tpu.memory_space<vmem>>, %arg15: memref<1x128x128xf32, #tpu.memory_space<vmem>>, %arg16: memref<256x128xbf16, #tpu.memory_space<vmem>>, %arg17: memref<128x256xbf16, #tpu.memory_space<vmem>>, %arg18: memref<128x1xf32, #tpu.memory_space<vmem>>, %arg19: memref<128x1xf32, #tpu.memory_space<vmem>>) attributes {dimension_semantics = [#tpu.dimension_semantics<parallel>, #tpu.dimension_semantics<arbitrary>], iteration_bounds = array<i64: 2, 2>, scalar_prefetch = 0 : i64, scratch_operands = 4 : i64, tpu.core_type = #tpu.core_type<tc>, window_params = [{transform_indices = @transform_0, window_bounds = array<i64: 1, 128, 256>}, {pipeline_mode = #tpu.pipeline_mode<synchronous>, transform_indices = @transform_1, window_bounds = array<i64: 128, 1>}, {pipeline_mode = #tpu.pipeline_mode<synchronous>, transform_indices = @transform_2, window_bounds = array<i64: 128, 1>}, {pipeline_mode = #tpu.pipeline_mode<synchronous>, transform_indices = @transform_3, window_bounds = array<i64: 1, 128>}, {pipeline_mode = #tpu.pipeline_mode<synchronous>, transform_indices = @transform_4, window_bounds = array<i64: 128, 1>}, {pipeline_mode = #tpu.pipeline_mode<synchronous>, transform_indices = @transform_5, window_bounds = array<i64: 128, 128>}, {pipeline_mode = #tpu.pipeline_mode<synchronous>, transform_indices = @transform_6, window_bounds = array<i64: 128, 1>}, {pipeline_mode = #tpu.pipeline_mode<synchronous>, transform_indices = @transform_7, window_bounds = array<i64: 128, 128>}, {pipeline_mode = #tpu.pipeline_mode<synchronous>, transform_indices = @transform_8, window_bounds = array<i64: 128, 1>}, {pipeline_mode = #tpu.pipeline_mode<synchronous>, transform_indices = @transform_9, window_bounds = array<i64: 128, 128>}, {pipeline_mode = #tpu.pipeline_mode<synchronous>, transform_indices = @transform_10, window_bounds = array<i64: 128, 1>}, {pipeline_mode = #tpu.pipeline_mode<synchronous>, transform_indices = @transform_11, window_bounds = array<i64: 128, 128>}, {pipeline_mode = #tpu.pipeline_mode<synchronous>, transform_indices = @transform_12, window_bounds = array<i64: 128, 1>}, {transform_indices = @transform_13, window_bounds = array<i64: 1, 128, 128>}]} {
    %c0_i32 = arith.constant 0 : i32
    %0 = arith.cmpi eq, %arg1, %c0_i32 : i32
    %1 = arith.extui %0 : i1 to i32
    %c0_i32_0 = arith.constant 0 : i32
    %2 = arith.cmpi ne, %1, %c0_i32_0 : i32
    scf.if %2 {
      %c0_26 = arith.constant 0 : index
      %c0_27 = arith.constant 0 : index
      %c0_28 = arith.constant 0 : index
      %46 = vector.load %arg2[%c0_26, %c0_27, %c0_28] : memref<1x128x256xf32, #tpu.memory_space<vmem>>, vector<1x128x256xf32>
      %47 = vector.shape_cast %46 : vector<1x128x256xf32> to vector<128x256xf32>
      %cst_29 = arith.constant dense<0.000000e+00> : vector<128xf32>
      %48 = vector.multi_reduction <add>, %47, %cst_29 [1] : vector<128x256xf32> to vector<128xf32>
      %49 = vector.shape_cast %48 : vector<128xf32> to vector<128x1xf32>
      %50 = arith.mulf %47, %47 : vector<128x256xf32>
      %cst_30 = arith.constant dense<0.000000e+00> : vector<128xf32>
      %51 = vector.multi_reduction <add>, %50, %cst_30 [1] : vector<128x256xf32> to vector<128xf32>
      %52 = vector.shape_cast %51 : vector<128xf32> to vector<128x1xf32>
      %cst_31 = arith.constant dense<0.000000e+00> : vector<1xf32>
      %53 = vector.multi_reduction <add>, %49, %cst_31 [0] : vector<128x1xf32> to vector<1xf32>
      %54 = vector.shape_cast %53 : vector<1xf32> to vector<1x1xf32>
      %cst_32 = arith.constant 9.765625E-4 : f32
      %55 = vector.broadcast %cst_32 : f32 to vector<1x1xf32>
      %56 = arith.mulf %54, %55 : vector<1x1xf32>
      %cst_33 = arith.constant dense<0.000000e+00> : vector<1xf32>
      %57 = vector.multi_reduction <add>, %52, %cst_33 [0] : vector<128x1xf32> to vector<1xf32>
      %58 = vector.shape_cast %57 : vector<1xf32> to vector<1x1xf32>
      %cst_34 = arith.constant 9.765625E-4 : f32
      %59 = vector.broadcast %cst_34 : f32 to vector<1x1xf32>
      %60 = arith.mulf %58, %59 : vector<1x1xf32>
      %61 = arith.mulf %56, %56 : vector<1x1xf32>
      %62 = arith.subf %60, %61 : vector<1x1xf32>
      %cst_35 = arith.constant 0.000000e+00 : f32
      %63 = vector.broadcast %cst_35 : f32 to vector<1x1xf32>
      %64 = arith.maximumf %62, %63 : vector<1x1xf32>
      %cst_36 = arith.constant 9.99999997E-7 : f32
      %65 = vector.broadcast %cst_36 : f32 to vector<1x1xf32>
      %66 = arith.addf %64, %65 : vector<1x1xf32>
      %67 = math.rsqrt %66 : vector<1x1xf32>
      %c0_37 = arith.constant 0 : index
      %c0_38 = arith.constant 0 : index
      %68 = vector.load %arg3[%c0_37, %c0_38] : memref<128x1xf32, #tpu.memory_space<vmem>>, vector<128x1xf32>
      %69 = vector.broadcast %67 : vector<1x1xf32> to vector<128x1xf32>
      %70 = arith.mulf %68, %69 : vector<128x1xf32>
      %c0_39 = arith.constant 0 : index
      %c0_40 = arith.constant 0 : index
      %71 = vector.load %arg4[%c0_39, %c0_40] : memref<128x1xf32, #tpu.memory_space<vmem>>, vector<128x1xf32>
      %72 = vector.broadcast %56 : vector<1x1xf32> to vector<128x1xf32>
      %73 = arith.mulf %72, %70 : vector<128x1xf32>
      %74 = arith.subf %71, %73 : vector<128x1xf32>
      %c0_41 = arith.constant 0 : index
      %c0_42 = arith.constant 0 : index
      %75 = vector.load %arg18[%c0_41, %c0_42] : memref<128x1xf32, #tpu.memory_space<vmem>>, vector<128x1xf32>
      tpu.vector_store %arg18[%c0_41, %c0_42], %70 {strides = array<i32>} : memref<128x1xf32, #tpu.memory_space<vmem>>, vector<128x1xf32>,
      %c0_43 = arith.constant 0 : index
      %c0_44 = arith.constant 0 : index
      %76 = vector.load %arg19[%c0_43, %c0_44] : memref<128x1xf32, #tpu.memory_space<vmem>>, vector<128x1xf32>
      tpu.vector_store %arg19[%c0_43, %c0_44], %74 {strides = array<i32>} : memref<128x1xf32, #tpu.memory_space<vmem>>, vector<128x1xf32>,
      %77 = vector.broadcast %70 : vector<128x1xf32> to vector<128x256xf32>
      %78 = arith.mulf %47, %77 : vector<128x256xf32>
      %79 = vector.broadcast %74 : vector<128x1xf32> to vector<128x256xf32>
      %80 = arith.addf %78, %79 : vector<128x256xf32>
      %81 = arith.truncf %80 : vector<128x256xf32> to vector<128x256xbf16>
      %c0_45 = arith.constant 0 : index
      %c0_46 = arith.constant 0 : index
      %82 = vector.load %arg9[%c0_45, %c0_46] : memref<128x128xbf16, #tpu.memory_space<vmem>>, vector<128x128xbf16>
      %cst_47 = arith.constant dense<0.000000e+00> : vector<128x256xf32>
      %83 = tpu.matmul %82, %81, %cst_47 {dimension_numbers = #tpu.dot_dimension_numbers<[1], [0], [0], [1], [0, 0, 1, 1], [], []>} : vector<128x128xbf16>, vector<128x256xbf16>, vector<128x256xf32> -> vector<128x256xf32>
      %c0_48 = arith.constant 0 : index
      %c0_49 = arith.constant 0 : index
      %84 = vector.load %arg10[%c0_48, %c0_49] : memref<128x1xf32, #tpu.memory_space<vmem>>, vector<128x1xf32>
      %85 = vector.broadcast %84 : vector<128x1xf32> to vector<128x256xf32>
      %86 = arith.addf %83, %85 : vector<128x256xf32>
      %87 = tpu.transpose %86, [1, 0] : vector<128x256xf32> -> vector<256x128xf32>
      %88 = arith.truncf %87 : vector<256x128xf32> to vector<256x128xbf16>
      %c0_50 = arith.constant 0 : index
      %c0_51 = arith.constant 0 : index
      %89 = vector.load %arg16[%c0_50, %c0_51] : memref<256x128xbf16, #tpu.memory_space<vmem>>, vector<256x128xbf16>
      tpu.vector_store %arg16[%c0_50, %c0_51], %88 {strides = array<i32>} : memref<256x128xbf16, #tpu.memory_space<vmem>>, vector<256x128xbf16>,
      %c0_52 = arith.constant 0 : index
      %c0_53 = arith.constant 0 : index
      %90 = vector.load %arg11[%c0_52, %c0_53] : memref<128x128xbf16, #tpu.memory_space<vmem>>, vector<128x128xbf16>
      %cst_54 = arith.constant dense<0.000000e+00> : vector<128x256xf32>
      %91 = tpu.matmul %90, %81, %cst_54 {dimension_numbers = #tpu.dot_dimension_numbers<[1], [0], [0], [1], [0, 0, 1, 1], [], []>} : vector<128x128xbf16>, vector<128x256xbf16>, vector<128x256xf32> -> vector<128x256xf32>
      %c0_55 = arith.constant 0 : index
      %c0_56 = arith.constant 0 : index
      %92 = vector.load %arg12[%c0_55, %c0_56] : memref<128x1xf32, #tpu.memory_space<vmem>>, vector<128x1xf32>
      %93 = vector.broadcast %92 : vector<128x1xf32> to vector<128x256xf32>
      %94 = arith.addf %91, %93 : vector<128x256xf32>
      %95 = arith.truncf %94 : vector<128x256xf32> to vector<128x256xbf16>
      %c0_57 = arith.constant 0 : index
      %c0_58 = arith.constant 0 : index
      %96 = vector.load %arg17[%c0_57, %c0_58] : memref<128x256xbf16, #tpu.memory_space<vmem>>, vector<128x256xbf16>
      tpu.vector_store %arg17[%c0_57, %c0_58], %95 {strides = array<i32>} : memref<128x256xbf16, #tpu.memory_space<vmem>>, vector<128x256xbf16>,
    } else {
    }
    %c128_i32 = arith.constant 128 : i32
    %3 = arith.muli %arg1, %c128_i32 : i32
    %4 = tpu.assume_multiple %3, 128 : i32
    %c0 = arith.constant 0 : index
    %c0_1 = arith.constant 0 : index
    %5 = arith.index_cast %4 : i32 to index
    %6 = vector.load %arg2[%c0, %c0_1, %5] : memref<1x128x256xf32, #tpu.memory_space<vmem>>, vector<1x128x128xf32>
    %7 = vector.shape_cast %6 : vector<1x128x128xf32> to vector<128x128xf32>
    %c0_2 = arith.constant 0 : index
    %c0_3 = arith.constant 0 : index
    %8 = vector.load %arg18[%c0_2, %c0_3] : memref<128x1xf32, #tpu.memory_space<vmem>>, vector<128x1xf32>
    %9 = vector.broadcast %8 : vector<128x1xf32> to vector<128x128xf32>
    %10 = arith.mulf %7, %9 : vector<128x128xf32>
    %c0_4 = arith.constant 0 : index
    %c0_5 = arith.constant 0 : index
    %11 = vector.load %arg19[%c0_4, %c0_5] : memref<128x1xf32, #tpu.memory_space<vmem>>, vector<128x1xf32>
    %12 = vector.broadcast %11 : vector<128x1xf32> to vector<128x128xf32>
    %13 = arith.addf %10, %12 : vector<128x128xf32>
    %14 = arith.truncf %13 : vector<128x128xf32> to vector<128x128xbf16>
    %c0_6 = arith.constant 0 : index
    %c0_7 = arith.constant 0 : index
    %15 = vector.load %arg7[%c0_6, %c0_7] : memref<128x128xbf16, #tpu.memory_space<vmem>>, vector<128x128xbf16>
    %cst = arith.constant dense<0.000000e+00> : vector<128x128xf32>
    %16 = tpu.matmul %15, %14, %cst {dimension_numbers = #tpu.dot_dimension_numbers<[1], [0], [0], [1], [0, 0, 1, 1], [], []>} : vector<128x128xbf16>, vector<128x128xbf16>, vector<128x128xf32> -> vector<128x128xf32>
    %c0_8 = arith.constant 0 : index
    %c0_9 = arith.constant 0 : index
    %17 = vector.load %arg8[%c0_8, %c0_9] : memref<128x1xf32, #tpu.memory_space<vmem>>, vector<128x1xf32>
    %18 = vector.broadcast %17 : vector<128x1xf32> to vector<128x128xf32>
    %19 = arith.addf %16, %18 : vector<128x128xf32>
    %20 = arith.truncf %19 : vector<128x128xf32> to vector<128x128xbf16>
    %c0_10 = arith.constant 0 : index
    %c0_11 = arith.constant 0 : index
    %21 = vector.load %arg16[%c0_10, %c0_11] : memref<256x128xbf16, #tpu.memory_space<vmem>>, vector<256x128xbf16>
    %cst_12 = arith.constant dense<0.000000e+00> : vector<256x128xf32>
    %22 = tpu.matmul %21, %20, %cst_12 {dimension_numbers = #tpu.dot_dimension_numbers<[1], [0], [0], [1], [0, 0, 1, 1], [], []>} : vector<256x128xbf16>, vector<128x128xbf16>, vector<256x128xf32> -> vector<256x128xf32>
    %cst_13 = arith.constant dense<0xFF800000> : vector<128xf32>
    %23 = vector.multi_reduction <maximumf>, %22, %cst_13 [0] : vector<256x128xf32> to vector<128xf32>
    %24 = vector.shape_cast %23 : vector<128xf32> to vector<1x128xf32>
    %25 = vector.broadcast %24 : vector<1x128xf32> to vector<256x128xf32>
    %26 = arith.subf %22, %25 : vector<256x128xf32>
    %27 = math.exp %26 : vector<256x128xf32>
    %cst_14 = arith.constant dense<0.000000e+00> : vector<128xf32>
    %28 = vector.multi_reduction <add>, %27, %cst_14 [0] : vector<256x128xf32> to vector<128xf32>
    %29 = vector.shape_cast %28 : vector<128xf32> to vector<1x128xf32>
    %30 = tpu.reciprocal %29 {approx = true} : vector<1x128xf32> -> vector<1x128xf32>
    %31 = vector.broadcast %30 : vector<1x128xf32> to vector<256x128xf32>
    %32 = arith.mulf %27, %31 : vector<256x128xf32>
    %33 = arith.truncf %32 : vector<256x128xf32> to vector<256x128xbf16>
    %c0_15 = arith.constant 0 : index
    %c0_16 = arith.constant 0 : index
    %34 = vector.load %arg17[%c0_15, %c0_16] : memref<128x256xbf16, #tpu.memory_space<vmem>>, vector<128x256xbf16>
    %cst_17 = arith.constant dense<0.000000e+00> : vector<128x128xf32>
    %35 = tpu.matmul %34, %33, %cst_17 {dimension_numbers = #tpu.dot_dimension_numbers<[1], [0], [0], [1], [0, 0, 1, 1], [], []>} : vector<128x256xbf16>, vector<256x128xbf16>, vector<128x128xf32> -> vector<128x128xf32>
    %36 = arith.truncf %35 : vector<128x128xf32> to vector<128x128xbf16>
    %c0_18 = arith.constant 0 : index
    %c0_19 = arith.constant 0 : index
    %37 = vector.load %arg13[%c0_18, %c0_19] : memref<128x128xbf16, #tpu.memory_space<vmem>>, vector<128x128xbf16>
    %cst_20 = arith.constant dense<0.000000e+00> : vector<128x128xf32>
    %38 = tpu.matmul %37, %36, %cst_20 {dimension_numbers = #tpu.dot_dimension_numbers<[1], [0], [0], [1], [0, 0, 1, 1], [], []>} : vector<128x128xbf16>, vector<128x128xbf16>, vector<128x128xf32> -> vector<128x128xf32>
    %c0_21 = arith.constant 0 : index
    %c0_22 = arith.constant 0 : index
    %39 = vector.load %arg14[%c0_21, %c0_22] : memref<128x1xf32, #tpu.memory_space<vmem>>, vector<128x1xf32>
    %40 = vector.broadcast %39 : vector<128x1xf32> to vector<128x128xf32>
    %41 = arith.addf %38, %40 : vector<128x128xf32>
    %42 = arith.addf %7, %41 : vector<128x128xf32>
    %c0_23 = arith.constant 0 : index
    %c0_24 = arith.constant 0 : index
    %c0_25 = arith.constant 0 : index
    %43 = vector.load %arg15[%c0_23, %c0_24, %c0_25] : memref<1x128x128xf32, #tpu.memory_space<vmem>>, vector<1x128x128xf32>
    %44 = vector.shape_cast %43 : vector<1x128x128xf32> to vector<128x128xf32>
    %45 = vector.shape_cast %42 : vector<128x128xf32> to vector<1x128x128xf32>
    tpu.vector_store %arg15[%c0_23, %c0_24, %c0_25], %45 {strides = array<i32>} : memref<1x128x128xf32, #tpu.memory_space<vmem>>, vector<1x128x128xf32>,
    return
  }
  func.func @transform_0(%arg0: i32, %arg1: i32) -> (i32, i32, i32) {
    %c0_i32 = arith.constant 0 : i32
    %c0_i32_0 = arith.constant 0 : i32
    %c0_i32_1 = arith.constant 0 : i32
    return %arg0, %c0_i32, %c0_i32_0 : i32, i32, i32
  }
  func.func @transform_1(%arg0: i32, %arg1: i32) -> (i32, i32) {
    %c0_i32 = arith.constant 0 : i32
    %c0_i32_0 = arith.constant 0 : i32
    %c0_i32_1 = arith.constant 0 : i32
    return %c0_i32, %c0_i32_0 : i32, i32
  }
  func.func @transform_2(%arg0: i32, %arg1: i32) -> (i32, i32) {
    %c0_i32 = arith.constant 0 : i32
    %c0_i32_0 = arith.constant 0 : i32
    %c0_i32_1 = arith.constant 0 : i32
    return %c0_i32, %c0_i32_0 : i32, i32
  }
  func.func @transform_3(%arg0: i32, %arg1: i32) -> (i32, i32) {
    %c0_i32 = arith.constant 0 : i32
    %c0_i32_0 = arith.constant 0 : i32
    %c0_i32_1 = arith.constant 0 : i32
    return %c0_i32, %c0_i32_0 : i32, i32
  }
  func.func @transform_4(%arg0: i32, %arg1: i32) -> (i32, i32) {
    %c0_i32 = arith.constant 0 : i32
    %c0_i32_0 = arith.constant 0 : i32
    %c0_i32_1 = arith.constant 0 : i32
    return %c0_i32, %c0_i32_0 : i32, i32
  }
  func.func @transform_5(%arg0: i32, %arg1: i32) -> (i32, i32) {
    %c0_i32 = arith.constant 0 : i32
    %c0_i32_0 = arith.constant 0 : i32
    %c0_i32_1 = arith.constant 0 : i32
    return %c0_i32, %c0_i32_0 : i32, i32
  }
  func.func @transform_6(%arg0: i32, %arg1: i32) -> (i32, i32) {
    %c0_i32 = arith.constant 0 : i32
    %c0_i32_0 = arith.constant 0 : i32
    %c0_i32_1 = arith.constant 0 : i32
    return %c0_i32, %c0_i32_0 : i32, i32
  }
  func.func @transform_7(%arg0: i32, %arg1: i32) -> (i32, i32) {
    %c0_i32 = arith.constant 0 : i32
    %c0_i32_0 = arith.constant 0 : i32
    %c0_i32_1 = arith.constant 0 : i32
    return %c0_i32, %c0_i32_0 : i32, i32
  }
  func.func @transform_8(%arg0: i32, %arg1: i32) -> (i32, i32) {
    %c0_i32 = arith.constant 0 : i32
    %c0_i32_0 = arith.constant 0 : i32
    %c0_i32_1 = arith.constant 0 : i32
    return %c0_i32, %c0_i32_0 : i32, i32
  }
  func.func @transform_9(%arg0: i32, %arg1: i32) -> (i32, i32) {
    %c0_i32 = arith.constant 0 : i32
    %c0_i32_0 = arith.constant 0 : i32
    %c0_i32_1 = arith.constant 0 : i32
    return %c0_i32, %c0_i32_0 : i32, i32
  }
  func.func @transform_10(%arg0: i32, %arg1: i32) -> (i32, i32) {
    %c0_i32 = arith.constant 0 : i32
    %c0_i32_0 = arith.constant 0 : i32
    %c0_i32_1 = arith.constant 0 : i32
    return %c0_i32, %c0_i32_0 : i32, i32
  }
  func.func @transform_11(%arg0: i32, %arg1: i32) -> (i32, i32) {
    %c0_i32 = arith.constant 0 : i32
    %c0_i32_0 = arith.constant 0 : i32
    %c0_i32_1 = arith.constant 0 : i32
    return %c0_i32, %c0_i32_0 : i32, i32
  }
  func.func @transform_12(%arg0: i32, %arg1: i32) -> (i32, i32) {
    %c0_i32 = arith.constant 0 : i32
    %c0_i32_0 = arith.constant 0 : i32
    %c0_i32_1 = arith.constant 0 : i32
    return %c0_i32, %c0_i32_0 : i32, i32
  }
  func.func @transform_13(%arg0: i32, %arg1: i32) -> (i32, i32, i32) {
    %c0_i32 = arith.constant 0 : i32
    %c0_i32_0 = arith.constant 0 : i32
    return %arg0, %c0_i32, %arg1 : i32, i32, i32
  }
}

module attributes {stable_mosaic.version = 11 : i64} {
  func.func @kernel(%arg0: i32, %arg1: i32, %arg2: memref<1x128x256xf32, #tpu.memory_space<vmem>>, %arg3: memref<128x1xf32, #tpu.memory_space<vmem>>, %arg4: memref<128x1xf32, #tpu.memory_space<vmem>>, %arg5: memref<1x128xf32, #tpu.memory_space<vmem>>, %arg6: memref<128x1xf32, #tpu.memory_space<vmem>>, %arg7: memref<128x128xbf16, #tpu.memory_space<vmem>>, %arg8: memref<128x1xf32, #tpu.memory_space<vmem>>, %arg9: memref<128x128xbf16, #tpu.memory_space<vmem>>, %arg10: memref<128x1xf32, #tpu.memory_space<vmem>>, %arg11: memref<128x128xbf16, #tpu.memory_space<vmem>>, %arg12: memref<128x1xf32, #tpu.memory_space<vmem>>, %arg13: memref<128x128xbf16, #tpu.memory_space<vmem>>, %arg14: memref<128x1xf32, #tpu.memory_space<vmem>>, %arg15: memref<1x128x128xf32, #tpu.memory_space<vmem>>, %arg16: memref<256x128xbf16, #tpu.memory_space<vmem>>, %arg17: memref<128x256xbf16, #tpu.memory_space<vmem>>, %arg18: memref<128x1xf32, #tpu.memory_space<vmem>>, %arg19: memref<128x1xf32, #tpu.memory_space<vmem>>) attributes {dimension_semantics = [#tpu.dimension_semantics<parallel>, #tpu.dimension_semantics<arbitrary>], iteration_bounds = array<i64: 2, 2>, scalar_prefetch = 0 : i64, scratch_operands = 4 : i64, tpu.core_type = #tpu.core_type<tc>, window_params = [{transform_indices = @transform_0, window_bounds = array<i64: 1, 128, 256>}, {pipeline_mode = #tpu.pipeline_mode<synchronous>, transform_indices = @transform_1, window_bounds = array<i64: 128, 1>}, {pipeline_mode = #tpu.pipeline_mode<synchronous>, transform_indices = @transform_2, window_bounds = array<i64: 128, 1>}, {pipeline_mode = #tpu.pipeline_mode<synchronous>, transform_indices = @transform_3, window_bounds = array<i64: 1, 128>}, {pipeline_mode = #tpu.pipeline_mode<synchronous>, transform_indices = @transform_4, window_bounds = array<i64: 128, 1>}, {pipeline_mode = #tpu.pipeline_mode<synchronous>, transform_indices = @transform_5, window_bounds = array<i64: 128, 128>}, {pipeline_mode = #tpu.pipeline_mode<synchronous>, transform_indices = @transform_6, window_bounds = array<i64: 128, 1>}, {pipeline_mode = #tpu.pipeline_mode<synchronous>, transform_indices = @transform_7, window_bounds = array<i64: 128, 128>}, {pipeline_mode = #tpu.pipeline_mode<synchronous>, transform_indices = @transform_8, window_bounds = array<i64: 128, 1>}, {pipeline_mode = #tpu.pipeline_mode<synchronous>, transform_indices = @transform_9, window_bounds = array<i64: 128, 128>}, {pipeline_mode = #tpu.pipeline_mode<synchronous>, transform_indices = @transform_10, window_bounds = array<i64: 128, 1>}, {pipeline_mode = #tpu.pipeline_mode<synchronous>, transform_indices = @transform_11, window_bounds = array<i64: 128, 128>}, {pipeline_mode = #tpu.pipeline_mode<synchronous>, transform_indices = @transform_12, window_bounds = array<i64: 128, 1>}, {transform_indices = @transform_13, window_bounds = array<i64: 1, 128, 128>}]} {
    %c0_i32 = arith.constant 0 : i32
    %0 = arith.cmpi eq, %arg1, %c0_i32 : i32
    %1 = arith.extui %0 : i1 to i32
    %c0_i32_0 = arith.constant 0 : i32
    %2 = arith.cmpi ne, %1, %c0_i32_0 : i32
    scf.if %2 {
      %c0_26 = arith.constant 0 : index
      %c0_27 = arith.constant 0 : index
      %c0_28 = arith.constant 0 : index
      %46 = vector.load %arg2[%c0_26, %c0_27, %c0_28] : memref<1x128x256xf32, #tpu.memory_space<vmem>>, vector<1x128x256xf32>
      %47 = vector.shape_cast %46 : vector<1x128x256xf32> to vector<128x256xf32>
      %cst_29 = arith.constant dense<0.000000e+00> : vector<128xf32>
      %48 = vector.multi_reduction <add>, %47, %cst_29 [1] : vector<128x256xf32> to vector<128xf32>
      %49 = vector.shape_cast %48 : vector<128xf32> to vector<128x1xf32>
      %50 = arith.mulf %47, %47 : vector<128x256xf32>
      %cst_30 = arith.constant dense<0.000000e+00> : vector<128xf32>
      %51 = vector.multi_reduction <add>, %50, %cst_30 [1] : vector<128x256xf32> to vector<128xf32>
      %52 = vector.shape_cast %51 : vector<128xf32> to vector<128x1xf32>
      %cst_31 = arith.constant dense<0.000000e+00> : vector<1xf32>
      %53 = vector.multi_reduction <add>, %49, %cst_31 [0] : vector<128x1xf32> to vector<1xf32>
      %54 = vector.shape_cast %53 : vector<1xf32> to vector<1x1xf32>
      %cst_32 = arith.constant 9.765625E-4 : f32
      %55 = vector.broadcast %cst_32 : f32 to vector<1x1xf32>
      %56 = arith.mulf %54, %55 : vector<1x1xf32>
      %cst_33 = arith.constant dense<0.000000e+00> : vector<1xf32>
      %57 = vector.multi_reduction <add>, %52, %cst_33 [0] : vector<128x1xf32> to vector<1xf32>
      %58 = vector.shape_cast %57 : vector<1xf32> to vector<1x1xf32>
      %cst_34 = arith.constant 9.765625E-4 : f32
      %59 = vector.broadcast %cst_34 : f32 to vector<1x1xf32>
      %60 = arith.mulf %58, %59 : vector<1x1xf32>
      %61 = arith.mulf %56, %56 : vector<1x1xf32>
      %62 = arith.subf %60, %61 : vector<1x1xf32>
      %cst_35 = arith.constant 0.000000e+00 : f32
      %63 = vector.broadcast %cst_35 : f32 to vector<1x1xf32>
      %64 = arith.maximumf %62, %63 : vector<1x1xf32>
      %cst_36 = arith.constant 9.99999997E-7 : f32
      %65 = vector.broadcast %cst_36 : f32 to vector<1x1xf32>
      %66 = arith.addf %64, %65 : vector<1x1xf32>
      %67 = math.rsqrt %66 : vector<1x1xf32>
      %c0_37 = arith.constant 0 : index
      %c0_38 = arith.constant 0 : index
      %68 = vector.load %arg3[%c0_37, %c0_38] : memref<128x1xf32, #tpu.memory_space<vmem>>, vector<128x1xf32>
      %69 = vector.broadcast %67 : vector<1x1xf32> to vector<128x1xf32>
      %70 = arith.mulf %68, %69 : vector<128x1xf32>
      %c0_39 = arith.constant 0 : index
      %c0_40 = arith.constant 0 : index
      %71 = vector.load %arg4[%c0_39, %c0_40] : memref<128x1xf32, #tpu.memory_space<vmem>>, vector<128x1xf32>
      %72 = vector.broadcast %56 : vector<1x1xf32> to vector<128x1xf32>
      %73 = arith.mulf %72, %70 : vector<128x1xf32>
      %74 = arith.subf %71, %73 : vector<128x1xf32>
      %c0_41 = arith.constant 0 : index
      %c0_42 = arith.constant 0 : index
      %75 = vector.load %arg18[%c0_41, %c0_42] : memref<128x1xf32, #tpu.memory_space<vmem>>, vector<128x1xf32>
      tpu.vector_store %arg18[%c0_41, %c0_42], %70 {strides = array<i32>} : memref<128x1xf32, #tpu.memory_space<vmem>>, vector<128x1xf32>,
      %c0_43 = arith.constant 0 : index
      %c0_44 = arith.constant 0 : index
      %76 = vector.load %arg19[%c0_43, %c0_44] : memref<128x1xf32, #tpu.memory_space<vmem>>, vector<128x1xf32>
      tpu.vector_store %arg19[%c0_43, %c0_44], %74 {strides = array<i32>} : memref<128x1xf32, #tpu.memory_space<vmem>>, vector<128x1xf32>,
      %77 = vector.broadcast %70 : vector<128x1xf32> to vector<128x256xf32>
      %78 = arith.mulf %47, %77 : vector<128x256xf32>
      %79 = vector.broadcast %74 : vector<128x1xf32> to vector<128x256xf32>
      %80 = arith.addf %78, %79 : vector<128x256xf32>
      %81 = arith.truncf %80 : vector<128x256xf32> to vector<128x256xbf16>
      %c0_45 = arith.constant 0 : index
      %c0_46 = arith.constant 0 : index
      %82 = vector.load %arg9[%c0_45, %c0_46] : memref<128x128xbf16, #tpu.memory_space<vmem>>, vector<128x128xbf16>
      %cst_47 = arith.constant dense<0.000000e+00> : vector<128x256xf32>
      %83 = tpu.matmul %82, %81, %cst_47 {dimension_numbers = #tpu.dot_dimension_numbers<[1], [0], [0], [1], [0, 0, 1, 1], [], []>} : vector<128x128xbf16>, vector<128x256xbf16>, vector<128x256xf32> -> vector<128x256xf32>
      %c0_48 = arith.constant 0 : index
      %c0_49 = arith.constant 0 : index
      %84 = vector.load %arg10[%c0_48, %c0_49] : memref<128x1xf32, #tpu.memory_space<vmem>>, vector<128x1xf32>
      %85 = vector.broadcast %84 : vector<128x1xf32> to vector<128x256xf32>
      %86 = arith.addf %83, %85 : vector<128x256xf32>
      %87 = tpu.transpose %86, [1, 0] : vector<128x256xf32> -> vector<256x128xf32>
      %88 = arith.truncf %87 : vector<256x128xf32> to vector<256x128xbf16>
      %c0_50 = arith.constant 0 : index
      %c0_51 = arith.constant 0 : index
      %89 = vector.load %arg16[%c0_50, %c0_51] : memref<256x128xbf16, #tpu.memory_space<vmem>>, vector<256x128xbf16>
      tpu.vector_store %arg16[%c0_50, %c0_51], %88 {strides = array<i32>} : memref<256x128xbf16, #tpu.memory_space<vmem>>, vector<256x128xbf16>,
      %c0_52 = arith.constant 0 : index
      %c0_53 = arith.constant 0 : index
      %90 = vector.load %arg11[%c0_52, %c0_53] : memref<128x128xbf16, #tpu.memory_space<vmem>>, vector<128x128xbf16>
      %cst_54 = arith.constant dense<0.000000e+00> : vector<128x256xf32>
      %91 = tpu.matmul %90, %81, %cst_54 {dimension_numbers = #tpu.dot_dimension_numbers<[1], [0], [0], [1], [0, 0, 1, 1], [], []>} : vector<128x128xbf16>, vector<128x256xbf16>, vector<128x256xf32> -> vector<128x256xf32>
      %c0_55 = arith.constant 0 : index
      %c0_56 = arith.constant 0 : index
      %92 = vector.load %arg12[%c0_55, %c0_56] : memref<128x1xf32, #tpu.memory_space<vmem>>, vector<128x1xf32>
      %93 = vector.broadcast %92 : vector<128x1xf32> to vector<128x256xf32>
      %94 = arith.addf %91, %93 : vector<128x256xf32>
      %95 = arith.truncf %94 : vector<128x256xf32> to vector<128x256xbf16>
      %c0_57 = arith.constant 0 : index
      %c0_58 = arith.constant 0 : index
      %96 = vector.load %arg17[%c0_57, %c0_58] : memref<128x256xbf16, #tpu.memory_space<vmem>>, vector<128x256xbf16>
      tpu.vector_store %arg17[%c0_57, %c0_58], %95 {strides = array<i32>} : memref<128x256xbf16, #tpu.memory_space<vmem>>, vector<128x256xbf16>,
    } else {
    }
    %c128_i32 = arith.constant 128 : i32
    %3 = arith.muli %arg1, %c128_i32 : i32
    %4 = tpu.assume_multiple %3, 128 : i32
    %c0 = arith.constant 0 : index
    %c0_1 = arith.constant 0 : index
    %5 = arith.index_cast %4 : i32 to index
    %6 = vector.load %arg2[%c0, %c0_1, %5] : memref<1x128x256xf32, #tpu.memory_space<vmem>>, vector<1x128x128xf32>
    %7 = vector.shape_cast %6 : vector<1x128x128xf32> to vector<128x128xf32>
    %c0_2 = arith.constant 0 : index
    %c0_3 = arith.constant 0 : index
    %8 = vector.load %arg18[%c0_2, %c0_3] : memref<128x1xf32, #tpu.memory_space<vmem>>, vector<128x1xf32>
    %9 = vector.broadcast %8 : vector<128x1xf32> to vector<128x128xf32>
    %10 = arith.mulf %7, %9 : vector<128x128xf32>
    %c0_4 = arith.constant 0 : index
    %c0_5 = arith.constant 0 : index
    %11 = vector.load %arg19[%c0_4, %c0_5] : memref<128x1xf32, #tpu.memory_space<vmem>>, vector<128x1xf32>
    %12 = vector.broadcast %11 : vector<128x1xf32> to vector<128x128xf32>
    %13 = arith.addf %10, %12 : vector<128x128xf32>
    %14 = arith.truncf %13 : vector<128x128xf32> to vector<128x128xbf16>
    %c0_6 = arith.constant 0 : index
    %c0_7 = arith.constant 0 : index
    %15 = vector.load %arg7[%c0_6, %c0_7] : memref<128x128xbf16, #tpu.memory_space<vmem>>, vector<128x128xbf16>
    %cst = arith.constant dense<0.000000e+00> : vector<128x128xf32>
    %16 = tpu.matmul %15, %14, %cst {dimension_numbers = #tpu.dot_dimension_numbers<[1], [0], [0], [1], [0, 0, 1, 1], [], []>} : vector<128x128xbf16>, vector<128x128xbf16>, vector<128x128xf32> -> vector<128x128xf32>
    %c0_8 = arith.constant 0 : index
    %c0_9 = arith.constant 0 : index
    %17 = vector.load %arg8[%c0_8, %c0_9] : memref<128x1xf32, #tpu.memory_space<vmem>>, vector<128x1xf32>
    %18 = vector.broadcast %17 : vector<128x1xf32> to vector<128x128xf32>
    %19 = arith.addf %16, %18 : vector<128x128xf32>
    %20 = arith.truncf %19 : vector<128x128xf32> to vector<128x128xbf16>
    %c0_10 = arith.constant 0 : index
    %c0_11 = arith.constant 0 : index
    %21 = vector.load %arg16[%c0_10, %c0_11] : memref<256x128xbf16, #tpu.memory_space<vmem>>, vector<256x128xbf16>
    %cst_12 = arith.constant dense<0.000000e+00> : vector<256x128xf32>
    %22 = tpu.matmul %21, %20, %cst_12 {dimension_numbers = #tpu.dot_dimension_numbers<[1], [0], [0], [1], [0, 0, 1, 1], [], []>} : vector<256x128xbf16>, vector<128x128xbf16>, vector<256x128xf32> -> vector<256x128xf32>
    %cst_13 = arith.constant dense<0xFF800000> : vector<128xf32>
    %23 = vector.multi_reduction <maximumf>, %22, %cst_13 [0] : vector<256x128xf32> to vector<128xf32>
    %24 = vector.shape_cast %23 : vector<128xf32> to vector<1x128xf32>
    %25 = vector.broadcast %24 : vector<1x128xf32> to vector<256x128xf32>
    %26 = arith.subf %22, %25 : vector<256x128xf32>
    %27 = math.exp %26 : vector<256x128xf32>
    %cst_14 = arith.constant dense<0.000000e+00> : vector<128xf32>
    %28 = vector.multi_reduction <add>, %27, %cst_14 [0] : vector<256x128xf32> to vector<128xf32>
    %29 = vector.shape_cast %28 : vector<128xf32> to vector<1x128xf32>
    %30 = tpu.reciprocal %29 {approx = true} : vector<1x128xf32> -> vector<1x128xf32>
    %31 = vector.broadcast %30 : vector<1x128xf32> to vector<256x128xf32>
    %32 = arith.mulf %27, %31 : vector<256x128xf32>
    %33 = arith.truncf %32 : vector<256x128xf32> to vector<256x128xbf16>
    %c0_15 = arith.constant 0 : index
    %c0_16 = arith.constant 0 : index
    %34 = vector.load %arg17[%c0_15, %c0_16] : memref<128x256xbf16, #tpu.memory_space<vmem>>, vector<128x256xbf16>
    %cst_17 = arith.constant dense<0.000000e+00> : vector<128x128xf32>
    %35 = tpu.matmul %34, %33, %cst_17 {dimension_numbers = #tpu.dot_dimension_numbers<[1], [0], [0], [1], [0, 0, 1, 1], [], []>} : vector<128x256xbf16>, vector<256x128xbf16>, vector<128x128xf32> -> vector<128x128xf32>
    %36 = arith.truncf %35 : vector<128x128xf32> to vector<128x128xbf16>
    %c0_18 = arith.constant 0 : index
    %c0_19 = arith.constant 0 : index
    %37 = vector.load %arg13[%c0_18, %c0_19] : memref<128x128xbf16, #tpu.memory_space<vmem>>, vector<128x128xbf16>
    %cst_20 = arith.constant dense<0.000000e+00> : vector<128x128xf32>
    %38 = tpu.matmul %37, %36, %cst_20 {dimension_numbers = #tpu.dot_dimension_numbers<[1], [0], [0], [1], [0, 0, 1, 1], [], []>} : vector<128x128xbf16>, vector<128x128xbf16>, vector<128x128xf32> -> vector<128x128xf32>
    %c0_21 = arith.constant 0 : index
    %c0_22 = arith.constant 0 : index
    %39 = vector.load %arg14[%c0_21, %c0_22] : memref<128x1xf32, #tpu.memory_space<vmem>>, vector<128x1xf32>
    %40 = vector.broadcast %39 : vector<128x1xf32> to vector<128x128xf32>
    %41 = arith.addf %38, %40 : vector<128x128xf32>
    %42 = arith.addf %7, %41 : vector<128x128xf32>
    %c0_23 = arith.constant 0 : index
    %c0_24 = arith.constant 0 : index
    %c0_25 = arith.constant 0 : index
    %43 = vector.load %arg15[%c0_23, %c0_24, %c0_25] : memref<1x128x128xf32, #tpu.memory_space<vmem>>, vector<1x128x128xf32>
    %44 = vector.shape_cast %43 : vector<1x128x128xf32> to vector<128x128xf32>
    %45 = vector.shape_cast %42 : vector<128x128xf32> to vector<1x128x128xf32>
    tpu.vector_store %arg15[%c0_23, %c0_24, %c0_25], %45 {strides = array<i32>} : memref<1x128x128xf32, #tpu.memory_space<vmem>>, vector<1x128x128xf32>,
    return
  }
  func.func @transform_0(%arg0: i32, %arg1: i32) -> (i32, i32, i32) {
    %c0_i32 = arith.constant 0 : i32
    %c0_i32_0 = arith.constant 0 : i32
    %c0_i32_1 = arith.constant 0 : i32
    return %arg0, %c0_i32, %c0_i32_0 : i32, i32, i32
  }
  func.func @transform_1(%arg0: i32, %arg1: i32) -> (i32, i32) {
    %c0_i32 = arith.constant 0 : i32
    %c0_i32_0 = arith.constant 0 : i32
    %c0_i32_1 = arith.constant 0 : i32
    return %c0_i32, %c0_i32_0 : i32, i32
  }
  func.func @transform_2(%arg0: i32, %arg1: i32) -> (i32, i32) {
    %c0_i32 = arith.constant 0 : i32
    %c0_i32_0 = arith.constant 0 : i32
    %c0_i32_1 = arith.constant 0 : i32
    return %c0_i32, %c0_i32_0 : i32, i32
  }
  func.func @transform_3(%arg0: i32, %arg1: i32) -> (i32, i32) {
    %c0_i32 = arith.constant 0 : i32
    %c0_i32_0 = arith.constant 0 : i32
    %c0_i32_1 = arith.constant 0 : i32
    return %c0_i32, %c0_i32_0 : i32, i32
  }
  func.func @transform_4(%arg0: i32, %arg1: i32) -> (i32, i32) {
    %c0_i32 = arith.constant 0 : i32
    %c0_i32_0 = arith.constant 0 : i32
    %c0_i32_1 = arith.constant 0 : i32
    return %c0_i32, %c0_i32_0 : i32, i32
  }
  func.func @transform_5(%arg0: i32, %arg1: i32) -> (i32, i32) {
    %c0_i32 = arith.constant 0 : i32
    %c0_i32_0 = arith.constant 0 : i32
    %c0_i32_1 = arith.constant 0 : i32
    return %c0_i32, %c0_i32_0 : i32, i32
  }
  func.func @transform_6(%arg0: i32, %arg1: i32) -> (i32, i32) {
    %c0_i32 = arith.constant 0 : i32
    %c0_i32_0 = arith.constant 0 : i32
    %c0_i32_1 = arith.constant 0 : i32
    return %c0_i32, %c0_i32_0 : i32, i32
  }
  func.func @transform_7(%arg0: i32, %arg1: i32) -> (i32, i32) {
    %c0_i32 = arith.constant 0 : i32
    %c0_i32_0 = arith.constant 0 : i32
    %c0_i32_1 = arith.constant 0 : i32
    return %c0_i32, %c0_i32_0 : i32, i32
  }
  func.func @transform_8(%arg0: i32, %arg1: i32) -> (i32, i32) {
    %c0_i32 = arith.constant 0 : i32
    %c0_i32_0 = arith.constant 0 : i32
    %c0_i32_1 = arith.constant 0 : i32
    return %c0_i32, %c0_i32_0 : i32, i32
  }
  func.func @transform_9(%arg0: i32, %arg1: i32) -> (i32, i32) {
    %c0_i32 = arith.constant 0 : i32
    %c0_i32_0 = arith.constant 0 : i32
    %c0_i32_1 = arith.constant 0 : i32
    return %c0_i32, %c0_i32_0 : i32, i32
  }
  func.func @transform_10(%arg0: i32, %arg1: i32) -> (i32, i32) {
    %c0_i32 = arith.constant 0 : i32
    %c0_i32_0 = arith.constant 0 : i32
    %c0_i32_1 = arith.constant 0 : i32
    return %c0_i32, %c0_i32_0 : i32, i32
  }
  func.func @transform_11(%arg0: i32, %arg1: i32) -> (i32, i32) {
    %c0_i32 = arith.constant 0 : i32
    %c0_i32_0 = arith.constant 0 : i32
    %c0_i32_1 = arith.constant 0 : i32
    return %c0_i32, %c0_i32_0 : i32, i32
  }
  func.func @transform_12(%arg0: i32, %arg1: i32) -> (i32, i32) {
    %c0_i32 = arith.constant 0 : i32
    %c0_i32_0 = arith.constant 0 : i32
    %c0_i32_1 = arith.constant 0 : i32
    return %c0_i32, %c0_i32_0 : i32, i32
  }
  func.func @transform_13(%arg0: i32, %arg1: i32) -> (i32, i32, i32) {
    %c0_i32 = arith.constant 0 : i32
    %c0_i32_0 = arith.constant 0 : i32
    return %arg0, %c0_i32, %arg1 : i32, i32, i32
  }
}

</mosaic_0001>

<llo_original>
// kernel: tpu_custom_call.1
$region0: #{tpu_custom_call.1}
  #allocation0 [shape = 'u32[]', space=smem, size = 0x4, offset = 0x4, fixed_abs, tag = 'smem constant byte address 0x4 - core index']
  #allocation1 [shape = 'u32[72,128]{1,0:T(1,128)}', space=vmem, size = 0x9000, scoped, tag = 'internal scratch']
  #allocation2 [shape = 'bf16[256,128]{1,0:T(8,128)(2,1)}', space=vmem, size = 0x10000, scoped, tag = 'scratch operand']
  #allocation3 [shape = 'bf16[128,256]{1,0:T(8,128)(2,1)}', space=vmem, size = 0x10000, scoped, tag = 'scratch operand']
  #allocation4 [shape = 'f32[128,1]{1,0:T(8,128)}', space=vmem, size = 0x10000, scoped, tag = 'scratch operand']
  #allocation5 [shape = 'f32[128,1]{1,0:T(8,128)}', space=vmem, size = 0x10000, scoped, tag = 'scratch operand']
  %s0 = inlined_call_operand.hbm [shape: f32[2,128,256], index: 0, kind: input, shape index: {}]
  %s1 = inlined_call_operand.vmem [shape: f32[128,1], index: 1, kind: input, shape index: {}]
  %s2 = inlined_call_operand.vmem [shape: f32[128,1], index: 2, kind: input, shape index: {}]
  %s3 = inlined_call_operand.vmem [shape: f32[1,128], index: 3, kind: input, shape index: {}]
  %s4 = inlined_call_operand.vmem [shape: f32[128,1], index: 4, kind: input, shape index: {}]
  %s5 = inlined_call_operand.vmem [shape: bf16[128,128], index: 5, kind: input, shape index: {}]
  %s6 = inlined_call_operand.vmem [shape: f32[128,1], index: 6, kind: input, shape index: {}]
  %s7 = inlined_call_operand.vmem [shape: bf16[128,128], index: 7, kind: input, shape index: {}]
  %s8 = inlined_call_operand.vmem [shape: f32[128,1], index: 8, kind: input, shape index: {}]
  %s9 = inlined_call_operand.vmem [shape: bf16[128,128], index: 9, kind: input, shape index: {}]
  %s10 = inlined_call_operand.vmem [shape: f32[128,1], index: 10, kind: input, shape index: {}]
  %s11 = inlined_call_operand.vmem [shape: bf16[128,128], index: 11, kind: input, shape index: {}]
  %s12 = inlined_call_operand.vmem [shape: f32[128,1], index: 12, kind: input, shape index: {}]
  %s13 = inlined_call_operand.hbm [shape: f32[2,128,256], index: 13, kind: output, shape index: {}]
  %s14 = sld [smem:[#allocation0]]
  $region93: #{tpu_custom_call.1} parent=0
    _
  %s16 = ssub.s32 1, %s14
  %s17 = scalar_select 0, %s16, %s14
  $region1: #{tpu_custom_call.1} parent=0
    #allocation6 [shape = 'u8[262144]{0}', space=vmem, size = 0x40000, scoped, tag = 'input window, operand 0']
    #allocation7 [shape = 's32[2]{0}', space=sflag, size = 0x8, scoped, tag = 'scoped memory for tpu_custom_call.1']
    #allocation8 [shape = 's32[2]{0}', space=sflag, size = 0x8, scoped, tag = 'scoped memory for tpu_custom_call.1']
    #allocation9 [shape = 'u8[131072]{0}', space=vmem, size = 0x20000, scoped, tag = 'output window, operand 0']
    %18 = vsyncpa [#allocation7], 0
    %s19 = scalar_lea.sflag [#allocation7], 1
    %20 = vsyncpa %s19, 0
    %21 = vsyncpa [#allocation8], 0
    %s22 = scalar_lea.sflag [#allocation8], 1
    %23 = vsyncpa %s22, 0
    loop: start=0, step=1, limit=6
    $region2: #{tpu_custom_call.1} parent=1 // loop_pre_header
      _
    $region3: #{tpu_custom_call.1} parent=1 // loop_header
      %s25 = sphi 0, %s29
      %p26 = scmp.ge.s32.totalorder %s25, 6
      %s32 = sphi 0, %s44
      %s33 = sphi 0, %s40
      %s34 = sphi 0, %s32
      %s35 = sphi 0, %s33
      %s36 = sphi 0, %s34
      %s37 = sphi 0, %s35
      %s47 = sphi 0, %s49
      %s50 = sphi 0, %s47
      %s51 = sphi 0, %s50
      %s67 = sphi 0, %s51
      %s71 = sphi 0, %s71
      %s73 = sphi 0, %s71
      %s74 = sphi 0, %s73
      %s88 = sphi 0, %s74
      %s92 = sphi 0, %s92
      %s94 = sphi 0, %s92
      %s95 = sphi 0, %s94
      %s109 = sphi 0, %s95
      %s113 = sphi 0, %s113
      %s115 = sphi 0, %s113
      %s116 = sphi 0, %s115
      %s130 = sphi 0, %s116
      %s134 = sphi 0, %s134
      %s136 = sphi 0, %s134
      %s137 = sphi 0, %s136
      %s151 = sphi 0, %s137
      %s155 = sphi 0, %s155
      %s157 = sphi 0, %s155
      %s158 = sphi 0, %s157
      %s172 = sphi 0, %s158
      %s176 = sphi 0, %s176
      %s178 = sphi 0, %s176
      %s179 = sphi 0, %s178
      %s193 = sphi 0, %s179
      %s197 = sphi 0, %s197
      %s199 = sphi 0, %s197
      %s200 = sphi 0, %s199
      %s214 = sphi 0, %s200
      %s218 = sphi 0, %s218
      %s220 = sphi 0, %s218
      %s221 = sphi 0, %s220
      %s235 = sphi 0, %s221
      %s239 = sphi 0, %s239
      %s241 = sphi 0, %s239
      %s242 = sphi 0, %s241
      %s256 = sphi 0, %s242
      %s260 = sphi 0, %s260
      %s262 = sphi 0, %s260
      %s263 = sphi 0, %s262
      %s277 = sphi 0, %s263
      %s281 = sphi 0, %s281
      %s283 = sphi 0, %s281
      %s284 = sphi 0, %s283
      %s298 = sphi 0, %s284
      %s302 = sphi 0, %s302
      %s304 = sphi 0, %s302
      %s305 = sphi 0, %s304
      %s319 = sphi 0, %s305
      %s327 = sphi 0, %s329
      %s330 = sphi 0, %s327
      %s331 = sphi 0, %s330
      %s347 = sphi 0, %s331
    $region4: #{tpu_custom_call.1} parent=1 // loop_header_branch
      %28 = sbr.rel (%p26) target = $region8
    $region5: #{tpu_custom_call.1} parent=1 // loop_body
      %s30 = ssub.s32 %s25, 1
      %s31 = ssub.s32 %s25, 2
      %s38 = sadd.s32 1, %s33
      %p39 = scmp.ge.s32.totalorder %s38, 2
      %s40 = scalar_select %p39, 0, %s38
      %s41 = sadd.s32 1, %s32
      %s42 = scalar_select %p39, %s41, %s32
      %p43 = scmp.ge.s32.totalorder %s42, 2
      %s44 = scalar_select %p43, 0, %s42
      %s45 = ssub.s32 %s32, %s44
      %p46 = scmp.eq.s32.totalorder %s45, 0
      %s48 = sadd.s32 %s47, 1
      %s49 = scalar_select %p46, %s47, %s48
      %p52 = pneg %p46
      %p53 = scmp.eq.s32.totalorder %s25, 3
      %p54 = por %p52, %p53
      %p55 = scmp.ne.s32.totalorder %s47, %s50
      %p56 = scmp.eq.s32.totalorder %s25, 0
      %p57 = por %p55, %p56
      %p58 = scmp.ne.s32.totalorder %s47, %s50
      %p59 = scmp.eq.s32.totalorder %s30, 3
      %p60 = por %p58, %p59
      %p61 = scmp.ne.s32.totalorder %s50, %s51
      %p62 = scmp.eq.s32.totalorder %s30, 0
      %p63 = por %p61, %p62
      %p64 = scmp.ne.s32.totalorder %s50, %s51
      %p65 = scmp.eq.s32.totalorder %s31, 3
      %p66 = por %p64, %p65
      %p68 = scmp.ne.s32.totalorder %s51, %s67
      %p69 = scmp.eq.s32.totalorder %s31, 0
      %p70 = por %p68, %p69
      %s72 = sadd.s32 %s71, 1
      %p75 = scmp.eq.s32.totalorder %s25, 3
      %p76 = scmp.ne.s32.totalorder %s71, %s73
      %p77 = scmp.eq.s32.totalorder %s25, 0
      %p78 = por %p76, %p77
      %p79 = scmp.ne.s32.totalorder %s71, %s73
      %p80 = scmp.eq.s32.totalorder %s30, 3
      %p81 = por %p79, %p80
      %p82 = scmp.ne.s32.totalorder %s73, %s74
      %p83 = scmp.eq.s32.totalorder %s30, 0
      %p84 = por %p82, %p83
      %p85 = scmp.ne.s32.totalorder %s73, %s74
      %p86 = scmp.eq.s32.totalorder %s31, 3
      %p87 = por %p85, %p86
      %p89 = scmp.ne.s32.totalorder %s74, %s88
      %p90 = scmp.eq.s32.totalorder %s31, 0
      %p91 = por %p89, %p90
      %s93 = sadd.s32 %s92, 1
      %p96 = scmp.eq.s32.totalorder %s25, 3
      %p97 = scmp.ne.s32.totalorder %s92, %s94
      %p98 = scmp.eq.s32.totalorder %s25, 0
      %p99 = por %p97, %p98
      %p100 = scmp.ne.s32.totalorder %s92, %s94
      %p101 = scmp.eq.s32.totalorder %s30, 3
      %p102 = por %p100, %p101
      %p103 = scmp.ne.s32.totalorder %s94, %s95
      %p104 = scmp.eq.s32.totalorder %s30, 0
      %p105 = por %p103, %p104
      %p106 = scmp.ne.s32.totalorder %s94, %s95
      %p107 = scmp.eq.s32.totalorder %s31, 3
      %p108 = por %p106, %p107
      %p110 = scmp.ne.s32.totalorder %s95, %s109
      %p111 = scmp.eq.s32.totalorder %s31, 0
      %p112 = por %p110, %p111
      %s114 = sadd.s32 %s113, 1
      %p117 = scmp.eq.s32.totalorder %s25, 3
      %p118 = scmp.ne.s32.totalorder %s113, %s115
      %p119 = scmp.eq.s32.totalorder %s25, 0
      %p120 = por %p118, %p119
      %p121 = scmp.ne.s32.totalorder %s113, %s115
      %p122 = scmp.eq.s32.totalorder %s30, 3
      %p123 = por %p121, %p122
      %p124 = scmp.ne.s32.totalorder %s115, %s116
      %p125 = scmp.eq.s32.totalorder %s30, 0
      %p126 = por %p124, %p125
      %p127 = scmp.ne.s32.totalorder %s115, %s116
      %p128 = scmp.eq.s32.totalorder %s31, 3
      %p129 = por %p127, %p128
      %p131 = scmp.ne.s32.totalorder %s116, %s130
      %p132 = scmp.eq.s32.totalorder %s31, 0
      %p133 = por %p131, %p132
      %s135 = sadd.s32 %s134, 1
      %p138 = scmp.eq.s32.totalorder %s25, 3
      %p139 = scmp.ne.s32.totalorder %s134, %s136
      %p140 = scmp.eq.s32.totalorder %s25, 0
      %p141 = por %p139, %p140
      %p142 = scmp.ne.s32.totalorder %s134, %s136
      %p143 = scmp.eq.s32.totalorder %s30, 3
      %p144 = por %p142, %p143
      %p145 = scmp.ne.s32.totalorder %s136, %s137
      %p146 = scmp.eq.s32.totalorder %s30, 0
      %p147 = por %p145, %p146
      %p148 = scmp.ne.s32.totalorder %s136, %s137
      %p149 = scmp.eq.s32.totalorder %s31, 3
      %p150 = por %p148, %p149
      %p152 = scmp.ne.s32.totalorder %s137, %s151
      %p153 = scmp.eq.s32.totalorder %s31, 0
      %p154 = por %p152, %p153
      %s156 = sadd.s32 %s155, 1
      %p159 = scmp.eq.s32.totalorder %s25, 3
      %p160 = scmp.ne.s32.totalorder %s155, %s157
      %p161 = scmp.eq.s32.totalorder %s25, 0
      %p162 = por %p160, %p161
      %p163 = scmp.ne.s32.totalorder %s155, %s157
      %p164 = scmp.eq.s32.totalorder %s30, 3
      %p165 = por %p163, %p164
      %p166 = scmp.ne.s32.totalorder %s157, %s158
      %p167 = scmp.eq.s32.totalorder %s30, 0
      %p168 = por %p166, %p167
      %p169 = scmp.ne.s32.totalorder %s157, %s158
      %p170 = scmp.eq.s32.totalorder %s31, 3
      %p171 = por %p169, %p170
      %p173 = scmp.ne.s32.totalorder %s158, %s172
      %p174 = scmp.eq.s32.totalorder %s31, 0
      %p175 = por %p173, %p174
      %s177 = sadd.s32 %s176, 1
      %p180 = scmp.eq.s32.totalorder %s25, 3
      %p181 = scmp.ne.s32.totalorder %s176, %s178
      %p182 = scmp.eq.s32.totalorder %s25, 0
      %p183 = por %p181, %p182
      %p184 = scmp.ne.s32.totalorder %s176, %s178
      %p185 = scmp.eq.s32.totalorder %s30, 3
      %p186 = por %p184, %p185
      %p187 = scmp.ne.s32.totalorder %s178, %s179
      %p188 = scmp.eq.s32.totalorder %s30, 0
      %p189 = por %p187, %p188
      %p190 = scmp.ne.s32.totalorder %s178, %s179
      %p191 = scmp.eq.s32.totalorder %s31, 3
      %p192 = por %p190, %p191
      %p194 = scmp.ne.s32.totalorder %s179, %s193
      %p195 = scmp.eq.s32.totalorder %s31, 0
      %p196 = por %p194, %p195
      %s198 = sadd.s32 %s197, 1
      %p201 = scmp.eq.s32.totalorder %s25, 3
      %p202 = scmp.ne.s32.totalorder %s197, %s199
      %p203 = scmp.eq.s32.totalorder %s25, 0
      %p204 = por %p202, %p203
      %p205 = scmp.ne.s32.totalorder %s197, %s199
      %p206 = scmp.eq.s32.totalorder %s30, 3
      %p207 = por %p205, %p206
      %p208 = scmp.ne.s32.totalorder %s199, %s200
      %p209 = scmp.eq.s32.totalorder %s30, 0
      %p210 = por %p208, %p209
      %p211 = scmp.ne.s32.totalorder %s199, %s200
      %p212 = scmp.eq.s32.totalorder %s31, 3
      %p213 = por %p211, %p212
      %p215 = scmp.ne.s32.totalorder %s200, %s214
      %p216 = scmp.eq.s32.totalorder %s31, 0
      %p217 = por %p215, %p216
      %s219 = sadd.s32 %s218, 1
      %p222 = scmp.eq.s32.totalorder %s25, 3
      %p223 = scmp.ne.s32.totalorder %s218, %s220
      %p224 = scmp.eq.s32.totalorder %s25, 0
      %p225 = por %p223, %p224
      %p226 = scmp.ne.s32.totalorder %s218, %s220
      %p227 = scmp.eq.s32.totalorder %s30, 3
      %p228 = por %p226, %p227
      %p229 = scmp.ne.s32.totalorder %s220, %s221
      %p230 = scmp.eq.s32.totalorder %s30, 0
      %p231 = por %p229, %p230
      %p232 = scmp.ne.s32.totalorder %s220, %s221
      %p233 = scmp.eq.s32.totalorder %s31, 3
      %p234 = por %p232, %p233
      %p236 = scmp.ne.s32.totalorder %s221, %s235
      %p237 = scmp.eq.s32.totalorder %s31, 0
      %p238 = por %p236, %p237
      %s240 = sadd.s32 %s239, 1
      %p243 = scmp.eq.s32.totalorder %s25, 3
      %p244 = scmp.ne.s32.totalorder %s239, %s241
      %p245 = scmp.eq.s32.totalorder %s25, 0
      %p246 = por %p244, %p245
      %p247 = scmp.ne.s32.totalorder %s239, %s241
      %p248 = scmp.eq.s32.totalorder %s30, 3
      %p249 = por %p247, %p248
      %p250 = scmp.ne.s32.totalorder %s241, %s242
      %p251 = scmp.eq.s32.totalorder %s30, 0
      %p252 = por %p250, %p251
      %p253 = scmp.ne.s32.totalorder %s241, %s242
      %p254 = scmp.eq.s32.totalorder %s31, 3
      %p255 = por %p253, %p254
      %p257 = scmp.ne.s32.totalorder %s242, %s256
      %p258 = scmp.eq.s32.totalorder %s31, 0
      %p259 = por %p257, %p258
      %s261 = sadd.s32 %s260, 1
      %p264 = scmp.eq.s32.totalorder %s25, 3
      %p265 = scmp.ne.s32.totalorder %s260, %s262
      %p266 = scmp.eq.s32.totalorder %s25, 0
      %p267 = por %p265, %p266
      %p268 = scmp.ne.s32.totalorder %s260, %s262
      %p269 = scmp.eq.s32.totalorder %s30, 3
      %p270 = por %p268, %p269
      %p271 = scmp.ne.s32.totalorder %s262, %s263
      %p272 = scmp.eq.s32.totalorder %s30, 0
      %p273 = por %p271, %p272
      %p274 = scmp.ne.s32.totalorder %s262, %s263
      %p275 = scmp.eq.s32.totalorder %s31, 3
      %p276 = por %p274, %p275
      %p278 = scmp.ne.s32.totalorder %s263, %s277
      %p279 = scmp.eq.s32.totalorder %s31, 0
      %p280 = por %p278, %p279
      %s282 = sadd.s32 %s281, 1
      %p285 = scmp.eq.s32.totalorder %s25, 3
      %p286 = scmp.ne.s32.totalorder %s281, %s283
      %p287 = scmp.eq.s32.totalorder %s25, 0
      %p288 = por %p286, %p287
      %p289 = scmp.ne.s32.totalorder %s281, %s283
      %p290 = scmp.eq.s32.totalorder %s30, 3
      %p291 = por %p289, %p290
      %p292 = scmp.ne.s32.totalorder %s283, %s284
      %p293 = scmp.eq.s32.totalorder %s30, 0
      %p294 = por %p292, %p293
      %p295 = scmp.ne.s32.totalorder %s283, %s284
      %p296 = scmp.eq.s32.totalorder %s31, 3
      %p297 = por %p295, %p296
      %p299 = scmp.ne.s32.totalorder %s284, %s298
      %p300 = scmp.eq.s32.totalorder %s31, 0
      %p301 = por %p299, %p300
      %s303 = sadd.s32 %s302, 1
      %p306 = scmp.eq.s32.totalorder %s25, 3
      %p307 = scmp.ne.s32.totalorder %s302, %s304
      %p308 = scmp.eq.s32.totalorder %s25, 0
      %p309 = por %p307, %p308
      %p310 = scmp.ne.s32.totalorder %s302, %s304
      %p311 = scmp.eq.s32.totalorder %s30, 3
      %p312 = por %p310, %p311
      %p313 = scmp.ne.s32.totalorder %s304, %s305
      %p314 = scmp.eq.s32.totalorder %s30, 0
      %p315 = por %p313, %p314
      %p316 = scmp.ne.s32.totalorder %s304, %s305
      %p317 = scmp.eq.s32.totalorder %s31, 3
      %p318 = por %p316, %p317
      %p320 = scmp.ne.s32.totalorder %s305, %s319
      %p321 = scmp.eq.s32.totalorder %s31, 0
      %p322 = por %p320, %p321
      %s323 = ssub.s32 %s32, %s44
      %s324 = ssub.s32 %s33, %s40
      %s325 = sor.u32 %s323, %s324
      %p326 = scmp.eq.s32.totalorder %s325, 0
      %s328 = sadd.s32 %s327, 1
      %s329 = scalar_select %p326, %s327, %s328
      %p332 = pneg %p326
      %p333 = scmp.eq.s32.totalorder %s25, 3
      %p334 = por %p332, %p333
      %p335 = scmp.ne.s32.totalorder %s327, %s330
      %p336 = scmp.eq.s32.totalorder %s25, 0
      %p337 = por %p335, %p336
      %p338 = scmp.ne.s32.totalorder %s327, %s330
      %p339 = scmp.eq.s32.totalorder %s30, 3
      %p340 = por %p338, %p339
      %p341 = scmp.ne.s32.totalorder %s330, %s331
      %p342 = scmp.eq.s32.totalorder %s30, 0
      %p343 = por %p341, %p342
      %p344 = scmp.ne.s32.totalorder %s330, %s331
      %p345 = scmp.eq.s32.totalorder %s31, 3
      %p346 = por %p344, %p345
      %p348 = scmp.ne.s32.totalorder %s331, %s347
      %p349 = scmp.eq.s32.totalorder %s31, 0
      %p350 = por %p348, %p349
      %p351 = scmp.le.s32.totalorder 1, %s25
      %p352 = scmp.lt.s32.totalorder %s25, 5
      %p353 = pnand %p351, %p352
      %p354 = pneg %p353
      // Predicated region
      $region9: #{tpu_custom_call.1} parent=5 // pred_check
        _
      $region10: #{tpu_custom_call.1} parent=5 // pred_check_branch
        %356 = sbr.rel (%p353) target = $region12
      $region11: #{tpu_custom_call.1} parent=5 // pred_region
        %s357 = ssub.s32 %s25, 1
        // Predicated region
        $region13: #{tpu_custom_call.1} parent=11 // pred_check
          %p358 = pneg %p84
        $region14: #{tpu_custom_call.1} parent=11 // pred_check_branch
          %360 = sbr.rel (%p358) target = $region16
        $region15: #{tpu_custom_call.1} parent=11 // pred_region
          _
        $region16: #{tpu_custom_call.1} parent=11 // pred_fallthru
          _
        // Predicated region
        $region17: #{tpu_custom_call.1} parent=11 // pred_check
          %p361 = pneg %p105
        $region18: #{tpu_custom_call.1} parent=11 // pred_check_branch
          %363 = sbr.rel (%p361) target = $region20
        $region19: #{tpu_custom_call.1} parent=11 // pred_region
          _
        $region20: #{tpu_custom_call.1} parent=11 // pred_fallthru
          _
        // Predicated region
        $region21: #{tpu_custom_call.1} parent=11 // pred_check
          %p364 = pneg %p126
        $region22: #{tpu_custom_call.1} parent=11 // pred_check_branch
          %366 = sbr.rel (%p364) target = $region24
        $region23: #{tpu_custom_call.1} parent=11 // pred_region
          _
        $region24: #{tpu_custom_call.1} parent=11 // pred_fallthru
          _
        // Predicated region
        $region25: #{tpu_custom_call.1} parent=11 // pred_check
          %p367 = pneg %p147
        $region26: #{tpu_custom_call.1} parent=11 // pred_check_branch
          %369 = sbr.rel (%p367) target = $region28
        $region27: #{tpu_custom_call.1} parent=11 // pred_region
          _
        $region28: #{tpu_custom_call.1} parent=11 // pred_fallthru
          _
        // Predicated region
        $region29: #{tpu_custom_call.1} parent=11 // pred_check
          %p370 = pneg %p168
        $region30: #{tpu_custom_call.1} parent=11 // pred_check_branch
          %372 = sbr.rel (%p370) target = $region32
        $region31: #{tpu_custom_call.1} parent=11 // pred_region
          _
        $region32: #{tpu_custom_call.1} parent=11 // pred_fallthru
          _
        // Predicated region
        $region33: #{tpu_custom_call.1} parent=11 // pred_check
          %p373 = pneg %p189
        $region34: #{tpu_custom_call.1} parent=11 // pred_check_branch
          %375 = sbr.rel (%p373) target = $region36
        $region35: #{tpu_custom_call.1} parent=11 // pred_region
          _
        $region36: #{tpu_custom_call.1} parent=11 // pred_fallthru
          _
        // Predicated region
        $region37: #{tpu_custom_call.1} parent=11 // pred_check
          %p376 = pneg %p210
        $region38: #{tpu_custom_call.1} parent=11 // pred_check_branch
          %378 = sbr.rel (%p376) target = $region40
        $region39: #{tpu_custom_call.1} parent=11 // pred_region
          _
        $region40: #{tpu_custom_call.1} parent=11 // pred_fallthru
          _
        // Predicated region
        $region41: #{tpu_custom_call.1} parent=11 // pred_check
          %p379 = pneg %p231
        $region42: #{tpu_custom_call.1} parent=11 // pred_check_branch
          %381 = sbr.rel (%p379) target = $region44
        $region43: #{tpu_custom_call.1} parent=11 // pred_region
          _
        $region44: #{tpu_custom_call.1} parent=11 // pred_fallthru
          _
        // Predicated region
        $region45: #{tpu_custom_call.1} parent=11 // pred_check
          %p382 = pneg %p252
        $region46: #{tpu_custom_call.1} parent=11 // pred_check_branch
          %384 = sbr.rel (%p382) target = $region48
        $region47: #{tpu_custom_call.1} parent=11 // pred_region
          _
        $region48: #{tpu_custom_call.1} parent=11 // pred_fallthru
          _
        // Predicated region
        $region49: #{tpu_custom_call.1} parent=11 // pred_check
          %p385 = pneg %p273
        $region50: #{tpu_custom_call.1} parent=11 // pred_check_branch
          %387 = sbr.rel (%p385) target = $region52
        $region51: #{tpu_custom_call.1} parent=11 // pred_region
          _
        $region52: #{tpu_custom_call.1} parent=11 // pred_fallthru
          _
        // Predicated region
        $region53: #{tpu_custom_call.1} parent=11 // pred_check
          %p388 = pneg %p294
        $region54: #{tpu_custom_call.1} parent=11 // pred_check_branch
          %390 = sbr.rel (%p388) target = $region56
        $region55: #{tpu_custom_call.1} parent=11 // pred_region
          _
        $region56: #{tpu_custom_call.1} parent=11 // pred_fallthru
          _
        // Predicated region
        $region57: #{tpu_custom_call.1} parent=11 // pred_check
          %p391 = pneg %p315
        $region58: #{tpu_custom_call.1} parent=11 // pred_check_branch
          %393 = sbr.rel (%p391) target = $region60
        $region59: #{tpu_custom_call.1} parent=11 // pred_region
          _
        $region60: #{tpu_custom_call.1} parent=11 // pred_fallthru
          _
      $region12: #{tpu_custom_call.1} parent=5 // pred_fallthru
        _
      %p394 = scmp.lt.s32.totalorder %s25, 4
      // Predicated region
      $region61: #{tpu_custom_call.1} parent=5 // pred_check
        %p395 = pneg %p394
      $region62: #{tpu_custom_call.1} parent=5 // pred_check_branch
        %397 = sbr.rel (%p395) target = $region64
      $region63: #{tpu_custom_call.1} parent=5 // pred_region
        // Predicated region
        $region65: #{tpu_custom_call.1} parent=63 // pred_check
          %p398 = pneg %p57
        $region66: #{tpu_custom_call.1} parent=63 // pred_check_branch
          %400 = sbr.rel (%p398) target = $region68
        $region67: #{tpu_custom_call.1} parent=63 // pred_region
          %s401 = sand.u32 %s47, 1
          %s402 = scalar_lea.sflag [#allocation7], %s401
          %s403 = sand.u32 %s47, 1
          %s404 = smul.addr %s403, 256
          %s405 = scalar_lea.vmem [#allocation6], %s404
          %407 = vsyncadd %s402, 0
          %s408 = smul.addr %s32, 32
          %s409 = smul.addr %s408, 8
          %s410 = scalar_lea.hbm %s0, %s409
          %s411 = sshll.u32 %s410, 4
          %s412 = int_to_ptr.hbm [resolvable:$true] %s411
          %s413 = sshll.u32 %s405, 4
          %s414 = int_to_ptr.vmem [resolvable:$true] %s413
          %419 = dma.hbm_to_vmem [thread:$0]  %s412, 4096, %s414, %s402, 256, 256, 16
        $region68: #{tpu_custom_call.1} parent=63 // pred_fallthru
          _
      $region64: #{tpu_custom_call.1} parent=5 // pred_fallthru
        _
      %p420 = scmp.le.s32.totalorder 1, %s25
      %p421 = scmp.lt.s32.totalorder %s25, 5
      %p422 = pnand %p420, %p421
      %p423 = pneg %p422
      // Predicated region
      $region69: #{tpu_custom_call.1} parent=5 // pred_check
        _
      $region70: #{tpu_custom_call.1} parent=5 // pred_check_branch
        %425 = sbr.rel (%p422) target = $region72
      $region71: #{tpu_custom_call.1} parent=5 // pred_region
        %s426 = ssub.s32 %s25, 1
        %s427 = sand.u32 %s50, 1
        %s428 = scalar_lea.sflag [#allocation7], %s427
        %s429 = sand.u32 %s50, 1
        %s430 = smul.addr %s429, 256
        %s431 = scalar_lea.vmem [#allocation6], %s430
        // Predicated region
        $region73: #{tpu_custom_call.1} parent=71 // pred_check
          %p432 = pneg %p63
        $region74: #{tpu_custom_call.1} parent=71 // pred_check_branch
          %434 = sbr.rel (%p432) target = $region76
        $region75: #{tpu_custom_call.1} parent=71 // pred_region
          %436 = dma.done %s428, 4096
        $region76: #{tpu_custom_call.1} parent=71 // pred_fallthru
          _
        %s437 = sand.u32 %s50, 1
        %s438 = scalar_lea.sflag [#allocation7], %s437
        %s439 = sand.u32 %s50, 1
        %s440 = smul.addr %s439, 256
        %s441 = scalar_lea.vmem [#allocation6], %s440
        %p442 = pneg %p63
        %p443 = pneg %p60
        %p444 = pneg %p84
        %p445 = pneg %p81
        %p446 = pneg %p105
        %p447 = pneg %p102
        %p448 = pneg %p126
        %p449 = pneg %p123
        %p450 = pneg %p147
        %p451 = pneg %p144
        %p452 = pneg %p168
        %p453 = pneg %p165
        %p454 = pneg %p189
        %p455 = pneg %p186
        %p456 = pneg %p210
        %p457 = pneg %p207
        %p458 = pneg %p231
        %p459 = pneg %p228
        %p460 = pneg %p252
        %p461 = pneg %p249
        %p462 = pneg %p273
        %p463 = pneg %p270
        %p464 = pneg %p294
        %p465 = pneg %p291
        %p466 = pneg %p315
        %p467 = pneg %p312
        %p468 = pneg %p343
        %p469 = pneg %p340
        %s470 = sand.u32 %s330, 1
        %s471 = scalar_lea.sflag [#allocation8], %s470
        %s472 = sand.u32 %s330, 1
        %s473 = smul.addr %s472, 128
        %s474 = scalar_lea.vmem [#allocation9], %s473
        %p475 = scmp.eq.s32.totalorder %s35, 0
        // Predicated region
        $region77: #{tpu_custom_call.1} parent=71 // pred_check
          %p476 = pneg %p475
        $region78: #{tpu_custom_call.1} parent=71 // pred_check_branch
          %478 = sbr.rel (%p476) target = $region80
        $region79: #{tpu_custom_call.1} parent=71 // pred_region
          %v479 = vld [vmem:[%s431] sm:$0xff]
          %v480 = vld [vmem:[%s431 + $0x8] sm:$0xff]
          %v481 = vld [vmem:[%s431 + $0x10] sm:$0xff]
          %v482 = vld [vmem:[%s431 + $0x18] sm:$0xff]
          %v483 = vld [vmem:[%s431 + $0x20] sm:$0xff]
          %v484 = vld [vmem:[%s431 + $0x28] sm:$0xff]
          %v485 = vld [vmem:[%s431 + $0x30] sm:$0xff]
          %v486 = vld [vmem:[%s431 + $0x38] sm:$0xff]
          %v487 = vld [vmem:[%s431 + $0x40] sm:$0xff]
          %v488 = vld [vmem:[%s431 + $0x48] sm:$0xff]
          %v489 = vld [vmem:[%s431 + $0x50] sm:$0xff]
          %v490 = vld [vmem:[%s431 + $0x58] sm:$0xff]
          %v491 = vld [vmem:[%s431 + $0x60] sm:$0xff]
          %v492 = vld [vmem:[%s431 + $0x68] sm:$0xff]
          %v493 = vld [vmem:[%s431 + $0x70] sm:$0xff]
          %v494 = vld [vmem:[%s431 + $0x78] sm:$0xff]
          %v495 = vld [vmem:[%s431 + $0x80] sm:$0xff]
          %v496 = vld [vmem:[%s431 + $0x88] sm:$0xff]
          %v497 = vld [vmem:[%s431 + $0x90] sm:$0xff]
          %v498 = vld [vmem:[%s431 + $0x98] sm:$0xff]
          %v499 = vld [vmem:[%s431 + $0xa0] sm:$0xff]
          %v500 = vld [vmem:[%s431 + $0xa8] sm:$0xff]
          %v501 = vld [vmem:[%s431 + $0xb0] sm:$0xff]
          %v502 = vld [vmem:[%s431 + $0xb8] sm:$0xff]
          %v503 = vld [vmem:[%s431 + $0xc0] sm:$0xff]
          %v504 = vld [vmem:[%s431 + $0xc8] sm:$0xff]
          %v505 = vld [vmem:[%s431 + $0xd0] sm:$0xff]
          %v506 = vld [vmem:[%s431 + $0xd8] sm:$0xff]
          %v507 = vld [vmem:[%s431 + $0xe0] sm:$0xff]
          %v508 = vld [vmem:[%s431 + $0xe8] sm:$0xff]
          %v509 = vld [vmem:[%s431 + $0xf0] sm:$0xff]
          %v510 = vld [vmem:[%s431 + $0xf8] sm:$0xff]
          %v511 = vadd.f32 %v479, %v480
          %512 = vadd.xlane.f32.xlu0 %v511
          %v513 = vpop.xlane.xlu0 %512
          %v514 = vadd.f32 %v481, %v482
          %515 = vadd.xlane.f32.xlu0 %v514
          %v516 = vpop.xlane.xlu0 %515
          %v517 = vadd.f32 %v483, %v484
          %518 = vadd.xlane.f32.xlu0 %v517
          %v519 = vpop.xlane.xlu0 %518
          %v520 = vadd.f32 %v485, %v486
          %521 = vadd.xlane.f32.xlu0 %v520
          %v522 = vpop.xlane.xlu0 %521
          %v523 = vadd.f32 %v487, %v488
          %524 = vadd.xlane.f32.xlu0 %v523
          %v525 = vpop.xlane.xlu0 %524
          %v526 = vadd.f32 %v489, %v490
          %527 = vadd.xlane.f32.xlu0 %v526
          %v528 = vpop.xlane.xlu0 %527
          %v529 = vadd.f32 %v491, %v492
          %530 = vadd.xlane.f32.xlu0 %v529
          %v531 = vpop.xlane.xlu0 %530
          %v532 = vadd.f32 %v493, %v494
          %533 = vadd.xlane.f32.xlu0 %v532
          %v534 = vpop.xlane.xlu0 %533
          %v535 = vadd.f32 %v495, %v496
          %536 = vadd.xlane.f32.xlu0 %v535
          %v537 = vpop.xlane.xlu0 %536
          %v538 = vadd.f32 %v497, %v498
          %539 = vadd.xlane.f32.xlu0 %v538
          %v540 = vpop.xlane.xlu0 %539
          %v541 = vadd.f32 %v499, %v500
          %542 = vadd.xlane.f32.xlu0 %v541
          %v543 = vpop.xlane.xlu0 %542
          %v544 = vadd.f32 %v501, %v502
          %545 = vadd.xlane.f32.xlu0 %v544
          %v546 = vpop.xlane.xlu0 %545
          %v547 = vadd.f32 %v503, %v504
          %548 = vadd.xlane.f32.xlu0 %v547
          %v549 = vpop.xlane.xlu0 %548
          %v550 = vadd.f32 %v505, %v506
          %551 = vadd.xlane.f32.xlu0 %v550
          %v552 = vpop.xlane.xlu0 %551
          %v553 = vadd.f32 %v507, %v508
          %554 = vadd.xlane.f32.xlu0 %v553
          %v555 = vpop.xlane.xlu0 %554
          %v556 = vadd.f32 %v509, %v510
          %557 = vadd.xlane.f32.xlu0 %v556
          %v558 = vpop.xlane.xlu0 %557
          %v559 = vmul.f32 %v479, %v479
          %v560 = vmul.f32 %v480, %v480
          %v561 = vmul.f32 %v481, %v481
          %v562 = vmul.f32 %v482, %v482
          %v563 = vmul.f32 %v483, %v483
          %v564 = vmul.f32 %v484, %v484
          %v565 = vmul.f32 %v485, %v485
          %v566 = vmul.f32 %v486, %v486
          %v567 = vmul.f32 %v487, %v487
          %v568 = vmul.f32 %v488, %v488
          %v569 = vmul.f32 %v489, %v489
          %v570 = vmul.f32 %v490, %v490
          %v571 = vmul.f32 %v491, %v491
          %v572 = vmul.f32 %v492, %v492
          %v573 = vmul.f32 %v493, %v493
          %v574 = vmul.f32 %v494, %v494
          %v575 = vmul.f32 %v495, %v495
          %v576 = vmul.f32 %v496, %v496
          %v577 = vmul.f32 %v497, %v497
          %v578 = vmul.f32 %v498, %v498
          %v579 = vmul.f32 %v499, %v499
          %v580 = vmul.f32 %v500, %v500
          %v581 = vmul.f32 %v501, %v501
          %v582 = vmul.f32 %v502, %v502
          %v583 = vmul.f32 %v503, %v503
          %v584 = vmul.f32 %v504, %v504
          %v585 = vmul.f32 %v505, %v505
          %v586 = vmul.f32 %v506, %v506
          %v587 = vmul.f32 %v507, %v507
          %v588 = vmul.f32 %v508, %v508
          %v589 = vmul.f32 %v509, %v509
          %v590 = vmul.f32 %v510, %v510
          %v591 = vadd.f32 %v559, %v560
          %592 = vadd.xlane.f32.xlu0 %v591
          %v593 = vpop.xlane.xlu0 %592
          %v594 = vadd.f32 %v561, %v562
          %595 = vadd.xlane.f32.xlu0 %v594
          %v596 = vpop.xlane.xlu0 %595
          %v597 = vadd.f32 %v563, %v564
          %598 = vadd.xlane.f32.xlu0 %v597
          %v599 = vpop.xlane.xlu0 %598
          %v600 = vadd.f32 %v565, %v566
          %601 = vadd.xlane.f32.xlu0 %v600
          %v602 = vpop.xlane.xlu0 %601
          %v603 = vadd.f32 %v567, %v568
          %604 = vadd.xlane.f32.xlu0 %v603
          %v605 = vpop.xlane.xlu0 %604
          %v606 = vadd.f32 %v569, %v570
          %607 = vadd.xlane.f32.xlu0 %v606
          %v608 = vpop.xlane.xlu0 %607
          %v609 = vadd.f32 %v571, %v572
          %610 = vadd.xlane.f32.xlu0 %v609
          %v611 = vpop.xlane.xlu0 %610
          %v612 = vadd.f32 %v573, %v574
          %613 = vadd.xlane.f32.xlu0 %v612
          %v614 = vpop.xlane.xlu0 %613
          %v615 = vadd.f32 %v575, %v576
          %616 = vadd.xlane.f32.xlu0 %v615
          %v617 = vpop.xlane.xlu0 %616
          %v618 = vadd.f32 %v577, %v578
          %619 = vadd.xlane.f32.xlu0 %v618
          %v620 = vpop.xlane.xlu0 %619
          %v621 = vadd.f32 %v579, %v580
          %622 = vadd.xlane.f32.xlu0 %v621
          %v623 = vpop.xlane.xlu0 %622
          %v624 = vadd.f32 %v581, %v582
          %625 = vadd.xlane.f32.xlu0 %v624
          %v626 = vpop.xlane.xlu0 %625
          %v627 = vadd.f32 %v583, %v584
          %628 = vadd.xlane.f32.xlu0 %v627
          %v629 = vpop.xlane.xlu0 %628
          %v630 = vadd.f32 %v585, %v586
          %631 = vadd.xlane.f32.xlu0 %v630
          %v632 = vpop.xlane.xlu0 %631
          %v633 = vadd.f32 %v587, %v588
          %634 = vadd.xlane.f32.xlu0 %v633
          %v635 = vpop.xlane.xlu0 %634
          %v636 = vadd.f32 %v589, %v590
          %637 = vadd.xlane.f32.xlu0 %v636
          %v638 = vpop.xlane.xlu0 %637
          %v639 = vadd.f32 %v513, %v516
          %v640 = vadd.f32 %v639, %v519
          %v641 = vadd.f32 %v640, %v522
          %v642 = vadd.f32 %v641, %v525
          %v643 = vadd.f32 %v642, %v528
          %v644 = vadd.f32 %v643, %v531
          %v645 = vadd.f32 %v644, %v534
          %v646 = vadd.f32 %v645, %v537
          %v647 = vadd.f32 %v646, %v540
          %v648 = vadd.f32 %v647, %v543
          %v649 = vadd.f32 %v648, %v546
          %v650 = vadd.f32 %v649, %v549
          %v651 = vadd.f32 %v650, %v552
          %v652 = vadd.f32 %v651, %v555
          %v653 = vadd.f32 %v652, %v558
          %v654 = vrot.slane %v653, 4
          %v655 = vadd.f32 %v653, %v654
          %v656 = vrot.slane %v655, 2
          %v657 = vadd.f32 %v655, %v656
          %v658 = vrot.slane %v657, 1
          %v659 = vadd.f32 %v657, %v658
          %v660 = vmul.f32 %v659, 0.0009765625
          %v661 = vadd.f32 %v593, %v596
          %v662 = vadd.f32 %v661, %v599
          %v663 = vadd.f32 %v662, %v602
          %v664 = vadd.f32 %v663, %v605
          %v665 = vadd.f32 %v664, %v608
          %v666 = vadd.f32 %v665, %v611
          %v667 = vadd.f32 %v666, %v614
          %v668 = vadd.f32 %v667, %v617
          %v669 = vadd.f32 %v668, %v620
          %v670 = vadd.f32 %v669, %v623
          %v671 = vadd.f32 %v670, %v626
          %v672 = vadd.f32 %v671, %v629
          %v673 = vadd.f32 %v672, %v632
          %v674 = vadd.f32 %v673, %v635
          %v675 = vadd.f32 %v674, %v638
          %v676 = vrot.slane %v675, 4
          %v677 = vadd.f32 %v675, %v676
          %v678 = vrot.slane %v677, 2
          %v679 = vadd.f32 %v677, %v678
          %v680 = vrot.slane %v679, 1
          %v681 = vadd.f32 %v679, %v680
          %v682 = vmul.f32 %v681, 0.0009765625
          %v683 = vmul.f32 %v660, %v660
          %v684 = vsub.f32 %v682, %v683
          %v685 = vmax.f32 %v684, 0.0
          %v686 = vadd.f32 %v685, 1e-06
          %v687 = vrsqrt.pop %v686
          %v688 = vmul.f32 %v687, %v686
          %v689 = vmul.f32 %v688, %v687
          %v690 = vmul.f32 0.5, %v689
          %v691 = vsub.f32 1.5, %v690
          %v692 = vmul.f32 %v687, %v691
          %vm693 = vweird.f32 %v686
          %vm694 = vweird.f32 %v687
          %vm695 = vmor %vm693, %vm694
          %v696 = vsel %vm695, %v687, %v692
          %v697 = vld [vmem:[%s1] sm:$0xff]
          %v698 = vld [vmem:[%s1 + $0x8] sm:$0xff]
          %v699 = vld [vmem:[%s1 + $0x10] sm:$0xff]
          %v700 = vld [vmem:[%s1 + $0x18] sm:$0xff]
          %v701 = vld [vmem:[%s1 + $0x20] sm:$0xff]
          %v702 = vld [vmem:[%s1 + $0x28] sm:$0xff]
          %v703 = vld [vmem:[%s1 + $0x30] sm:$0xff]
          %v704 = vld [vmem:[%s1 + $0x38] sm:$0xff]
          %v705 = vld [vmem:[%s1 + $0x40] sm:$0xff]
          %v706 = vld [vmem:[%s1 + $0x48] sm:$0xff]
          %v707 = vld [vmem:[%s1 + $0x50] sm:$0xff]
          %v708 = vld [vmem:[%s1 + $0x58] sm:$0xff]
          %v709 = vld [vmem:[%s1 + $0x60] sm:$0xff]
          %v710 = vld [vmem:[%s1 + $0x68] sm:$0xff]
          %v711 = vld [vmem:[%s1 + $0x70] sm:$0xff]
          %v712 = vld [vmem:[%s1 + $0x78] sm:$0xff]
          %v713 = vmul.f32 %v697, %v696
          %v714 = vmul.f32 %v698, %v696
          %v715 = vmul.f32 %v699, %v696
          %v716 = vmul.f32 %v700, %v696
          %v717 = vmul.f32 %v701, %v696
          %v718 = vmul.f32 %v702, %v696
          %v719 = vmul.f32 %v703, %v696
          %v720 = vmul.f32 %v704, %v696
          %v721 = vmul.f32 %v705, %v696
          %v722 = vmul.f32 %v706, %v696
          %v723 = vmul.f32 %v707, %v696
          %v724 = vmul.f32 %v708, %v696
          %v725 = vmul.f32 %v709, %v696
          %v726 = vmul.f32 %v710, %v696
          %v727 = vmul.f32 %v711, %v696
          %v728 = vmul.f32 %v712, %v696
          %v729 = vld [vmem:[%s2] sm:$0xff]
          %v730 = vld [vmem:[%s2 + $0x8] sm:$0xff]
          %v731 = vld [vmem:[%s2 + $0x10] sm:$0xff]
          %v732 = vld [vmem:[%s2 + $0x18] sm:$0xff]
          %v733 = vld [vmem:[%s2 + $0x20] sm:$0xff]
          %v734 = vld [vmem:[%s2 + $0x28] sm:$0xff]
          %v735 = vld [vmem:[%s2 + $0x30] sm:$0xff]
          %v736 = vld [vmem:[%s2 + $0x38] sm:$0xff]
          %v737 = vld [vmem:[%s2 + $0x40] sm:$0xff]
          %v738 = vld [vmem:[%s2 + $0x48] sm:$0xff]
          %v739 = vld [vmem:[%s2 + $0x50] sm:$0xff]
          %v740 = vld [vmem:[%s2 + $0x58] sm:$0xff]
          %v741 = vld [vmem:[%s2 + $0x60] sm:$0xff]
          %v742 = vld [vmem:[%s2 + $0x68] sm:$0xff]
          %v743 = vld [vmem:[%s2 + $0x70] sm:$0xff]
          %v744 = vld [vmem:[%s2 + $0x78] sm:$0xff]
          %v745 = vmul.f32 %v660, %v713
          %v746 = vmul.f32 %v660, %v714
          %v747 = vmul.f32 %v660, %v715
          %v748 = vmul.f32 %v660, %v716
          %v749 = vmul.f32 %v660, %v717
          %v750 = vmul.f32 %v660, %v718
          %v751 = vmul.f32 %v660, %v719
          %v752 = vmul.f32 %v660, %v720
          %v753 = vmul.f32 %v660, %v721
          %v754 = vmul.f32 %v660, %v722
          %v755 = vmul.f32 %v660, %v723
          %v756 = vmul.f32 %v660, %v724
          %v757 = vmul.f32 %v660, %v725
          %v758 = vmul.f32 %v660, %v726
          %v759 = vmul.f32 %v660, %v727
          %v760 = vmul.f32 %v660, %v728
          %v761 = vsub.f32 %v729, %v745
          %v762 = vsub.f32 %v730, %v746
          %v763 = vsub.f32 %v731, %v747
          %v764 = vsub.f32 %v732, %v748
          %v765 = vsub.f32 %v733, %v749
          %v766 = vsub.f32 %v734, %v750
          %v767 = vsub.f32 %v735, %v751
          %v768 = vsub.f32 %v736, %v752
          %v769 = vsub.f32 %v737, %v753
          %v770 = vsub.f32 %v738, %v754
          %v771 = vsub.f32 %v739, %v755
          %v772 = vsub.f32 %v740, %v756
          %v773 = vsub.f32 %v741, %v757
          %v774 = vsub.f32 %v742, %v758
          %v775 = vsub.f32 %v743, %v759
          %v776 = vsub.f32 %v744, %v760
          %vm777 = vcmask 7168
          %778 = vst.msk [vmem:[#allocation4] sm:$0xff] %vm777, %v713
          %779 = vst.msk [vmem:[#allocation4 + $0x8] sm:$0xff] %vm777, %v714
          %780 = vst.msk [vmem:[#allocation4 + $0x10] sm:$0xff] %vm777, %v715
          %781 = vst.msk [vmem:[#allocation4 + $0x18] sm:$0xff] %vm777, %v716
          %782 = vst.msk [vmem:[#allocation4 + $0x20] sm:$0xff] %vm777, %v717
          %783 = vst.msk [vmem:[#allocation4 + $0x28] sm:$0xff] %vm777, %v718
          %784 = vst.msk [vmem:[#allocation4 + $0x30] sm:$0xff] %vm777, %v719
          %785 = vst.msk [vmem:[#allocation4 + $0x38] sm:$0xff] %vm777, %v720
          %786 = vst.msk [vmem:[#allocation4 + $0x40] sm:$0xff] %vm777, %v721
          %787 = vst.msk [vmem:[#allocation4 + $0x48] sm:$0xff] %vm777, %v722
          %788 = vst.msk [vmem:[#allocation4 + $0x50] sm:$0xff] %vm777, %v723
          %789 = vst.msk [vmem:[#allocation4 + $0x58] sm:$0xff] %vm777, %v724
          %790 = vst.msk [vmem:[#allocation4 + $0x60] sm:$0xff] %vm777, %v725
          %791 = vst.msk [vmem:[#allocation4 + $0x68] sm:$0xff] %vm777, %v726
          %792 = vst.msk [vmem:[#allocation4 + $0x70] sm:$0xff] %vm777, %v727
          %793 = vst.msk [vmem:[#allocation4 + $0x78] sm:$0xff] %vm777, %v728
          %794 = vst.msk [vmem:[#allocation5] sm:$0xff] %vm777, %v761
          %795 = vst.msk [vmem:[#allocation5 + $0x8] sm:$0xff] %vm777, %v762
          %796 = vst.msk [vmem:[#allocation5 + $0x10] sm:$0xff] %vm777, %v763
          %797 = vst.msk [vmem:[#allocation5 + $0x18] sm:$0xff] %vm777, %v764
          %798 = vst.msk [vmem:[#allocation5 + $0x20] sm:$0xff] %vm777, %v765
          %799 = vst.msk [vmem:[#allocation5 + $0x28] sm:$0xff] %vm777, %v766
          %800 = vst.msk [vmem:[#allocation5 + $0x30] sm:$0xff] %vm777, %v767
          %801 = vst.msk [vmem:[#allocation5 + $0x38] sm:$0xff] %vm777, %v768
          %802 = vst.msk [vmem:[#allocation5 + $0x40] sm:$0xff] %vm777, %v769
          %803 = vst.msk [vmem:[#allocation5 + $0x48] sm:$0xff] %vm777, %v770
          %804 = vst.msk [vmem:[#allocation5 + $0x50] sm:$0xff] %vm777, %v771
          %805 = vst.msk [vmem:[#allocation5 + $0x58] sm:$0xff] %vm777, %v772
          %806 = vst.msk [vmem:[#allocation5 + $0x60] sm:$0xff] %vm777, %v773
          %807 = vst.msk [vmem:[#allocation5 + $0x68] sm:$0xff] %vm777, %v774
          %808 = vst.msk [vmem:[#allocation5 + $0x70] sm:$0xff] %vm777, %v775
          %809 = vst.msk [vmem:[#allocation5 + $0x78] sm:$0xff] %vm777, %v776
          %811 = vset.pattern.permute.xlu0 0
          %812 = vperm.xlu0 %811, %v713
          %v813 = vpop.permute.xlu0 %812
          %816 = vset.pattern.permute.xlu0 0
          %817 = vperm.xlu0 %816, %v714
          %v818 = vpop.permute.xlu0 %817
          %821 = vset.pattern.permute.xlu0 0
          %822 = vperm.xlu0 %821, %v715
          %v823 = vpop.permute.xlu0 %822
          %826 = vset.pattern.permute.xlu0 0
          %827 = vperm.xlu0 %826, %v716
          %v828 = vpop.permute.xlu0 %827
          %831 = vset.pattern.permute.xlu0 0
          %832 = vperm.xlu0 %831, %v717
          %v833 = vpop.permute.xlu0 %832
          %836 = vset.pattern.permute.xlu0 0
          %837 = vperm.xlu0 %836, %v718
          %v838 = vpop.permute.xlu0 %837
          %841 = vset.pattern.permute.xlu0 0
          %842 = vperm.xlu0 %841, %v719
          %v843 = vpop.permute.xlu0 %842
          %846 = vset.pattern.permute.xlu0 0
          %847 = vperm.xlu0 %846, %v720
          %v848 = vpop.permute.xlu0 %847
          %851 = vset.pattern.permute.xlu0 0
          %852 = vperm.xlu0 %851, %v721
          %v853 = vpop.permute.xlu0 %852
          %856 = vset.pattern.permute.xlu0 0
          %857 = vperm.xlu0 %856, %v722
          %v858 = vpop.permute.xlu0 %857
          %861 = vset.pattern.permute.xlu0 0
          %862 = vperm.xlu0 %861, %v723
          %v863 = vpop.permute.xlu0 %862
          %866 = vset.pattern.permute.xlu0 0
          %867 = vperm.xlu0 %866, %v724
          %v868 = vpop.permute.xlu0 %867
          %871 = vset.pattern.permute.xlu0 0
          %872 = vperm.xlu0 %871, %v725
          %v873 = vpop.permute.xlu0 %872
          %876 = vset.pattern.permute.xlu0 0
          %877 = vperm.xlu0 %876, %v726
          %v878 = vpop.permute.xlu0 %877
          %881 = vset.pattern.permute.xlu0 0
          %882 = vperm.xlu0 %881, %v727
          %v883 = vpop.permute.xlu0 %882
          %886 = vset.pattern.permute.xlu0 0
          %887 = vperm.xlu0 %886, %v728
          %v888 = vpop.permute.xlu0 %887
          %v890 = vmul.f32 %v479, %v813
          %v891 = vmul.f32 %v480, %v813
          %v892 = vmul.f32 %v481, %v818
          %v893 = vmul.f32 %v482, %v818
          %v894 = vmul.f32 %v483, %v823
          %v895 = vmul.f32 %v484, %v823
          %v896 = vmul.f32 %v485, %v828
          %v897 = vmul.f32 %v486, %v828
          %v898 = vmul.f32 %v487, %v833
          %v899 = vmul.f32 %v488, %v833
          %v900 = vmul.f32 %v489, %v838
          %v901 = vmul.f32 %v490, %v838
          %v902 = vmul.f32 %v491, %v843
          %v903 = vmul.f32 %v492, %v843
          %v904 = vmul.f32 %v493, %v848
          %v905 = vmul.f32 %v494, %v848
          %v906 = vmul.f32 %v495, %v853
          %v907 = vmul.f32 %v496, %v853
          %v908 = vmul.f32 %v497, %v858
          %v909 = vmul.f32 %v498, %v858
          %v910 = vmul.f32 %v499, %v863
          %v911 = vmul.f32 %v500, %v863
          %v912 = vmul.f32 %v501, %v868
          %v913 = vmul.f32 %v502, %v868
          %v914 = vmul.f32 %v503, %v873
          %v915 = vmul.f32 %v504, %v873
          %v916 = vmul.f32 %v505, %v878
          %v917 = vmul.f32 %v506, %v878
          %v918 = vmul.f32 %v507, %v883
          %v919 = vmul.f32 %v508, %v883
          %v920 = vmul.f32 %v509, %v888
          %v921 = vmul.f32 %v510, %v888
          %923 = vset.pattern.permute.xlu0 0
          %924 = vperm.xlu0 %923, %v761
          %v925 = vpop.permute.xlu0 %924
          %928 = vset.pattern.permute.xlu0 0
          %929 = vperm.xlu0 %928, %v762
          %v930 = vpop.permute.xlu0 %929
          %933 = vset.pattern.permute.xlu0 0
          %934 = vperm.xlu0 %933, %v763
          %v935 = vpop.permute.xlu0 %934
          %938 = vset.pattern.permute.xlu0 0
          %939 = vperm.xlu0 %938, %v764
          %v940 = vpop.permute.xlu0 %939
          %943 = vset.pattern.permute.xlu0 0
          %944 = vperm.xlu0 %943, %v765
          %v945 = vpop.permute.xlu0 %944
          %948 = vset.pattern.permute.xlu0 0
          %949 = vperm.xlu0 %948, %v766
          %v950 = vpop.permute.xlu0 %949
          %953 = vset.pattern.permute.xlu0 0
          %954 = vperm.xlu0 %953, %v767
          %v955 = vpop.permute.xlu0 %954
          %958 = vset.pattern.permute.xlu0 0
          %959 = vperm.xlu0 %958, %v768
          %v960 = vpop.permute.xlu0 %959
          %963 = vset.pattern.permute.xlu0 0
          %964 = vperm.xlu0 %963, %v769
          %v965 = vpop.permute.xlu0 %964
          %968 = vset.pattern.permute.xlu0 0
          %969 = vperm.xlu0 %968, %v770
          %v970 = vpop.permute.xlu0 %969
          %973 = vset.pattern.permute.xlu0 0
          %974 = vperm.xlu0 %973, %v771
          %v975 = vpop.permute.xlu0 %974
          %978 = vset.pattern.permute.xlu0 0
          %979 = vperm.xlu0 %978, %v772
          %v980 = vpop.permute.xlu0 %979
          %983 = vset.pattern.permute.xlu0 0
          %984 = vperm.xlu0 %983, %v773
          %v985 = vpop.permute.xlu0 %984
          %988 = vset.pattern.permute.xlu0 0
          %989 = vperm.xlu0 %988, %v774
          %v990 = vpop.permute.xlu0 %989
          %993 = vset.pattern.permute.xlu0 0
          %994 = vperm.xlu0 %993, %v775
          %v995 = vpop.permute.xlu0 %994
          %998 = vset.pattern.permute.xlu0 0
          %999 = vperm.xlu0 %998, %v776
          %v1000 = vpop.permute.xlu0 %999
          %v1002 = vadd.f32 %v890, %v925
          %v1003 = vadd.f32 %v891, %v925
          %v1004 = vadd.f32 %v892, %v930
          %v1005 = vadd.f32 %v893, %v930
          %v1006 = vadd.f32 %v894, %v935
          %v1007 = vadd.f32 %v895, %v935
          %v1008 = vadd.f32 %v896, %v940
          %v1009 = vadd.f32 %v897, %v940
          %v1010 = vadd.f32 %v898, %v945
          %v1011 = vadd.f32 %v899, %v945
          %v1012 = vadd.f32 %v900, %v950
          %v1013 = vadd.f32 %v901, %v950
          %v1014 = vadd.f32 %v902, %v955
          %v1015 = vadd.f32 %v903, %v955
          %v1016 = vadd.f32 %v904, %v960
          %v1017 = vadd.f32 %v905, %v960
          %v1018 = vadd.f32 %v906, %v965
          %v1019 = vadd.f32 %v907, %v965
          %v1020 = vadd.f32 %v908, %v970
          %v1021 = vadd.f32 %v909, %v970
          %v1022 = vadd.f32 %v910, %v975
          %v1023 = vadd.f32 %v911, %v975
          %v1024 = vadd.f32 %v912, %v980
          %v1025 = vadd.f32 %v913, %v980
          %v1026 = vadd.f32 %v914, %v985
          %v1027 = vadd.f32 %v915, %v985
          %v1028 = vadd.f32 %v916, %v990
          %v1029 = vadd.f32 %v917, %v990
          %v1030 = vadd.f32 %v918, %v995
          %v1031 = vadd.f32 %v919, %v995
          %v1032 = vadd.f32 %v920, %v1000
          %v1033 = vadd.f32 %v921, %v1000
          %v1034 = vpack.c.bf16 %v1004, %v1002
          %v1035 = vpack.c.bf16 %v1005, %v1003
          %v1036 = vpack.c.bf16 %v1008, %v1006
          %v1037 = vpack.c.bf16 %v1009, %v1007
          %v1038 = vpack.c.bf16 %v1012, %v1010
          %v1039 = vpack.c.bf16 %v1013, %v1011
          %v1040 = vpack.c.bf16 %v1016, %v1014
          %v1041 = vpack.c.bf16 %v1017, %v1015
          %v1042 = vpack.c.bf16 %v1020, %v1018
          %v1043 = vpack.c.bf16 %v1021, %v1019
          %v1044 = vpack.c.bf16 %v1024, %v1022
          %v1045 = vpack.c.bf16 %v1025, %v1023
          %v1046 = vpack.c.bf16 %v1028, %v1026
          %v1047 = vpack.c.bf16 %v1029, %v1027
          %v1048 = vpack.c.bf16 %v1032, %v1030
          %v1049 = vpack.c.bf16 %v1033, %v1031
          %v1050 = vld [vmem:[%s7] sm:$0xf]
          %v1051 = vld [vmem:[%s7 + $0x4] sm:$0xf]
          %v1052 = vld [vmem:[%s7 + $0x8] sm:$0xf]
          %v1053 = vld [vmem:[%s7 + $0xc] sm:$0xf]
          %v1054 = vld [vmem:[%s7 + $0x10] sm:$0xf]
          %v1055 = vld [vmem:[%s7 + $0x14] sm:$0xf]
          %v1056 = vld [vmem:[%s7 + $0x18] sm:$0xf]
          %v1057 = vld [vmem:[%s7 + $0x1c] sm:$0xf]
          %v1058 = vld [vmem:[%s7 + $0x20] sm:$0xf]
          %v1059 = vld [vmem:[%s7 + $0x24] sm:$0xf]
          %v1060 = vld [vmem:[%s7 + $0x28] sm:$0xf]
          %v1061 = vld [vmem:[%s7 + $0x2c] sm:$0xf]
          %v1062 = vld [vmem:[%s7 + $0x30] sm:$0xf]
          %v1063 = vld [vmem:[%s7 + $0x34] sm:$0xf]
          %v1064 = vld [vmem:[%s7 + $0x38] sm:$0xf]
          %v1065 = vld [vmem:[%s7 + $0x3c] sm:$0xf]
          %v1066 = vld [vmem:[%s8] sm:$0xff]
          %v1067 = vld [vmem:[%s8 + $0x8] sm:$0xff]
          %v1068 = vld [vmem:[%s8 + $0x10] sm:$0xff]
          %v1069 = vld [vmem:[%s8 + $0x18] sm:$0xff]
          %v1070 = vld [vmem:[%s8 + $0x20] sm:$0xff]
          %v1071 = vld [vmem:[%s8 + $0x28] sm:$0xff]
          %v1072 = vld [vmem:[%s8 + $0x30] sm:$0xff]
          %v1073 = vld [vmem:[%s8 + $0x38] sm:$0xff]
          %v1074 = vld [vmem:[%s8 + $0x40] sm:$0xff]
          %v1075 = vld [vmem:[%s8 + $0x48] sm:$0xff]
          %v1076 = vld [vmem:[%s8 + $0x50] sm:$0xff]
          %v1077 = vld [vmem:[%s8 + $0x58] sm:$0xff]
          %v1078 = vld [vmem:[%s8 + $0x60] sm:$0xff]
          %v1079 = vld [vmem:[%s8 + $0x68] sm:$0xff]
          %v1080 = vld [vmem:[%s8 + $0x70] sm:$0xff]
          %v1081 = vld [vmem:[%s8 + $0x78] sm:$0xff]
          %1083 = vset.pattern.permute.xlu0 0
          %1084 = vperm.xlu0 %1083, %v1066
          %v1085 = vpop.permute.xlu0 %1084
          %1088 = vset.pattern.permute.xlu0 0
          %1089 = vperm.xlu0 %1088, %v1067
          %v1090 = vpop.permute.xlu0 %1089
          %1093 = vset.pattern.permute.xlu0 0
          %1094 = vperm.xlu0 %1093, %v1068
          %v1095 = vpop.permute.xlu0 %1094
          %1098 = vset.pattern.permute.xlu0 0
          %1099 = vperm.xlu0 %1098, %v1069
          %v1100 = vpop.permute.xlu0 %1099
          %1103 = vset.pattern.permute.xlu0 0
          %1104 = vperm.xlu0 %1103, %v1070
          %v1105 = vpop.permute.xlu0 %1104
          %1108 = vset.pattern.permute.xlu0 0
          %1109 = vperm.xlu0 %1108, %v1071
          %v1110 = vpop.permute.xlu0 %1109
          %1113 = vset.pattern.permute.xlu0 0
          %1114 = vperm.xlu0 %1113, %v1072
          %v1115 = vpop.permute.xlu0 %1114
          %1118 = vset.pattern.permute.xlu0 0
          %1119 = vperm.xlu0 %1118, %v1073
          %v1120 = vpop.permute.xlu0 %1119
          %1123 = vset.pattern.permute.xlu0 0
          %1124 = vperm.xlu0 %1123, %v1074
          %v1125 = vpop.permute.xlu0 %1124
          %1128 = vset.pattern.permute.xlu0 0
          %1129 = vperm.xlu0 %1128, %v1075
          %v1130 = vpop.permute.xlu0 %1129
          %1133 = vset.pattern.permute.xlu0 0
          %1134 = vperm.xlu0 %1133, %v1076
          %v1135 = vpop.permute.xlu0 %1134
          %1138 = vset.pattern.permute.xlu0 0
          %1139 = vperm.xlu0 %1138, %v1077
          %v1140 = vpop.permute.xlu0 %1139
          %1143 = vset.pattern.permute.xlu0 0
          %1144 = vperm.xlu0 %1143, %v1078
          %v1145 = vpop.permute.xlu0 %1144
          %1148 = vset.pattern.permute.xlu0 0
          %1149 = vperm.xlu0 %1148, %v1079
          %v1150 = vpop.permute.xlu0 %1149
          %1153 = vset.pattern.permute.xlu0 0
          %1154 = vperm.xlu0 %1153, %v1080
          %v1155 = vpop.permute.xlu0 %1154
          %1158 = vset.pattern.permute.xlu0 0
          %1159 = vperm.xlu0 %1158, %v1081
          %v1160 = vpop.permute.xlu0 %1159
          %v1178 = vunpack.c.l.b16 %v1050
          %v1179 = vunpack.c.l.b16 %v1051
          %v1180 = vunpack.c.l.b16 %v1052
          %v1181 = vunpack.c.l.b16 %v1053
          %v1182 = vunpack.c.l.b16 %v1054
          %v1183 = vunpack.c.l.b16 %v1055
          %v1184 = vunpack.c.l.b16 %v1056
          %v1185 = vunpack.c.l.b16 %v1057
          %v1186 = vunpack.c.l.b16 %v1058
          %v1187 = vunpack.c.l.b16 %v1059
          %v1188 = vunpack.c.l.b16 %v1060
          %v1189 = vunpack.c.l.b16 %v1061
          %v1190 = vunpack.c.l.b16 %v1062
          %v1191 = vunpack.c.l.b16 %v1063
          %v1192 = vunpack.c.l.b16 %v1064
          %v1193 = vunpack.c.l.b16 %v1065
          %v1194 = vpack.c.b16 %v1179, %v1178
          %v1195 = vpack.c.b16 %v1181, %v1180
          %v1196 = vpack.c.b16 %v1183, %v1182
          %v1197 = vpack.c.b16 %v1185, %v1184
          %v1198 = vpack.c.b16 %v1187, %v1186
          %v1199 = vpack.c.b16 %v1189, %v1188
          %v1200 = vpack.c.b16 %v1191, %v1190
          %v1201 = vpack.c.b16 %v1193, %v1192
          %1210 = vmatpush.bf16.msra.mxu0 %v1048
          %1211 = vmatpush.bf16.msra.mxu0 %v1046
          %1212 = vmatpush.bf16.msra.mxu0 %v1044
          %1213 = vmatpush.bf16.msra.mxu0 %v1042
          %1214 = vmatpush.bf16.msra.mxu0 %v1040
          %1215 = vmatpush.bf16.msra.mxu0 %v1038
          %1216 = vmatpush.bf16.msra.mxu0 %v1036
          %1217 = vmatpush.bf16.msra.mxu0 %v1034
          %1218 = vmatmul.bf16.gmra.mxu0 %v1194
          %v1219 = vpop.f32.mrf.mxu0
          %v1220 = vadd.f32 %v1085, %v1219
          %v1221 = vpop.f32.mrf.mxu0
          %v1222 = vadd.f32 %v1090, %v1221
          %1223 = vmatmul.bf16.gmra.mxu0 %v1195
          %v1224 = vpop.f32.mrf.mxu0
          %v1225 = vadd.f32 %v1095, %v1224
          %v1226 = vpop.f32.mrf.mxu0
          %v1227 = vadd.f32 %v1100, %v1226
          %1228 = vmatmul.bf16.gmra.mxu0 %v1196
          %v1229 = vpop.f32.mrf.mxu0
          %v1230 = vadd.f32 %v1105, %v1229
          %v1231 = vpop.f32.mrf.mxu0
          %v1232 = vadd.f32 %v1110, %v1231
          %1233 = vmatmul.bf16.gmra.mxu0 %v1197
          %v1234 = vpop.f32.mrf.mxu0
          %v1235 = vadd.f32 %v1115, %v1234
          %v1236 = vpop.f32.mrf.mxu0
          %v1237 = vadd.f32 %v1120, %v1236
          %1238 = vmatmul.bf16.gmra.mxu0 %v1198
          %v1239 = vpop.f32.mrf.mxu0
          %v1240 = vadd.f32 %v1125, %v1239
          %v1241 = vpop.f32.mrf.mxu0
          %v1242 = vadd.f32 %v1130, %v1241
          %1243 = vmatmul.bf16.gmra.mxu0 %v1199
          %v1244 = vpop.f32.mrf.mxu0
          %v1245 = vadd.f32 %v1135, %v1244
          %v1246 = vpop.f32.mrf.mxu0
          %v1247 = vadd.f32 %v1140, %v1246
          %1248 = vmatmul.bf16.gmra.mxu0 %v1200
          %v1249 = vpop.f32.mrf.mxu0
          %v1250 = vadd.f32 %v1145, %v1249
          %v1251 = vpop.f32.mrf.mxu0
          %v1252 = vadd.f32 %v1150, %v1251
          %1253 = vmatmul.bf16.gmra.mxu0 %v1201
          %v1254 = vpop.f32.mrf.mxu0
          %v1255 = vadd.f32 %v1155, %v1254
          %v1256 = vpop.f32.mrf.mxu0
          %v1257 = vadd.f32 %v1160, %v1256
          %1258 = vdwg.mxu0
          %1259 = vmatpush.bf16.msra.mxu0 %v1049
          %1260 = vmatpush.bf16.msra.mxu0 %v1047
          %1261 = vmatpush.bf16.msra.mxu0 %v1045
          %1262 = vmatpush.bf16.msra.mxu0 %v1043
          %1263 = vmatpush.bf16.msra.mxu0 %v1041
          %1264 = vmatpush.bf16.msra.mxu0 %v1039
          %1265 = vmatpush.bf16.msra.mxu0 %v1037
          %1266 = vmatpush.bf16.msra.mxu0 %v1035
          %1267 = vmatmul.bf16.gmra.mxu0 %v1194
          %v1268 = vpop.f32.mrf.mxu0
          %v1269 = vadd.f32 %v1085, %v1268
          %v1270 = vpop.f32.mrf.mxu0
          %v1271 = vadd.f32 %v1090, %v1270
          %1272 = vmatmul.bf16.gmra.mxu0 %v1195
          %v1273 = vpop.f32.mrf.mxu0
          %v1274 = vadd.f32 %v1095, %v1273
          %v1275 = vpop.f32.mrf.mxu0
          %v1276 = vadd.f32 %v1100, %v1275
          %1277 = vmatmul.bf16.gmra.mxu0 %v1196
          %v1278 = vpop.f32.mrf.mxu0
          %v1279 = vadd.f32 %v1105, %v1278
          %v1280 = vpop.f32.mrf.mxu0
          %v1281 = vadd.f32 %v1110, %v1280
          %1282 = vmatmul.bf16.gmra.mxu0 %v1197
          %v1283 = vpop.f32.mrf.mxu0
          %v1284 = vadd.f32 %v1115, %v1283
          %v1285 = vpop.f32.mrf.mxu0
          %v1286 = vadd.f32 %v1120, %v1285
          %1287 = vmatmul.bf16.gmra.mxu0 %v1198
          %v1288 = vpop.f32.mrf.mxu0
          %v1289 = vadd.f32 %v1125, %v1288
          %v1290 = vpop.f32.mrf.mxu0
          %v1291 = vadd.f32 %v1130, %v1290
          %1292 = vmatmul.bf16.gmra.mxu0 %v1199
          %v1293 = vpop.f32.mrf.mxu0
          %v1294 = vadd.f32 %v1135, %v1293
          %v1295 = vpop.f32.mrf.mxu0
          %v1296 = vadd.f32 %v1140, %v1295
          %1297 = vmatmul.bf16.gmra.mxu0 %v1200
          %v1298 = vpop.f32.mrf.mxu0
          %v1299 = vadd.f32 %v1145, %v1298
          %v1300 = vpop.f32.mrf.mxu0
          %v1301 = vadd.f32 %v1150, %v1300
          %1302 = vmatmul.bf16.gmra.mxu0 %v1201
          %v1303 = vpop.f32.mrf.mxu0
          %v1304 = vadd.f32 %v1155, %v1303
          %v1305 = vpop.f32.mrf.mxu0
          %v1306 = vadd.f32 %v1160, %v1305
          %1307 = vdwg.mxu0
          %1308 = vxpose.xlu0.b32.start [1/16] %v1220, 128
          %1309 = vxpose.xlu0.b32.cont [2/16] %v1222, 128
          %1310 = vxpose.xlu0.b32.cont [3/16] %v1225, 128
          %1311 = vxpose.xlu0.b32.cont [4/16] %v1227, 128
          %1312 = vxpose.xlu0.b32.cont [5/16] %v1230, 128
          %1313 = vxpose.xlu0.b32.cont [6/16] %v1232, 128
          %1314 = vxpose.xlu0.b32.cont [7/16] %v1235, 128
          %1315 = vxpose.xlu0.b32.cont [8/16] %v1237, 128
          %1316 = vxpose.xlu0.b32.cont [9/16] %v1240, 128
          %1317 = vxpose.xlu0.b32.cont [10/16] %v1242, 128
          %1318 = vxpose.xlu0.b32.cont [11/16] %v1245, 128
          %1319 = vxpose.xlu0.b32.cont [12/16] %v1247, 128
          %1320 = vxpose.xlu0.b32.cont [13/16] %v1250, 128
          %1321 = vxpose.xlu0.b32.cont [14/16] %v1252, 128
          %1322 = vxpose.xlu0.b32.cont [15/16] %v1255, 128
          %1323 = vxpose.xlu0.b32.end [16/16] %v1257, 128
          %v1324 = vpop.trf.xlu0
          %v1325 = vpop.trf.xlu0
          %v1326 = vpop.trf.xlu0
          %v1327 = vpop.trf.xlu0
          %v1328 = vpop.trf.xlu0
          %v1329 = vpop.trf.xlu0
          %v1330 = vpop.trf.xlu0
          %v1331 = vpop.trf.xlu0
          %v1332 = vpop.trf.xlu0
          %v1333 = vpop.trf.xlu0
          %v1334 = vpop.trf.xlu0
          %v1335 = vpop.trf.xlu0
          %v1336 = vpop.trf.xlu0
          %v1337 = vpop.trf.xlu0
          %v1338 = vpop.trf.xlu0
          %v1339 = vpop.trf.xlu0
          %1340 = vxpose.xlu0.b32.start [1/16] %v1269, 128
          %1341 = vxpose.xlu0.b32.cont [2/16] %v1271, 128
          %1342 = vxpose.xlu0.b32.cont [3/16] %v1274, 128
          %1343 = vxpose.xlu0.b32.cont [4/16] %v1276, 128
          %1344 = vxpose.xlu0.b32.cont [5/16] %v1279, 128
          %1345 = vxpose.xlu0.b32.cont [6/16] %v1281, 128
          %1346 = vxpose.xlu0.b32.cont [7/16] %v1284, 128
          %1347 = vxpose.xlu0.b32.cont [8/16] %v1286, 128
          %1348 = vxpose.xlu0.b32.cont [9/16] %v1289, 128
          %1349 = vxpose.xlu0.b32.cont [10/16] %v1291, 128
          %1350 = vxpose.xlu0.b32.cont [11/16] %v1294, 128
          %1351 = vxpose.xlu0.b32.cont [12/16] %v1296, 128
          %1352 = vxpose.xlu0.b32.cont [13/16] %v1299, 128
          %1353 = vxpose.xlu0.b32.cont [14/16] %v1301, 128
          %1354 = vxpose.xlu0.b32.cont [15/16] %v1304, 128
          %1355 = vxpose.xlu0.b32.end [16/16] %v1306, 128
          %v1356 = vpop.trf.xlu0
          %v1357 = vpop.trf.xlu0
          %v1358 = vpop.trf.xlu0
          %v1359 = vpop.trf.xlu0
          %v1360 = vpop.trf.xlu0
          %v1361 = vpop.trf.xlu0
          %v1362 = vpop.trf.xlu0
          %v1363 = vpop.trf.xlu0
          %v1364 = vpop.trf.xlu0
          %v1365 = vpop.trf.xlu0
          %v1366 = vpop.trf.xlu0
          %v1367 = vpop.trf.xlu0
          %v1368 = vpop.trf.xlu0
          %v1369 = vpop.trf.xlu0
          %v1370 = vpop.trf.xlu0
          %v1371 = vpop.trf.xlu0
          %v1372 = vpack.c.bf16 %v1324, %v1324
          %v1373 = vpack.c.bf16 %v1325, %v1325
          %v1374 = vpack.c.bf16 %v1326, %v1326
          %v1375 = vpack.c.bf16 %v1327, %v1327
          %v1376 = vpack.c.bf16 %v1328, %v1328
          %v1377 = vpack.c.bf16 %v1329, %v1329
          %v1378 = vpack.c.bf16 %v1330, %v1330
          %v1379 = vpack.c.bf16 %v1331, %v1331
          %v1380 = vpack.c.bf16 %v1332, %v1332
          %v1381 = vpack.c.bf16 %v1333, %v1333
          %v1382 = vpack.c.bf16 %v1334, %v1334
          %v1383 = vpack.c.bf16 %v1335, %v1335
          %v1384 = vpack.c.bf16 %v1336, %v1336
          %v1385 = vpack.c.bf16 %v1337, %v1337
          %v1386 = vpack.c.bf16 %v1338, %v1338
          %v1387 = vpack.c.bf16 %v1339, %v1339
          %v1388 = vpack.c.bf16 %v1356, %v1356
          %v1389 = vpack.c.bf16 %v1357, %v1357
          %v1390 = vpack.c.bf16 %v1358, %v1358
          %v1391 = vpack.c.bf16 %v1359, %v1359
          %v1392 = vpack.c.bf16 %v1360, %v1360
          %v1393 = vpack.c.bf16 %v1361, %v1361
          %v1394 = vpack.c.bf16 %v1362, %v1362
          %v1395 = vpack.c.bf16 %v1363, %v1363
          %v1396 = vpack.c.bf16 %v1364, %v1364
          %v1397 = vpack.c.bf16 %v1365, %v1365
          %v1398 = vpack.c.bf16 %v1366, %v1366
          %v1399 = vpack.c.bf16 %v1367, %v1367
          %v1400 = vpack.c.bf16 %v1368, %v1368
          %v1401 = vpack.c.bf16 %v1369, %v1369
          %v1402 = vpack.c.bf16 %v1370, %v1370
          %v1403 = vpack.c.bf16 %v1371, %v1371
          %1404 = vst [vmem:[#allocation2] sm:$0xf] %v1372
          %1405 = vst [vmem:[#allocation2 + $0x4] sm:$0xf] %v1373
          %1406 = vst [vmem:[#allocation2 + $0x8] sm:$0xf] %v1374
          %1407 = vst [vmem:[#allocation2 + $0xc] sm:$0xf] %v1375
          %1408 = vst [vmem:[#allocation2 + $0x10] sm:$0xf] %v1376
          %1409 = vst [vmem:[#allocation2 + $0x14] sm:$0xf] %v1377
          %1410 = vst [vmem:[#allocation2 + $0x18] sm:$0xf] %v1378
          %1411 = vst [vmem:[#allocation2 + $0x1c] sm:$0xf] %v1379
          %1412 = vst [vmem:[#allocation2 + $0x20] sm:$0xf] %v1380
          %1413 = vst [vmem:[#allocation2 + $0x24] sm:$0xf] %v1381
          %1414 = vst [vmem:[#allocation2 + $0x28] sm:$0xf] %v1382
          %1415 = vst [vmem:[#allocation2 + $0x2c] sm:$0xf] %v1383
          %1416 = vst [vmem:[#allocation2 + $0x30] sm:$0xf] %v1384
          %1417 = vst [vmem:[#allocation2 + $0x34] sm:$0xf] %v1385
          %1418 = vst [vmem:[#allocation2 + $0x38] sm:$0xf] %v1386
          %1419 = vst [vmem:[#allocation2 + $0x3c] sm:$0xf] %v1387
          %1420 = vst [vmem:[#allocation2 + $0x40] sm:$0xf] %v1388
          %1421 = vst [vmem:[#allocation2 + $0x44] sm:$0xf] %v1389
          %1422 = vst [vmem:[#allocation2 + $0x48] sm:$0xf] %v1390
          %1423 = vst [vmem:[#allocation2 + $0x4c] sm:$0xf] %v1391
          %1424 = vst [vmem:[#allocation2 + $0x50] sm:$0xf] %v1392
          %1425 = vst [vmem:[#allocation2 + $0x54] sm:$0xf] %v1393
          %1426 = vst [vmem:[#allocation2 + $0x58] sm:$0xf] %v1394
          %1427 = vst [vmem:[#allocation2 + $0x5c] sm:$0xf] %v1395
          %1428 = vst [vmem:[#allocation2 + $0x60] sm:$0xf] %v1396
          %1429 = vst [vmem:[#allocation2 + $0x64] sm:$0xf] %v1397
          %1430 = vst [vmem:[#allocation2 + $0x68] sm:$0xf] %v1398
          %1431 = vst [vmem:[#allocation2 + $0x6c] sm:$0xf] %v1399
          %1432 = vst [vmem:[#allocation2 + $0x70] sm:$0xf] %v1400
          %1433 = vst [vmem:[#allocation2 + $0x74] sm:$0xf] %v1401
          %1434 = vst [vmem:[#allocation2 + $0x78] sm:$0xf] %v1402
          %1435 = vst [vmem:[#allocation2 + $0x7c] sm:$0xf] %v1403
          %v1436 = vld [vmem:[%s9] sm:$0xf]
          %v1437 = vld [vmem:[%s9 + $0x4] sm:$0xf]
          %v1438 = vld [vmem:[%s9 + $0x8] sm:$0xf]
          %v1439 = vld [vmem:[%s9 + $0xc] sm:$0xf]
          %v1440 = vld [vmem:[%s9 + $0x10] sm:$0xf]
          %v1441 = vld [vmem:[%s9 + $0x14] sm:$0xf]
          %v1442 = vld [vmem:[%s9 + $0x18] sm:$0xf]
          %v1443 = vld [vmem:[%s9 + $0x1c] sm:$0xf]
          %v1444 = vld [vmem:[%s9 + $0x20] sm:$0xf]
          %v1445 = vld [vmem:[%s9 + $0x24] sm:$0xf]
          %v1446 = vld [vmem:[%s9 + $0x28] sm:$0xf]
          %v1447 = vld [vmem:[%s9 + $0x2c] sm:$0xf]
          %v1448 = vld [vmem:[%s9 + $0x30] sm:$0xf]
          %v1449 = vld [vmem:[%s9 + $0x34] sm:$0xf]
          %v1450 = vld [vmem:[%s9 + $0x38] sm:$0xf]
          %v1451 = vld [vmem:[%s9 + $0x3c] sm:$0xf]
          %v1452 = vld [vmem:[%s10] sm:$0xff]
          %v1453 = vld [vmem:[%s10 + $0x8] sm:$0xff]
          %v1454 = vld [vmem:[%s10 + $0x10] sm:$0xff]
          %v1455 = vld [vmem:[%s10 + $0x18] sm:$0xff]
          %v1456 = vld [vmem:[%s10 + $0x20] sm:$0xff]
          %v1457 = vld [vmem:[%s10 + $0x28] sm:$0xff]
          %v1458 = vld [vmem:[%s10 + $0x30] sm:$0xff]
          %v1459 = vld [vmem:[%s10 + $0x38] sm:$0xff]
          %v1460 = vld [vmem:[%s10 + $0x40] sm:$0xff]
          %v1461 = vld [vmem:[%s10 + $0x48] sm:$0xff]
          %v1462 = vld [vmem:[%s10 + $0x50] sm:$0xff]
          %v1463 = vld [vmem:[%s10 + $0x58] sm:$0xff]
          %v1464 = vld [vmem:[%s10 + $0x60] sm:$0xff]
          %v1465 = vld [vmem:[%s10 + $0x68] sm:$0xff]
          %v1466 = vld [vmem:[%s10 + $0x70] sm:$0xff]
          %v1467 = vld [vmem:[%s10 + $0x78] sm:$0xff]
          %1469 = vset.pattern.permute.xlu0 0
          %1470 = vperm.xlu0 %1469, %v1452
          %v1471 = vpop.permute.xlu0 %1470
          %1474 = vset.pattern.permute.xlu0 0
          %1475 = vperm.xlu0 %1474, %v1453
          %v1476 = vpop.permute.xlu0 %1475
          %1479 = vset.pattern.permute.xlu0 0
          %1480 = vperm.xlu0 %1479, %v1454
          %v1481 = vpop.permute.xlu0 %1480
          %1484 = vset.pattern.permute.xlu0 0
          %1485 = vperm.xlu0 %1484, %v1455
          %v1486 = vpop.permute.xlu0 %1485
          %1489 = vset.pattern.permute.xlu0 0
          %1490 = vperm.xlu0 %1489, %v1456
          %v1491 = vpop.permute.xlu0 %1490
          %1494 = vset.pattern.permute.xlu0 0
          %1495 = vperm.xlu0 %1494, %v1457
          %v1496 = vpop.permute.xlu0 %1495
          %1499 = vset.pattern.permute.xlu0 0
          %1500 = vperm.xlu0 %1499, %v1458
          %v1501 = vpop.permute.xlu0 %1500
          %1504 = vset.pattern.permute.xlu0 0
          %1505 = vperm.xlu0 %1504, %v1459
          %v1506 = vpop.permute.xlu0 %1505
          %1509 = vset.pattern.permute.xlu0 0
          %1510 = vperm.xlu0 %1509, %v1460
          %v1511 = vpop.permute.xlu0 %1510
          %1514 = vset.pattern.permute.xlu0 0
          %1515 = vperm.xlu0 %1514, %v1461
          %v1516 = vpop.permute.xlu0 %1515
          %1519 = vset.pattern.permute.xlu0 0
          %1520 = vperm.xlu0 %1519, %v1462
          %v1521 = vpop.permute.xlu0 %1520
          %1524 = vset.pattern.permute.xlu0 0
          %1525 = vperm.xlu0 %1524, %v1463
          %v1526 = vpop.permute.xlu0 %1525
          %1529 = vset.pattern.permute.xlu0 0
          %1530 = vperm.xlu0 %1529, %v1464
          %v1531 = vpop.permute.xlu0 %1530
          %1534 = vset.pattern.permute.xlu0 0
          %1535 = vperm.xlu0 %1534, %v1465
          %v1536 = vpop.permute.xlu0 %1535
          %1539 = vset.pattern.permute.xlu0 0
          %1540 = vperm.xlu0 %1539, %v1466
          %v1541 = vpop.permute.xlu0 %1540
          %1544 = vset.pattern.permute.xlu0 0
          %1545 = vperm.xlu0 %1544, %v1467
          %v1546 = vpop.permute.xlu0 %1545
          %v1564 = vunpack.c.l.b16 %v1436
          %v1565 = vunpack.c.l.b16 %v1437
          %v1566 = vunpack.c.l.b16 %v1438
          %v1567 = vunpack.c.l.b16 %v1439
          %v1568 = vunpack.c.l.b16 %v1440
          %v1569 = vunpack.c.l.b16 %v1441
          %v1570 = vunpack.c.l.b16 %v1442
          %v1571 = vunpack.c.l.b16 %v1443
          %v1572 = vunpack.c.l.b16 %v1444
          %v1573 = vunpack.c.l.b16 %v1445
          %v1574 = vunpack.c.l.b16 %v1446
          %v1575 = vunpack.c.l.b16 %v1447
          %v1576 = vunpack.c.l.b16 %v1448
          %v1577 = vunpack.c.l.b16 %v1449
          %v1578 = vunpack.c.l.b16 %v1450
          %v1579 = vunpack.c.l.b16 %v1451
          %v1580 = vpack.c.b16 %v1565, %v1564
          %v1581 = vpack.c.b16 %v1567, %v1566
          %v1582 = vpack.c.b16 %v1569, %v1568
          %v1583 = vpack.c.b16 %v1571, %v1570
          %v1584 = vpack.c.b16 %v1573, %v1572
          %v1585 = vpack.c.b16 %v1575, %v1574
          %v1586 = vpack.c.b16 %v1577, %v1576
          %v1587 = vpack.c.b16 %v1579, %v1578
          %1596 = vmatpush.bf16.msra.mxu0 %v1048
          %1597 = vmatpush.bf16.msra.mxu0 %v1046
          %1598 = vmatpush.bf16.msra.mxu0 %v1044
          %1599 = vmatpush.bf16.msra.mxu0 %v1042
          %1600 = vmatpush.bf16.msra.mxu0 %v1040
          %1601 = vmatpush.bf16.msra.mxu0 %v1038
          %1602 = vmatpush.bf16.msra.mxu0 %v1036
          %1603 = vmatpush.bf16.msra.mxu0 %v1034
          %1604 = vmatmul.bf16.gmra.mxu0 %v1580
          %v1605 = vpop.f32.mrf.mxu0
          %v1606 = vadd.f32 %v1471, %v1605
          %v1607 = vpop.f32.mrf.mxu0
          %v1608 = vadd.f32 %v1476, %v1607
          %1609 = vmatmul.bf16.gmra.mxu0 %v1581
          %v1610 = vpop.f32.mrf.mxu0
          %v1611 = vadd.f32 %v1481, %v1610
          %v1612 = vpop.f32.mrf.mxu0
          %v1613 = vadd.f32 %v1486, %v1612
          %1614 = vmatmul.bf16.gmra.mxu0 %v1582
          %v1615 = vpop.f32.mrf.mxu0
          %v1616 = vadd.f32 %v1491, %v1615
          %v1617 = vpop.f32.mrf.mxu0
          %v1618 = vadd.f32 %v1496, %v1617
          %1619 = vmatmul.bf16.gmra.mxu0 %v1583
          %v1620 = vpop.f32.mrf.mxu0
          %v1621 = vadd.f32 %v1501, %v1620
          %v1622 = vpop.f32.mrf.mxu0
          %v1623 = vadd.f32 %v1506, %v1622
          %1624 = vmatmul.bf16.gmra.mxu0 %v1584
          %v1625 = vpop.f32.mrf.mxu0
          %v1626 = vadd.f32 %v1511, %v1625
          %v1627 = vpop.f32.mrf.mxu0
          %v1628 = vadd.f32 %v1516, %v1627
          %1629 = vmatmul.bf16.gmra.mxu0 %v1585
          %v1630 = vpop.f32.mrf.mxu0
          %v1631 = vadd.f32 %v1521, %v1630
          %v1632 = vpop.f32.mrf.mxu0
          %v1633 = vadd.f32 %v1526, %v1632
          %1634 = vmatmul.bf16.gmra.mxu0 %v1586
          %v1635 = vpop.f32.mrf.mxu0
          %v1636 = vadd.f32 %v1531, %v1635
          %v1637 = vpop.f32.mrf.mxu0
          %v1638 = vadd.f32 %v1536, %v1637
          %1639 = vmatmul.bf16.gmra.mxu0 %v1587
          %v1640 = vpop.f32.mrf.mxu0
          %v1641 = vadd.f32 %v1541, %v1640
          %v1642 = vpop.f32.mrf.mxu0
          %v1643 = vadd.f32 %v1546, %v1642
          %1644 = vdwg.mxu0
          %1645 = vmatpush.bf16.msra.mxu0 %v1049
          %1646 = vmatpush.bf16.msra.mxu0 %v1047
          %1647 = vmatpush.bf16.msra.mxu0 %v1045
          %1648 = vmatpush.bf16.msra.mxu0 %v1043
          %1649 = vmatpush.bf16.msra.mxu0 %v1041
          %1650 = vmatpush.bf16.msra.mxu0 %v1039
          %1651 = vmatpush.bf16.msra.mxu0 %v1037
          %1652 = vmatpush.bf16.msra.mxu0 %v1035
          %1653 = vmatmul.bf16.gmra.mxu0 %v1580
          %v1654 = vpop.f32.mrf.mxu0
          %v1655 = vadd.f32 %v1471, %v1654
          %v1656 = vpop.f32.mrf.mxu0
          %v1657 = vadd.f32 %v1476, %v1656
          %1658 = vmatmul.bf16.gmra.mxu0 %v1581
          %v1659 = vpop.f32.mrf.mxu0
          %v1660 = vadd.f32 %v1481, %v1659
          %v1661 = vpop.f32.mrf.mxu0
          %v1662 = vadd.f32 %v1486, %v1661
          %1663 = vmatmul.bf16.gmra.mxu0 %v1582
          %v1664 = vpop.f32.mrf.mxu0
          %v1665 = vadd.f32 %v1491, %v1664
          %v1666 = vpop.f32.mrf.mxu0
          %v1667 = vadd.f32 %v1496, %v1666
          %1668 = vmatmul.bf16.gmra.mxu0 %v1583
          %v1669 = vpop.f32.mrf.mxu0
          %v1670 = vadd.f32 %v1501, %v1669
          %v1671 = vpop.f32.mrf.mxu0
          %v1672 = vadd.f32 %v1506, %v1671
          %1673 = vmatmul.bf16.gmra.mxu0 %v1584
          %v1674 = vpop.f32.mrf.mxu0
          %v1675 = vadd.f32 %v1511, %v1674
          %v1676 = vpop.f32.mrf.mxu0
          %v1677 = vadd.f32 %v1516, %v1676
          %1678 = vmatmul.bf16.gmra.mxu0 %v1585
          %v1679 = vpop.f32.mrf.mxu0
          %v1680 = vadd.f32 %v1521, %v1679
          %v1681 = vpop.f32.mrf.mxu0
          %v1682 = vadd.f32 %v1526, %v1681
          %1683 = vmatmul.bf16.gmra.mxu0 %v1586
          %v1684 = vpop.f32.mrf.mxu0
          %v1685 = vadd.f32 %v1531, %v1684
          %v1686 = vpop.f32.mrf.mxu0
          %v1687 = vadd.f32 %v1536, %v1686
          %1688 = vmatmul.bf16.gmra.mxu0 %v1587
          %v1689 = vpop.f32.mrf.mxu0
          %v1690 = vadd.f32 %v1541, %v1689
          %v1691 = vpop.f32.mrf.mxu0
          %v1692 = vadd.f32 %v1546, %v1691
          %1693 = vdwg.mxu0
          %v1694 = vpack.c.bf16 %v1655, %v1606
          %v1695 = vpack.c.bf16 %v1657, %v1608
          %v1696 = vpack.c.bf16 %v1660, %v1611
          %v1697 = vpack.c.bf16 %v1662, %v1613
          %v1698 = vpack.c.bf16 %v1665, %v1616
          %v1699 = vpack.c.bf16 %v1667, %v1618
          %v1700 = vpack.c.bf16 %v1670, %v1621
          %v1701 = vpack.c.bf16 %v1672, %v1623
          %v1702 = vpack.c.bf16 %v1675, %v1626
          %v1703 = vpack.c.bf16 %v1677, %v1628
          %v1704 = vpack.c.bf16 %v1680, %v1631
          %v1705 = vpack.c.bf16 %v1682, %v1633
          %v1706 = vpack.c.bf16 %v1685, %v1636
          %v1707 = vpack.c.bf16 %v1687, %v1638
          %v1708 = vpack.c.bf16 %v1690, %v1641
          %v1709 = vpack.c.bf16 %v1692, %v1643
          %1710 = vst [vmem:[#allocation3] sm:$0xff] %v1694
          %1711 = vst [vmem:[#allocation3 + $0x8] sm:$0xff] %v1695
          %1712 = vst [vmem:[#allocation3 + $0x10] sm:$0xff] %v1696
          %1713 = vst [vmem:[#allocation3 + $0x18] sm:$0xff] %v1697
          %1714 = vst [vmem:[#allocation3 + $0x20] sm:$0xff] %v1698
          %1715 = vst [vmem:[#allocation3 + $0x28] sm:$0xff] %v1699
          %1716 = vst [vmem:[#allocation3 + $0x30] sm:$0xff] %v1700
          %1717 = vst [vmem:[#allocation3 + $0x38] sm:$0xff] %v1701
          %1718 = vst [vmem:[#allocation3 + $0x40] sm:$0xff] %v1702
          %1719 = vst [vmem:[#allocation3 + $0x48] sm:$0xff] %v1703
          %1720 = vst [vmem:[#allocation3 + $0x50] sm:$0xff] %v1704
          %1721 = vst [vmem:[#allocation3 + $0x58] sm:$0xff] %v1705
          %1722 = vst [vmem:[#allocation3 + $0x60] sm:$0xff] %v1706
          %1723 = vst [vmem:[#allocation3 + $0x68] sm:$0xff] %v1707
          %1724 = vst [vmem:[#allocation3 + $0x70] sm:$0xff] %v1708
          %1725 = vst [vmem:[#allocation3 + $0x78] sm:$0xff] %v1709
        $region80: #{tpu_custom_call.1} parent=71 // pred_fallthru
          _
        %s1726 = smul.u32 %s35, 128
        %s1727 = sshra.s32 %s1726, 7
        %s1728 = sand.u32 %s1726, 127
        %s1729 = smul.addr %s1727, 8
        %s1730 = scalar_lea.vmem %s431, %s1729 [#allocation6]
        %v1731 = vld [vmem:[%s1730] sm:$0xff]
        %v1732 = vld [vmem:[%s1730 + $0x10] sm:$0xff]
        %v1733 = vld [vmem:[%s1730 + $0x20] sm:$0xff]
        %v1734 = vld [vmem:[%s1730 + $0x30] sm:$0xff]
        %v1735 = vld [vmem:[%s1730 + $0x40] sm:$0xff]
        %v1736 = vld [vmem:[%s1730 + $0x50] sm:$0xff]
        %v1737 = vld [vmem:[%s1730 + $0x60] sm:$0xff]
        %v1738 = vld [vmem:[%s1730 + $0x70] sm:$0xff]
        %v1739 = vld [vmem:[%s1730 + $0x80] sm:$0xff]
        %v1740 = vld [vmem:[%s1730 + $0x90] sm:$0xff]
        %v1741 = vld [vmem:[%s1730 + $0xa0] sm:$0xff]
        %v1742 = vld [vmem:[%s1730 + $0xb0] sm:$0xff]
        %v1743 = vld [vmem:[%s1730 + $0xc0] sm:$0xff]
        %v1744 = vld [vmem:[%s1730 + $0xd0] sm:$0xff]
        %v1745 = vld [vmem:[%s1730 + $0xe0] sm:$0xff]
        %v1746 = vld [vmem:[%s1730 + $0xf0] sm:$0xff]
        %v1747 = vld [vmem:[#allocation4] sm:$0xff]
        %v1748 = vld [vmem:[#allocation4 + $0x8] sm:$0xff]
        %v1749 = vld [vmem:[#allocation4 + $0x10] sm:$0xff]
        %v1750 = vld [vmem:[#allocation4 + $0x18] sm:$0xff]
        %v1751 = vld [vmem:[#allocation4 + $0x20] sm:$0xff]
        %v1752 = vld [vmem:[#allocation4 + $0x28] sm:$0xff]
        %v1753 = vld [vmem:[#allocation4 + $0x30] sm:$0xff]
        %v1754 = vld [vmem:[#allocation4 + $0x38] sm:$0xff]
        %v1755 = vld [vmem:[#allocation4 + $0x40] sm:$0xff]
        %v1756 = vld [vmem:[#allocation4 + $0x48] sm:$0xff]
        %v1757 = vld [vmem:[#allocation4 + $0x50] sm:$0xff]
        %v1758 = vld [vmem:[#allocation4 + $0x58] sm:$0xff]
        %v1759 = vld [vmem:[#allocation4 + $0x60] sm:$0xff]
        %v1760 = vld [vmem:[#allocation4 + $0x68] sm:$0xff]
        %v1761 = vld [vmem:[#allocation4 + $0x70] sm:$0xff]
        %v1762 = vld [vmem:[#allocation4 + $0x78] sm:$0xff]
        %1764 = vset.pattern.permute.xlu0 0
        %1765 = vperm.xlu0 %1764, %v1747
        %v1766 = vpop.permute.xlu0 %1765
        %1769 = vset.pattern.permute.xlu0 0
        %1770 = vperm.xlu0 %1769, %v1748
        %v1771 = vpop.permute.xlu0 %1770
        %1774 = vset.pattern.permute.xlu0 0
        %1775 = vperm.xlu0 %1774, %v1749
        %v1776 = vpop.permute.xlu0 %1775
        %1779 = vset.pattern.permute.xlu0 0
        %1780 = vperm.xlu0 %1779, %v1750
        %v1781 = vpop.permute.xlu0 %1780
        %1784 = vset.pattern.permute.xlu0 0
        %1785 = vperm.xlu0 %1784, %v1751
        %v1786 = vpop.permute.xlu0 %1785
        %1789 = vset.pattern.permute.xlu0 0
        %1790 = vperm.xlu0 %1789, %v1752
        %v1791 = vpop.permute.xlu0 %1790
        %1794 = vset.pattern.permute.xlu0 0
        %1795 = vperm.xlu0 %1794, %v1753
        %v1796 = vpop.permute.xlu0 %1795
        %1799 = vset.pattern.permute.xlu0 0
        %1800 = vperm.xlu0 %1799, %v1754
        %v1801 = vpop.permute.xlu0 %1800
        %1804 = vset.pattern.permute.xlu0 0
        %1805 = vperm.xlu0 %1804, %v1755
        %v1806 = vpop.permute.xlu0 %1805
        %1809 = vset.pattern.permute.xlu0 0
        %1810 = vperm.xlu0 %1809, %v1756
        %v1811 = vpop.permute.xlu0 %1810
        %1814 = vset.pattern.permute.xlu0 0
        %1815 = vperm.xlu0 %1814, %v1757
        %v1816 = vpop.permute.xlu0 %1815
        %1819 = vset.pattern.permute.xlu0 0
        %1820 = vperm.xlu0 %1819, %v1758
        %v1821 = vpop.permute.xlu0 %1820
        %1824 = vset.pattern.permute.xlu0 0
        %1825 = vperm.xlu0 %1824, %v1759
        %v1826 = vpop.permute.xlu0 %1825
        %1829 = vset.pattern.permute.xlu0 0
        %1830 = vperm.xlu0 %1829, %v1760
        %v1831 = vpop.permute.xlu0 %1830
        %1834 = vset.pattern.permute.xlu0 0
        %1835 = vperm.xlu0 %1834, %v1761
        %v1836 = vpop.permute.xlu0 %1835
        %1839 = vset.pattern.permute.xlu0 0
        %1840 = vperm.xlu0 %1839, %v1762
        %v1841 = vpop.permute.xlu0 %1840
        %v1843 = vmul.f32 %v1731, %v1766
        %v1844 = vmul.f32 %v1732, %v1771
        %v1845 = vmul.f32 %v1733, %v1776
        %v1846 = vmul.f32 %v1734, %v1781
        %v1847 = vmul.f32 %v1735, %v1786
        %v1848 = vmul.f32 %v1736, %v1791
        %v1849 = vmul.f32 %v1737, %v1796
        %v1850 = vmul.f32 %v1738, %v1801
        %v1851 = vmul.f32 %v1739, %v1806
        %v1852 = vmul.f32 %v1740, %v1811
        %v1853 = vmul.f32 %v1741, %v1816
        %v1854 = vmul.f32 %v1742, %v1821
        %v1855 = vmul.f32 %v1743, %v1826
        %v1856 = vmul.f32 %v1744, %v1831
        %v1857 = vmul.f32 %v1745, %v1836
        %v1858 = vmul.f32 %v1746, %v1841
        %v1859 = vld [vmem:[#allocation5] sm:$0xff]
        %v1860 = vld [vmem:[#allocation5 + $0x8] sm:$0xff]
        %v1861 = vld [vmem:[#allocation5 + $0x10] sm:$0xff]
        %v1862 = vld [vmem:[#allocation5 + $0x18] sm:$0xff]
        %v1863 = vld [vmem:[#allocation5 + $0x20] sm:$0xff]
        %v1864 = vld [vmem:[#allocation5 + $0x28] sm:$0xff]
        %v1865 = vld [vmem:[#allocation5 + $0x30] sm:$0xff]
        %v1866 = vld [vmem:[#allocation5 + $0x38] sm:$0xff]
        %v1867 = vld [vmem:[#allocation5 + $0x40] sm:$0xff]
        %v1868 = vld [vmem:[#allocation5 + $0x48] sm:$0xff]
        %v1869 = vld [vmem:[#allocation5 + $0x50] sm:$0xff]
        %v1870 = vld [vmem:[#allocation5 + $0x58] sm:$0xff]
        %v1871 = vld [vmem:[#allocation5 + $0x60] sm:$0xff]
        %v1872 = vld [vmem:[#allocation5 + $0x68] sm:$0xff]
        %v1873 = vld [vmem:[#allocation5 + $0x70] sm:$0xff]
        %v1874 = vld [vmem:[#allocation5 + $0x78] sm:$0xff]
        %1876 = vset.pattern.permute.xlu0 0
        %1877 = vperm.xlu0 %1876, %v1859
        %v1878 = vpop.permute.xlu0 %1877
        %1881 = vset.pattern.permute.xlu0 0
        %1882 = vperm.xlu0 %1881, %v1860
        %v1883 = vpop.permute.xlu0 %1882
        %1886 = vset.pattern.permute.xlu0 0
        %1887 = vperm.xlu0 %1886, %v1861
        %v1888 = vpop.permute.xlu0 %1887
        %1891 = vset.pattern.permute.xlu0 0
        %1892 = vperm.xlu0 %1891, %v1862
        %v1893 = vpop.permute.xlu0 %1892
        %1896 = vset.pattern.permute.xlu0 0
        %1897 = vperm.xlu0 %1896, %v1863
        %v1898 = vpop.permute.xlu0 %1897
        %1901 = vset.pattern.permute.xlu0 0
        %1902 = vperm.xlu0 %1901, %v1864
        %v1903 = vpop.permute.xlu0 %1902
        %1906 = vset.pattern.permute.xlu0 0
        %1907 = vperm.xlu0 %1906, %v1865
        %v1908 = vpop.permute.xlu0 %1907
        %1911 = vset.pattern.permute.xlu0 0
        %1912 = vperm.xlu0 %1911, %v1866
        %v1913 = vpop.permute.xlu0 %1912
        %1916 = vset.pattern.permute.xlu0 0
        %1917 = vperm.xlu0 %1916, %v1867
        %v1918 = vpop.permute.xlu0 %1917
        %1921 = vset.pattern.permute.xlu0 0
        %1922 = vperm.xlu0 %1921, %v1868
        %v1923 = vpop.permute.xlu0 %1922
        %1926 = vset.pattern.permute.xlu0 0
        %1927 = vperm.xlu0 %1926, %v1869
        %v1928 = vpop.permute.xlu0 %1927
        %1931 = vset.pattern.permute.xlu0 0
        %1932 = vperm.xlu0 %1931, %v1870
        %v1933 = vpop.permute.xlu0 %1932
        %1936 = vset.pattern.permute.xlu0 0
        %1937 = vperm.xlu0 %1936, %v1871
        %v1938 = vpop.permute.xlu0 %1937
        %1941 = vset.pattern.permute.xlu0 0
        %1942 = vperm.xlu0 %1941, %v1872
        %v1943 = vpop.permute.xlu0 %1942
        %1946 = vset.pattern.permute.xlu0 0
        %1947 = vperm.xlu0 %1946, %v1873
        %v1948 = vpop.permute.xlu0 %1947
        %1951 = vset.pattern.permute.xlu0 0
        %1952 = vperm.xlu0 %1951, %v1874
        %v1953 = vpop.permute.xlu0 %1952
        %v1955 = vadd.f32 %v1843, %v1878
        %v1956 = vadd.f32 %v1844, %v1883
        %v1957 = vadd.f32 %v1845, %v1888
        %v1958 = vadd.f32 %v1846, %v1893
        %v1959 = vadd.f32 %v1847, %v1898
        %v1960 = vadd.f32 %v1848, %v1903
        %v1961 = vadd.f32 %v1849, %v1908
        %v1962 = vadd.f32 %v1850, %v1913
        %v1963 = vadd.f32 %v1851, %v1918
        %v1964 = vadd.f32 %v1852, %v1923
        %v1965 = vadd.f32 %v1853, %v1928
        %v1966 = vadd.f32 %v1854, %v1933
        %v1967 = vadd.f32 %v1855, %v1938
        %v1968 = vadd.f32 %v1856, %v1943
        %v1969 = vadd.f32 %v1857, %v1948
        %v1970 = vadd.f32 %v1858, %v1953
        %v1971 = vpack.c.bf16 %v1956, %v1955
        %v1972 = vpack.c.bf16 %v1958, %v1957
        %v1973 = vpack.c.bf16 %v1960, %v1959
        %v1974 = vpack.c.bf16 %v1962, %v1961
        %v1975 = vpack.c.bf16 %v1964, %v1963
        %v1976 = vpack.c.bf16 %v1966, %v1965
        %v1977 = vpack.c.bf16 %v1968, %v1967
        %v1978 = vpack.c.bf16 %v1970, %v1969
        %v1979 = vld [vmem:[%s5] sm:$0xf]
        %v1980 = vld [vmem:[%s5 + $0x4] sm:$0xf]
        %v1981 = vld [vmem:[%s5 + $0x8] sm:$0xf]
        %v1982 = vld [vmem:[%s5 + $0xc] sm:$0xf]
        %v1983 = vld [vmem:[%s5 + $0x10] sm:$0xf]
        %v1984 = vld [vmem:[%s5 + $0x14] sm:$0xf]
        %v1985 = vld [vmem:[%s5 + $0x18] sm:$0xf]
        %v1986 = vld [vmem:[%s5 + $0x1c] sm:$0xf]
        %v1987 = vld [vmem:[%s5 + $0x20] sm:$0xf]
        %v1988 = vld [vmem:[%s5 + $0x24] sm:$0xf]
        %v1989 = vld [vmem:[%s5 + $0x28] sm:$0xf]
        %v1990 = vld [vmem:[%s5 + $0x2c] sm:$0xf]
        %v1991 = vld [vmem:[%s5 + $0x30] sm:$0xf]
        %v1992 = vld [vmem:[%s5 + $0x34] sm:$0xf]
        %v1993 = vld [vmem:[%s5 + $0x38] sm:$0xf]
        %v1994 = vld [vmem:[%s5 + $0x3c] sm:$0xf]
        %v1995 = vld [vmem:[%s6] sm:$0xff]
        %v1996 = vld [vmem:[%s6 + $0x8] sm:$0xff]
        %v1997 = vld [vmem:[%s6 + $0x10] sm:$0xff]
        %v1998 = vld [vmem:[%s6 + $0x18] sm:$0xff]
        %v1999 = vld [vmem:[%s6 + $0x20] sm:$0xff]
        %v2000 = vld [vmem:[%s6 + $0x28] sm:$0xff]
        %v2001 = vld [vmem:[%s6 + $0x30] sm:$0xff]
        %v2002 = vld [vmem:[%s6 + $0x38] sm:$0xff]
        %v2003 = vld [vmem:[%s6 + $0x40] sm:$0xff]
        %v2004 = vld [vmem:[%s6 + $0x48] sm:$0xff]
        %v2005 = vld [vmem:[%s6 + $0x50] sm:$0xff]
        %v2006 = vld [vmem:[%s6 + $0x58] sm:$0xff]
        %v2007 = vld [vmem:[%s6 + $0x60] sm:$0xff]
        %v2008 = vld [vmem:[%s6 + $0x68] sm:$0xff]
        %v2009 = vld [vmem:[%s6 + $0x70] sm:$0xff]
        %v2010 = vld [vmem:[%s6 + $0x78] sm:$0xff]
        %2012 = vset.pattern.permute.xlu0 0
        %2013 = vperm.xlu0 %2012, %v1995
        %v2014 = vpop.permute.xlu0 %2013
        %2017 = vset.pattern.permute.xlu0 0
        %2018 = vperm.xlu0 %2017, %v1996
        %v2019 = vpop.permute.xlu0 %2018
        %2022 = vset.pattern.permute.xlu0 0
        %2023 = vperm.xlu0 %2022, %v1997
        %v2024 = vpop.permute.xlu0 %2023
        %2027 = vset.pattern.permute.xlu0 0
        %2028 = vperm.xlu0 %2027, %v1998
        %v2029 = vpop.permute.xlu0 %2028
        %2032 = vset.pattern.permute.xlu0 0
        %2033 = vperm.xlu0 %2032, %v1999
        %v2034 = vpop.permute.xlu0 %2033
        %2037 = vset.pattern.permute.xlu0 0
        %2038 = vperm.xlu0 %2037, %v2000
        %v2039 = vpop.permute.xlu0 %2038
        %2042 = vset.pattern.permute.xlu0 0
        %2043 = vperm.xlu0 %2042, %v2001
        %v2044 = vpop.permute.xlu0 %2043
        %2047 = vset.pattern.permute.xlu0 0
        %2048 = vperm.xlu0 %2047, %v2002
        %v2049 = vpop.permute.xlu0 %2048
        %2052 = vset.pattern.permute.xlu0 0
        %2053 = vperm.xlu0 %2052, %v2003
        %v2054 = vpop.permute.xlu0 %2053
        %2057 = vset.pattern.permute.xlu0 0
        %2058 = vperm.xlu0 %2057, %v2004
        %v2059 = vpop.permute.xlu0 %2058
        %2062 = vset.pattern.permute.xlu0 0
        %2063 = vperm.xlu0 %2062, %v2005
        %v2064 = vpop.permute.xlu0 %2063
        %2067 = vset.pattern.permute.xlu0 0
        %2068 = vperm.xlu0 %2067, %v2006
        %v2069 = vpop.permute.xlu0 %2068
        %2072 = vset.pattern.permute.xlu0 0
        %2073 = vperm.xlu0 %2072, %v2007
        %v2074 = vpop.permute.xlu0 %2073
        %2077 = vset.pattern.permute.xlu0 0
        %2078 = vperm.xlu0 %2077, %v2008
        %v2079 = vpop.permute.xlu0 %2078
        %2082 = vset.pattern.permute.xlu0 0
        %2083 = vperm.xlu0 %2082, %v2009
        %v2084 = vpop.permute.xlu0 %2083
        %2087 = vset.pattern.permute.xlu0 0
        %2088 = vperm.xlu0 %2087, %v2010
        %v2089 = vpop.permute.xlu0 %2088
        %v2107 = vunpack.c.l.b16 %v1979
        %v2108 = vunpack.c.l.b16 %v1980
        %v2109 = vunpack.c.l.b16 %v1981
        %v2110 = vunpack.c.l.b16 %v1982
        %v2111 = vunpack.c.l.b16 %v1983
        %v2112 = vunpack.c.l.b16 %v1984
        %v2113 = vunpack.c.l.b16 %v1985
        %v2114 = vunpack.c.l.b16 %v1986
        %v2115 = vunpack.c.l.b16 %v1987
        %v2116 = vunpack.c.l.b16 %v1988
        %v2117 = vunpack.c.l.b16 %v1989
        %v2118 = vunpack.c.l.b16 %v1990
        %v2119 = vunpack.c.l.b16 %v1991
        %v2120 = vunpack.c.l.b16 %v1992
        %v2121 = vunpack.c.l.b16 %v1993
        %v2122 = vunpack.c.l.b16 %v1994
        %v2123 = vpack.c.b16 %v2108, %v2107
        %v2124 = vpack.c.b16 %v2110, %v2109
        %v2125 = vpack.c.b16 %v2112, %v2111
        %v2126 = vpack.c.b16 %v2114, %v2113
        %v2127 = vpack.c.b16 %v2116, %v2115
        %v2128 = vpack.c.b16 %v2118, %v2117
        %v2129 = vpack.c.b16 %v2120, %v2119
        %v2130 = vpack.c.b16 %v2122, %v2121
        %2139 = vmatpush.bf16.msra.mxu0 %v1978
        %2140 = vmatpush.bf16.msra.mxu0 %v1977
        %2141 = vmatpush.bf16.msra.mxu0 %v1976
        %2142 = vmatpush.bf16.msra.mxu0 %v1975
        %2143 = vmatpush.bf16.msra.mxu0 %v1974
        %2144 = vmatpush.bf16.msra.mxu0 %v1973
        %2145 = vmatpush.bf16.msra.mxu0 %v1972
        %2146 = vmatpush.bf16.msra.mxu0 %v1971
        %2147 = vmatmul.bf16.gmra.mxu0 %v2123
        %v2148 = vpop.f32.mrf.mxu0
        %v2149 = vadd.f32 %v2014, %v2148
        %v2150 = vpop.f32.mrf.mxu0
        %v2151 = vadd.f32 %v2019, %v2150
        %2152 = vmatmul.bf16.gmra.mxu0 %v2124
        %v2153 = vpop.f32.mrf.mxu0
        %v2154 = vadd.f32 %v2024, %v2153
        %v2155 = vpop.f32.mrf.mxu0
        %v2156 = vadd.f32 %v2029, %v2155
        %2157 = vmatmul.bf16.gmra.mxu0 %v2125
        %v2158 = vpop.f32.mrf.mxu0
        %v2159 = vadd.f32 %v2034, %v2158
        %v2160 = vpop.f32.mrf.mxu0
        %v2161 = vadd.f32 %v2039, %v2160
        %2162 = vmatmul.bf16.gmra.mxu0 %v2126
        %v2163 = vpop.f32.mrf.mxu0
        %v2164 = vadd.f32 %v2044, %v2163
        %v2165 = vpop.f32.mrf.mxu0
        %v2166 = vadd.f32 %v2049, %v2165
        %2167 = vmatmul.bf16.gmra.mxu0 %v2127
        %v2168 = vpop.f32.mrf.mxu0
        %v2169 = vadd.f32 %v2054, %v2168
        %v2170 = vpop.f32.mrf.mxu0
        %v2171 = vadd.f32 %v2059, %v2170
        %2172 = vmatmul.bf16.gmra.mxu0 %v2128
        %v2173 = vpop.f32.mrf.mxu0
        %v2174 = vadd.f32 %v2064, %v2173
        %v2175 = vpop.f32.mrf.mxu0
        %v2176 = vadd.f32 %v2069, %v2175
        %2177 = vmatmul.bf16.gmra.mxu0 %v2129
        %v2178 = vpop.f32.mrf.mxu0
        %v2179 = vadd.f32 %v2074, %v2178
        %v2180 = vpop.f32.mrf.mxu0
        %v2181 = vadd.f32 %v2079, %v2180
        %2182 = vmatmul.bf16.gmra.mxu0 %v2130
        %v2183 = vpop.f32.mrf.mxu0
        %v2184 = vadd.f32 %v2084, %v2183
        %v2185 = vpop.f32.mrf.mxu0
        %v2186 = vadd.f32 %v2089, %v2185
        %2187 = vdwg.mxu0
        %v2188 = vpack.c.bf16 %v2151, %v2149
        %v2189 = vpack.c.bf16 %v2156, %v2154
        %v2190 = vpack.c.bf16 %v2161, %v2159
        %v2191 = vpack.c.bf16 %v2166, %v2164
        %v2192 = vpack.c.bf16 %v2171, %v2169
        %v2193 = vpack.c.bf16 %v2176, %v2174
        %v2194 = vpack.c.bf16 %v2181, %v2179
        %v2195 = vpack.c.bf16 %v2186, %v2184
        %v2196 = vld [vmem:[#allocation2] sm:$0xf]
        %v2197 = vld [vmem:[#allocation2 + $0x4] sm:$0xf]
        %v2198 = vld [vmem:[#allocation2 + $0x8] sm:$0xf]
        %v2199 = vld [vmem:[#allocation2 + $0xc] sm:$0xf]
        %v2200 = vld [vmem:[#allocation2 + $0x10] sm:$0xf]
        %v2201 = vld [vmem:[#allocation2 + $0x14] sm:$0xf]
        %v2202 = vld [vmem:[#allocation2 + $0x18] sm:$0xf]
        %v2203 = vld [vmem:[#allocation2 + $0x1c] sm:$0xf]
        %v2204 = vld [vmem:[#allocation2 + $0x20] sm:$0xf]
        %v2205 = vld [vmem:[#allocation2 + $0x24] sm:$0xf]
        %v2206 = vld [vmem:[#allocation2 + $0x28] sm:$0xf]
        %v2207 = vld [vmem:[#allocation2 + $0x2c] sm:$0xf]
        %v2208 = vld [vmem:[#allocation2 + $0x30] sm:$0xf]
        %v2209 = vld [vmem:[#allocation2 + $0x34] sm:$0xf]
        %v2210 = vld [vmem:[#allocation2 + $0x38] sm:$0xf]
        %v2211 = vld [vmem:[#allocation2 + $0x3c] sm:$0xf]
        %v2212 = vld [vmem:[#allocation2 + $0x40] sm:$0xf]
        %v2213 = vld [vmem:[#allocation2 + $0x44] sm:$0xf]
        %v2214 = vld [vmem:[#allocation2 + $0x48] sm:$0xf]
        %v2215 = vld [vmem:[#allocation2 + $0x4c] sm:$0xf]
        %v2216 = vld [vmem:[#allocation2 + $0x50] sm:$0xf]
        %v2217 = vld [vmem:[#allocation2 + $0x54] sm:$0xf]
        %v2218 = vld [vmem:[#allocation2 + $0x58] sm:$0xf]
        %v2219 = vld [vmem:[#allocation2 + $0x5c] sm:$0xf]
        %v2220 = vld [vmem:[#allocation2 + $0x60] sm:$0xf]
        %v2221 = vld [vmem:[#allocation2 + $0x64] sm:$0xf]
        %v2222 = vld [vmem:[#allocation2 + $0x68] sm:$0xf]
        %v2223 = vld [vmem:[#allocation2 + $0x6c] sm:$0xf]
        %v2224 = vld [vmem:[#allocation2 + $0x70] sm:$0xf]
        %v2225 = vld [vmem:[#allocation2 + $0x74] sm:$0xf]
        %v2226 = vld [vmem:[#allocation2 + $0x78] sm:$0xf]
        %v2227 = vld [vmem:[#allocation2 + $0x7c] sm:$0xf]
        %v2260 = vunpack.c.l.b16 %v2196
        %v2261 = vunpack.c.l.b16 %v2197
        %v2262 = vunpack.c.l.b16 %v2198
        %v2263 = vunpack.c.l.b16 %v2199
        %v2264 = vunpack.c.l.b16 %v2200
        %v2265 = vunpack.c.l.b16 %v2201
        %v2266 = vunpack.c.l.b16 %v2202
        %v2267 = vunpack.c.l.b16 %v2203
        %v2268 = vunpack.c.l.b16 %v2204
        %v2269 = vunpack.c.l.b16 %v2205
        %v2270 = vunpack.c.l.b16 %v2206
        %v2271 = vunpack.c.l.b16 %v2207
        %v2272 = vunpack.c.l.b16 %v2208
        %v2273 = vunpack.c.l.b16 %v2209
        %v2274 = vunpack.c.l.b16 %v2210
        %v2275 = vunpack.c.l.b16 %v2211
        %v2276 = vunpack.c.l.b16 %v2212
        %v2277 = vunpack.c.l.b16 %v2213
        %v2278 = vunpack.c.l.b16 %v2214
        %v2279 = vunpack.c.l.b16 %v2215
        %v2280 = vunpack.c.l.b16 %v2216
        %v2281 = vunpack.c.l.b16 %v2217
        %v2282 = vunpack.c.l.b16 %v2218
        %v2283 = vunpack.c.l.b16 %v2219
        %v2284 = vunpack.c.l.b16 %v2220
        %v2285 = vunpack.c.l.b16 %v2221
        %v2286 = vunpack.c.l.b16 %v2222
        %v2287 = vunpack.c.l.b16 %v2223
        %v2288 = vunpack.c.l.b16 %v2224
        %v2289 = vunpack.c.l.b16 %v2225
        %v2290 = vunpack.c.l.b16 %v2226
        %v2291 = vunpack.c.l.b16 %v2227
        %v2292 = vpack.c.b16 %v2261, %v2260
        %v2293 = vpack.c.b16 %v2263, %v2262
        %v2294 = vpack.c.b16 %v2265, %v2264
        %v2295 = vpack.c.b16 %v2267, %v2266
        %v2296 = vpack.c.b16 %v2269, %v2268
        %v2297 = vpack.c.b16 %v2271, %v2270
        %v2298 = vpack.c.b16 %v2273, %v2272
        %v2299 = vpack.c.b16 %v2275, %v2274
        %v2300 = vpack.c.b16 %v2277, %v2276
        %v2301 = vpack.c.b16 %v2279, %v2278
        %v2302 = vpack.c.b16 %v2281, %v2280
        %v2303 = vpack.c.b16 %v2283, %v2282
        %v2304 = vpack.c.b16 %v2285, %v2284
        %v2305 = vpack.c.b16 %v2287, %v2286
        %v2306 = vpack.c.b16 %v2289, %v2288
        %v2307 = vpack.c.b16 %v2291, %v2290
        %2324 = vmatpush.bf16.msra.mxu0 %v2195
        %2325 = vmatpush.bf16.msra.mxu0 %v2194
        %2326 = vmatpush.bf16.msra.mxu0 %v2193
        %2327 = vmatpush.bf16.msra.mxu0 %v2192
        %2328 = vmatpush.bf16.msra.mxu0 %v2191
        %2329 = vmatpush.bf16.msra.mxu0 %v2190
        %2330 = vmatpush.bf16.msra.mxu0 %v2189
        %2331 = vmatpush.bf16.msra.mxu0 %v2188
        %2332 = vmatmul.bf16.gmra.mxu0 %v2292
        %v2333 = vpop.f32.mrf.mxu0
        %v2334 = vadd.f32 0.0, %v2333
        %v2335 = vpop.f32.mrf.mxu0
        %v2336 = vadd.f32 0.0, %v2335
        %2337 = vmatmul.bf16.gmra.mxu0 %v2293
        %v2338 = vpop.f32.mrf.mxu0
        %v2339 = vadd.f32 0.0, %v2338
        %v2340 = vpop.f32.mrf.mxu0
        %v2341 = vadd.f32 0.0, %v2340
        %2342 = vmatmul.bf16.gmra.mxu0 %v2294
        %v2343 = vpop.f32.mrf.mxu0
        %v2344 = vadd.f32 0.0, %v2343
        %v2345 = vpop.f32.mrf.mxu0
        %v2346 = vadd.f32 0.0, %v2345
        %2347 = vmatmul.bf16.gmra.mxu0 %v2295
        %v2348 = vpop.f32.mrf.mxu0
        %v2349 = vadd.f32 0.0, %v2348
        %v2350 = vpop.f32.mrf.mxu0
        %v2351 = vadd.f32 0.0, %v2350
        %2352 = vmatmul.bf16.gmra.mxu0 %v2296
        %v2353 = vpop.f32.mrf.mxu0
        %v2354 = vadd.f32 0.0, %v2353
        %v2355 = vpop.f32.mrf.mxu0
        %v2356 = vadd.f32 0.0, %v2355
        %2357 = vmatmul.bf16.gmra.mxu0 %v2297
        %v2358 = vpop.f32.mrf.mxu0
        %v2359 = vadd.f32 0.0, %v2358
        %v2360 = vpop.f32.mrf.mxu0
        %v2361 = vadd.f32 0.0, %v2360
        %2362 = vmatmul.bf16.gmra.mxu0 %v2298
        %v2363 = vpop.f32.mrf.mxu0
        %v2364 = vadd.f32 0.0, %v2363
        %v2365 = vpop.f32.mrf.mxu0
        %v2366 = vadd.f32 0.0, %v2365
        %2367 = vmatmul.bf16.gmra.mxu0 %v2299
        %v2368 = vpop.f32.mrf.mxu0
        %v2369 = vadd.f32 0.0, %v2368
        %v2370 = vpop.f32.mrf.mxu0
        %v2371 = vadd.f32 0.0, %v2370
        %2372 = vmatmul.bf16.gmra.mxu0 %v2300
        %v2373 = vpop.f32.mrf.mxu0
        %v2374 = vadd.f32 0.0, %v2373
        %v2375 = vpop.f32.mrf.mxu0
        %v2376 = vadd.f32 0.0, %v2375
        %2377 = vmatmul.bf16.gmra.mxu0 %v2301
        %v2378 = vpop.f32.mrf.mxu0
        %v2379 = vadd.f32 0.0, %v2378
        %v2380 = vpop.f32.mrf.mxu0
        %v2381 = vadd.f32 0.0, %v2380
        %2382 = vmatmul.bf16.gmra.mxu0 %v2302
        %v2383 = vpop.f32.mrf.mxu0
        %v2384 = vadd.f32 0.0, %v2383
        %v2385 = vpop.f32.mrf.mxu0
        %v2386 = vadd.f32 0.0, %v2385
        %2387 = vmatmul.bf16.gmra.mxu0 %v2303
        %v2388 = vpop.f32.mrf.mxu0
        %v2389 = vadd.f32 0.0, %v2388
        %v2390 = vpop.f32.mrf.mxu0
        %v2391 = vadd.f32 0.0, %v2390
        %2392 = vmatmul.bf16.gmra.mxu0 %v2304
        %v2393 = vpop.f32.mrf.mxu0
        %v2394 = vadd.f32 0.0, %v2393
        %v2395 = vpop.f32.mrf.mxu0
        %v2396 = vadd.f32 0.0, %v2395
        %2397 = vmatmul.bf16.gmra.mxu0 %v2305
        %v2398 = vpop.f32.mrf.mxu0
        %v2399 = vadd.f32 0.0, %v2398
        %v2400 = vpop.f32.mrf.mxu0
        %v2401 = vadd.f32 0.0, %v2400
        %2402 = vmatmul.bf16.gmra.mxu0 %v2306
        %v2403 = vpop.f32.mrf.mxu0
        %v2404 = vadd.f32 0.0, %v2403
        %v2405 = vpop.f32.mrf.mxu0
        %v2406 = vadd.f32 0.0, %v2405
        %2407 = vmatmul.bf16.gmra.mxu0 %v2307
        %v2408 = vpop.f32.mrf.mxu0
        %v2409 = vadd.f32 0.0, %v2408
        %v2410 = vpop.f32.mrf.mxu0
        %v2411 = vadd.f32 0.0, %v2410
        %2412 = vdwg.mxu0
        %v2413 = vmax.f32 %v2334, %v2344
        %v2414 = vmax.f32 %v2336, %v2346
        %v2415 = vmax.f32 %v2339, %v2349
        %v2416 = vmax.f32 %v2341, %v2351
        %v2417 = vmax.f32 %v2413, %v2354
        %v2418 = vmax.f32 %v2414, %v2356
        %v2419 = vmax.f32 %v2415, %v2359
        %v2420 = vmax.f32 %v2416, %v2361
        %v2421 = vmax.f32 %v2417, %v2364
        %v2422 = vmax.f32 %v2418, %v2366
        %v2423 = vmax.f32 %v2419, %v2369
        %v2424 = vmax.f32 %v2420, %v2371
        %v2425 = vmax.f32 %v2421, %v2374
        %v2426 = vmax.f32 %v2422, %v2376
        %v2427 = vmax.f32 %v2423, %v2379
        %v2428 = vmax.f32 %v2424, %v2381
        %v2429 = vmax.f32 %v2425, %v2384
        %v2430 = vmax.f32 %v2426, %v2386
        %v2431 = vmax.f32 %v2427, %v2389
        %v2432 = vmax.f32 %v2428, %v2391
        %v2433 = vmax.f32 %v2429, %v2394
        %v2434 = vmax.f32 %v2430, %v2396
        %v2435 = vmax.f32 %v2431, %v2399
        %v2436 = vmax.f32 %v2432, %v2401
        %v2437 = vmax.f32 %v2433, %v2404
        %v2438 = vmax.f32 %v2434, %v2406
        %v2439 = vmax.f32 %v2435, %v2409
        %v2440 = vmax.f32 %v2436, %v2411
        %v2441 = vmax.f32 %v2437, %v2438
        %v2442 = vmax.f32 %v2439, %v2440
        %v2443 = vmax.f32 %v2441, %v2442
        %v2444 = vrot.slane %v2443, 4
        %v2445 = vmax.f32 %v2443, %v2444
        %v2446 = vrot.slane %v2445, 2
        %v2447 = vmax.f32 %v2445, %v2446
        %v2448 = vrot.slane %v2447, 1
        %v2449 = vmax.f32 %v2447, %v2448
        %v2450 = vsub.f32 %v2334, %v2449
        %v2451 = vsub.f32 %v2336, %v2449
        %v2452 = vsub.f32 %v2339, %v2449
        %v2453 = vsub.f32 %v2341, %v2449
        %v2454 = vsub.f32 %v2344, %v2449
        %v2455 = vsub.f32 %v2346, %v2449
        %v2456 = vsub.f32 %v2349, %v2449
        %v2457 = vsub.f32 %v2351, %v2449
        %v2458 = vsub.f32 %v2354, %v2449
        %v2459 = vsub.f32 %v2356, %v2449
        %v2460 = vsub.f32 %v2359, %v2449
        %v2461 = vsub.f32 %v2361, %v2449
        %v2462 = vsub.f32 %v2364, %v2449
        %v2463 = vsub.f32 %v2366, %v2449
        %v2464 = vsub.f32 %v2369, %v2449
        %v2465 = vsub.f32 %v2371, %v2449
        %v2466 = vsub.f32 %v2374, %v2449
        %v2467 = vsub.f32 %v2376, %v2449
        %v2468 = vsub.f32 %v2379, %v2449
        %v2469 = vsub.f32 %v2381, %v2449
        %v2470 = vsub.f32 %v2384, %v2449
        %v2471 = vsub.f32 %v2386, %v2449
        %v2472 = vsub.f32 %v2389, %v2449
        %v2473 = vsub.f32 %v2391, %v2449
        %v2474 = vsub.f32 %v2394, %v2449
        %v2475 = vsub.f32 %v2396, %v2449
        %v2476 = vsub.f32 %v2399, %v2449
        %v2477 = vsub.f32 %v2401, %v2449
        %v2478 = vsub.f32 %v2404, %v2449
        %v2479 = vsub.f32 %v2406, %v2449
        %v2480 = vsub.f32 %v2409, %v2449
        %v2481 = vsub.f32 %v2411, %v2449
        %v2482 = vmul.f32 %v2450, 1.442695
        %v2483 = vpow.pop %v2482
        %v2484 = vmul.f32 %v2451, 1.442695
        %v2485 = vpow.pop %v2484
        %v2486 = vmul.f32 %v2452, 1.442695
        %v2487 = vpow.pop %v2486
        %v2488 = vmul.f32 %v2453, 1.442695
        %v2489 = vpow.pop %v2488
        %v2490 = vmul.f32 %v2454, 1.442695
        %v2491 = vpow.pop %v2490
        %v2492 = vmul.f32 %v2455, 1.442695
        %v2493 = vpow.pop %v2492
        %v2494 = vmul.f32 %v2456, 1.442695
        %v2495 = vpow.pop %v2494
        %v2496 = vmul.f32 %v2457, 1.442695
        %v2497 = vpow.pop %v2496
        %v2498 = vmul.f32 %v2458, 1.442695
        %v2499 = vpow.pop %v2498
        %v2500 = vmul.f32 %v2459, 1.442695
        %v2501 = vpow.pop %v2500
        %v2502 = vmul.f32 %v2460, 1.442695
        %v2503 = vpow.pop %v2502
        %v2504 = vmul.f32 %v2461, 1.442695
        %v2505 = vpow.pop %v2504
        %v2506 = vmul.f32 %v2462, 1.442695
        %v2507 = vpow.pop %v2506
        %v2508 = vmul.f32 %v2463, 1.442695
        %v2509 = vpow.pop %v2508
        %v2510 = vmul.f32 %v2464, 1.442695
        %v2511 = vpow.pop %v2510
        %v2512 = vmul.f32 %v2465, 1.442695
        %v2513 = vpow.pop %v2512
        %v2514 = vmul.f32 %v2466, 1.442695
        %v2515 = vpow.pop %v2514
        %v2516 = vmul.f32 %v2467, 1.442695
        %v2517 = vpow.pop %v2516
        %v2518 = vmul.f32 %v2468, 1.442695
        %v2519 = vpow.pop %v2518
        %v2520 = vmul.f32 %v2469, 1.442695
        %v2521 = vpow.pop %v2520
        %v2522 = vmul.f32 %v2470, 1.442695
        %v2523 = vpow.pop %v2522
        %v2524 = vmul.f32 %v2471, 1.442695
        %v2525 = vpow.pop %v2524
        %v2526 = vmul.f32 %v2472, 1.442695
        %v2527 = vpow.pop %v2526
        %v2528 = vmul.f32 %v2473, 1.442695
        %v2529 = vpow.pop %v2528
        %v2530 = vmul.f32 %v2474, 1.442695
        %v2531 = vpow.pop %v2530
        %v2532 = vmul.f32 %v2475, 1.442695
        %v2533 = vpow.pop %v2532
        %v2534 = vmul.f32 %v2476, 1.442695
        %v2535 = vpow.pop %v2534
        %v2536 = vmul.f32 %v2477, 1.442695
        %v2537 = vpow.pop %v2536
        %v2538 = vmul.f32 %v2478, 1.442695
        %v2539 = vpow.pop %v2538
        %v2540 = vmul.f32 %v2479, 1.442695
        %v2541 = vpow.pop %v2540
        %v2542 = vmul.f32 %v2480, 1.442695
        %v2543 = vpow.pop %v2542
        %v2544 = vmul.f32 %v2481, 1.442695
        %v2545 = vpow.pop %v2544
        %v2546 = vadd.f32 %v2483, %v2485
        %v2547 = vadd.f32 %v2546, %v2487
        %v2548 = vadd.f32 %v2547, %v2489
        %v2549 = vadd.f32 %v2548, %v2491
        %v2550 = vadd.f32 %v2549, %v2493
        %v2551 = vadd.f32 %v2550, %v2495
        %v2552 = vadd.f32 %v2551, %v2497
        %v2553 = vadd.f32 %v2552, %v2499
        %v2554 = vadd.f32 %v2553, %v2501
        %v2555 = vadd.f32 %v2554, %v2503
        %v2556 = vadd.f32 %v2555, %v2505
        %v2557 = vadd.f32 %v2556, %v2507
        %v2558 = vadd.f32 %v2557, %v2509
        %v2559 = vadd.f32 %v2558, %v2511
        %v2560 = vadd.f32 %v2559, %v2513
        %v2561 = vadd.f32 %v2560, %v2515
        %v2562 = vadd.f32 %v2561, %v2517
        %v2563 = vadd.f32 %v2562, %v2519
        %v2564 = vadd.f32 %v2563, %v2521
        %v2565 = vadd.f32 %v2564, %v2523
        %v2566 = vadd.f32 %v2565, %v2525
        %v2567 = vadd.f32 %v2566, %v2527
        %v2568 = vadd.f32 %v2567, %v2529
        %v2569 = vadd.f32 %v2568, %v2531
        %v2570 = vadd.f32 %v2569, %v2533
        %v2571 = vadd.f32 %v2570, %v2535
        %v2572 = vadd.f32 %v2571, %v2537
        %v2573 = vadd.f32 %v2572, %v2539
        %v2574 = vadd.f32 %v2573, %v2541
        %v2575 = vadd.f32 %v2574, %v2543
        %v2576 = vadd.f32 %v2575, %v2545
        %v2577 = vrot.slane %v2576, 4
        %v2578 = vadd.f32 %v2576, %v2577
        %v2579 = vrot.slane %v2578, 2
        %v2580 = vadd.f32 %v2578, %v2579
        %v2581 = vrot.slane %v2580, 1
        %v2582 = vadd.f32 %v2580, %v2581
        %v2583 = vrcp.pop %v2582
        %v2584 = vmul.f32 %v2483, %v2583
        %v2585 = vmul.f32 %v2485, %v2583
        %v2586 = vmul.f32 %v2487, %v2583
        %v2587 = vmul.f32 %v2489, %v2583
        %v2588 = vmul.f32 %v2491, %v2583
        %v2589 = vmul.f32 %v2493, %v2583
        %v2590 = vmul.f32 %v2495, %v2583
        %v2591 = vmul.f32 %v2497, %v2583
        %v2592 = vmul.f32 %v2499, %v2583
        %v2593 = vmul.f32 %v2501, %v2583
        %v2594 = vmul.f32 %v2503, %v2583
        %v2595 = vmul.f32 %v2505, %v2583
        %v2596 = vmul.f32 %v2507, %v2583
        %v2597 = vmul.f32 %v2509, %v2583
        %v2598 = vmul.f32 %v2511, %v2583
        %v2599 = vmul.f32 %v2513, %v2583
        %v2600 = vmul.f32 %v2515, %v2583
        %v2601 = vmul.f32 %v2517, %v2583
        %v2602 = vmul.f32 %v2519, %v2583
        %v2603 = vmul.f32 %v2521, %v2583
        %v2604 = vmul.f32 %v2523, %v2583
        %v2605 = vmul.f32 %v2525, %v2583
        %v2606 = vmul.f32 %v2527, %v2583
        %v2607 = vmul.f32 %v2529, %v2583
        %v2608 = vmul.f32 %v2531, %v2583
        %v2609 = vmul.f32 %v2533, %v2583
        %v2610 = vmul.f32 %v2535, %v2583
        %v2611 = vmul.f32 %v2537, %v2583
        %v2612 = vmul.f32 %v2539, %v2583
        %v2613 = vmul.f32 %v2541, %v2583
        %v2614 = vmul.f32 %v2543, %v2583
        %v2615 = vmul.f32 %v2545, %v2583
        %v2616 = vpack.c.bf16 %v2585, %v2584
        %v2617 = vpack.c.bf16 %v2587, %v2586
        %v2618 = vpack.c.bf16 %v2589, %v2588
        %v2619 = vpack.c.bf16 %v2591, %v2590
        %v2620 = vpack.c.bf16 %v2593, %v2592
        %v2621 = vpack.c.bf16 %v2595, %v2594
        %v2622 = vpack.c.bf16 %v2597, %v2596
        %v2623 = vpack.c.bf16 %v2599, %v2598
        %v2624 = vpack.c.bf16 %v2601, %v2600
        %v2625 = vpack.c.bf16 %v2603, %v2602
        %v2626 = vpack.c.bf16 %v2605, %v2604
        %v2627 = vpack.c.bf16 %v2607, %v2606
        %v2628 = vpack.c.bf16 %v2609, %v2608
        %v2629 = vpack.c.bf16 %v2611, %v2610
        %v2630 = vpack.c.bf16 %v2613, %v2612
        %v2631 = vpack.c.bf16 %v2615, %v2614
        %v2632 = vld [vmem:[#allocation3] sm:$0xff]
        %v2633 = vld [vmem:[#allocation3 + $0x8] sm:$0xff]
        %v2634 = vld [vmem:[#allocation3 + $0x10] sm:$0xff]
        %v2635 = vld [vmem:[#allocation3 + $0x18] sm:$0xff]
        %v2636 = vld [vmem:[#allocation3 + $0x20] sm:$0xff]
        %v2637 = vld [vmem:[#allocation3 + $0x28] sm:$0xff]
        %v2638 = vld [vmem:[#allocation3 + $0x30] sm:$0xff]
        %v2639 = vld [vmem:[#allocation3 + $0x38] sm:$0xff]
        %v2640 = vld [vmem:[#allocation3 + $0x40] sm:$0xff]
        %v2641 = vld [vmem:[#allocation3 + $0x48] sm:$0xff]
        %v2642 = vld [vmem:[#allocation3 + $0x50] sm:$0xff]
        %v2643 = vld [vmem:[#allocation3 + $0x58] sm:$0xff]
        %v2644 = vld [vmem:[#allocation3 + $0x60] sm:$0xff]
        %v2645 = vld [vmem:[#allocation3 + $0x68] sm:$0xff]
        %v2646 = vld [vmem:[#allocation3 + $0x70] sm:$0xff]
        %v2647 = vld [vmem:[#allocation3 + $0x78] sm:$0xff]
        %v2664 = vunpack.c.l.b16 %v2632
        %v2665 = vunpack.c.h.b16 %v2632
        %v2666 = vunpack.c.l.b16 %v2633
        %v2667 = vunpack.c.h.b16 %v2633
        %v2668 = vunpack.c.l.b16 %v2634
        %v2669 = vunpack.c.h.b16 %v2634
        %v2670 = vunpack.c.l.b16 %v2635
        %v2671 = vunpack.c.h.b16 %v2635
        %v2672 = vunpack.c.l.b16 %v2636
        %v2673 = vunpack.c.h.b16 %v2636
        %v2674 = vunpack.c.l.b16 %v2637
        %v2675 = vunpack.c.h.b16 %v2637
        %v2676 = vunpack.c.l.b16 %v2638
        %v2677 = vunpack.c.h.b16 %v2638
        %v2678 = vunpack.c.l.b16 %v2639
        %v2679 = vunpack.c.h.b16 %v2639
        %v2680 = vunpack.c.l.b16 %v2640
        %v2681 = vunpack.c.h.b16 %v2640
        %v2682 = vunpack.c.l.b16 %v2641
        %v2683 = vunpack.c.h.b16 %v2641
        %v2684 = vunpack.c.l.b16 %v2642
        %v2685 = vunpack.c.h.b16 %v2642
        %v2686 = vunpack.c.l.b16 %v2643
        %v2687 = vunpack.c.h.b16 %v2643
        %v2688 = vunpack.c.l.b16 %v2644
        %v2689 = vunpack.c.h.b16 %v2644
        %v2690 = vunpack.c.l.b16 %v2645
        %v2691 = vunpack.c.h.b16 %v2645
        %v2692 = vunpack.c.l.b16 %v2646
        %v2693 = vunpack.c.h.b16 %v2646
        %v2694 = vunpack.c.l.b16 %v2647
        %v2695 = vunpack.c.h.b16 %v2647
        %v2696 = vpack.c.b16 %v2666, %v2664
        %v2697 = vpack.c.b16 %v2667, %v2665
        %v2698 = vpack.c.b16 %v2670, %v2668
        %v2699 = vpack.c.b16 %v2671, %v2669
        %v2700 = vpack.c.b16 %v2674, %v2672
        %v2701 = vpack.c.b16 %v2675, %v2673
        %v2702 = vpack.c.b16 %v2678, %v2676
        %v2703 = vpack.c.b16 %v2679, %v2677
        %v2704 = vpack.c.b16 %v2682, %v2680
        %v2705 = vpack.c.b16 %v2683, %v2681
        %v2706 = vpack.c.b16 %v2686, %v2684
        %v2707 = vpack.c.b16 %v2687, %v2685
        %v2708 = vpack.c.b16 %v2690, %v2688
        %v2709 = vpack.c.b16 %v2691, %v2689
        %v2710 = vpack.c.b16 %v2694, %v2692
        %v2711 = vpack.c.b16 %v2695, %v2693
        %2728 = vmatpush.bf16.msra.mxu0 %v2623
        %2729 = vmatpush.bf16.msra.mxu0 %v2622
        %2730 = vmatpush.bf16.msra.mxu0 %v2621
        %2731 = vmatpush.bf16.msra.mxu0 %v2620
        %2732 = vmatpush.bf16.msra.mxu0 %v2619
        %2733 = vmatpush.bf16.msra.mxu0 %v2618
        %2734 = vmatpush.bf16.msra.mxu0 %v2617
        %2735 = vmatpush.bf16.msra.mxu0 %v2616
        %2736 = vmatmul.bf16.gmra.mxu0 %v2696
        %v2737 = vpop.f32.mrf.mxu0
        %v2738 = vadd.f32 0.0, %v2737
        %v2739 = vpop.f32.mrf.mxu0
        %v2740 = vadd.f32 0.0, %v2739
        %2741 = vmatmul.bf16.gmra.mxu0 %v2698
        %v2742 = vpop.f32.mrf.mxu0
        %v2743 = vadd.f32 0.0, %v2742
        %v2744 = vpop.f32.mrf.mxu0
        %v2745 = vadd.f32 0.0, %v2744
        %2746 = vmatmul.bf16.gmra.mxu0 %v2700
        %v2747 = vpop.f32.mrf.mxu0
        %v2748 = vadd.f32 0.0, %v2747
        %v2749 = vpop.f32.mrf.mxu0
        %v2750 = vadd.f32 0.0, %v2749
        %2751 = vmatmul.bf16.gmra.mxu0 %v2702
        %v2752 = vpop.f32.mrf.mxu0
        %v2753 = vadd.f32 0.0, %v2752
        %v2754 = vpop.f32.mrf.mxu0
        %v2755 = vadd.f32 0.0, %v2754
        %2756 = vmatmul.bf16.gmra.mxu0 %v2704
        %v2757 = vpop.f32.mrf.mxu0
        %v2758 = vadd.f32 0.0, %v2757
        %v2759 = vpop.f32.mrf.mxu0
        %v2760 = vadd.f32 0.0, %v2759
        %2761 = vmatmul.bf16.gmra.mxu0 %v2706
        %v2762 = vpop.f32.mrf.mxu0
        %v2763 = vadd.f32 0.0, %v2762
        %v2764 = vpop.f32.mrf.mxu0
        %v2765 = vadd.f32 0.0, %v2764
        %2766 = vmatmul.bf16.gmra.mxu0 %v2708
        %v2767 = vpop.f32.mrf.mxu0
        %v2768 = vadd.f32 0.0, %v2767
        %v2769 = vpop.f32.mrf.mxu0
        %v2770 = vadd.f32 0.0, %v2769
        %2771 = vmatmul.bf16.gmra.mxu0 %v2710
        %v2772 = vpop.f32.mrf.mxu0
        %v2773 = vadd.f32 0.0, %v2772
        %v2774 = vpop.f32.mrf.mxu0
        %v2775 = vadd.f32 0.0, %v2774
        %2776 = vdwg.mxu0
        %2777 = vmatpush.bf16.msra.mxu0 %v2631
        %2778 = vmatpush.bf16.msra.mxu0 %v2630
        %2779 = vmatpush.bf16.msra.mxu0 %v2629
        %2780 = vmatpush.bf16.msra.mxu0 %v2628
        %2781 = vmatpush.bf16.msra.mxu0 %v2627
        %2782 = vmatpush.bf16.msra.mxu0 %v2626
        %2783 = vmatpush.bf16.msra.mxu0 %v2625
        %2784 = vmatpush.bf16.msra.mxu0 %v2624
        %2785 = vmatmul.bf16.gmra.mxu0 %v2697
        %v2786 = vpop.f32.mrf.mxu0
        %v2787 = vadd.f32 %v2738, %v2786
        %v2788 = vpop.f32.mrf.mxu0
        %v2789 = vadd.f32 %v2740, %v2788
        %2790 = vmatmul.bf16.gmra.mxu0 %v2699
        %v2791 = vpop.f32.mrf.mxu0
        %v2792 = vadd.f32 %v2743, %v2791
        %v2793 = vpop.f32.mrf.mxu0
        %v2794 = vadd.f32 %v2745, %v2793
        %2795 = vmatmul.bf16.gmra.mxu0 %v2701
        %v2796 = vpop.f32.mrf.mxu0
        %v2797 = vadd.f32 %v2748, %v2796
        %v2798 = vpop.f32.mrf.mxu0
        %v2799 = vadd.f32 %v2750, %v2798
        %2800 = vmatmul.bf16.gmra.mxu0 %v2703
        %v2801 = vpop.f32.mrf.mxu0
        %v2802 = vadd.f32 %v2753, %v2801
        %v2803 = vpop.f32.mrf.mxu0
        %v2804 = vadd.f32 %v2755, %v2803
        %2805 = vmatmul.bf16.gmra.mxu0 %v2705
        %v2806 = vpop.f32.mrf.mxu0
        %v2807 = vadd.f32 %v2758, %v2806
        %v2808 = vpop.f32.mrf.mxu0
        %v2809 = vadd.f32 %v2760, %v2808
        %2810 = vmatmul.bf16.gmra.mxu0 %v2707
        %v2811 = vpop.f32.mrf.mxu0
        %v2812 = vadd.f32 %v2763, %v2811
        %v2813 = vpop.f32.mrf.mxu0
        %v2814 = vadd.f32 %v2765, %v2813
        %2815 = vmatmul.bf16.gmra.mxu0 %v2709
        %v2816 = vpop.f32.mrf.mxu0
        %v2817 = vadd.f32 %v2768, %v2816
        %v2818 = vpop.f32.mrf.mxu0
        %v2819 = vadd.f32 %v2770, %v2818
        %2820 = vmatmul.bf16.gmra.mxu0 %v2711
        %v2821 = vpop.f32.mrf.mxu0
        %v2822 = vadd.f32 %v2773, %v2821
        %v2823 = vpop.f32.mrf.mxu0
        %v2824 = vadd.f32 %v2775, %v2823
        %2825 = vdwg.mxu0
        %v2826 = vpack.c.bf16 %v2789, %v2787
        %v2827 = vpack.c.bf16 %v2794, %v2792
        %v2828 = vpack.c.bf16 %v2799, %v2797
        %v2829 = vpack.c.bf16 %v2804, %v2802
        %v2830 = vpack.c.bf16 %v2809, %v2807
        %v2831 = vpack.c.bf16 %v2814, %v2812
        %v2832 = vpack.c.bf16 %v2819, %v2817
        %v2833 = vpack.c.bf16 %v2824, %v2822
        %v2834 = vld [vmem:[%s11] sm:$0xf]
        %v2835 = vld [vmem:[%s11 + $0x4] sm:$0xf]
        %v2836 = vld [vmem:[%s11 + $0x8] sm:$0xf]
        %v2837 = vld [vmem:[%s11 + $0xc] sm:$0xf]
        %v2838 = vld [vmem:[%s11 + $0x10] sm:$0xf]
        %v2839 = vld [vmem:[%s11 + $0x14] sm:$0xf]
        %v2840 = vld [vmem:[%s11 + $0x18] sm:$0xf]
        %v2841 = vld [vmem:[%s11 + $0x1c] sm:$0xf]
        %v2842 = vld [vmem:[%s11 + $0x20] sm:$0xf]
        %v2843 = vld [vmem:[%s11 + $0x24] sm:$0xf]
        %v2844 = vld [vmem:[%s11 + $0x28] sm:$0xf]
        %v2845 = vld [vmem:[%s11 + $0x2c] sm:$0xf]
        %v2846 = vld [vmem:[%s11 + $0x30] sm:$0xf]
        %v2847 = vld [vmem:[%s11 + $0x34] sm:$0xf]
        %v2848 = vld [vmem:[%s11 + $0x38] sm:$0xf]
        %v2849 = vld [vmem:[%s11 + $0x3c] sm:$0xf]
        %v2850 = vld [vmem:[%s12] sm:$0xff]
        %v2851 = vld [vmem:[%s12 + $0x8] sm:$0xff]
        %v2852 = vld [vmem:[%s12 + $0x10] sm:$0xff]
        %v2853 = vld [vmem:[%s12 + $0x18] sm:$0xff]
        %v2854 = vld [vmem:[%s12 + $0x20] sm:$0xff]
        %v2855 = vld [vmem:[%s12 + $0x28] sm:$0xff]
        %v2856 = vld [vmem:[%s12 + $0x30] sm:$0xff]
        %v2857 = vld [vmem:[%s12 + $0x38] sm:$0xff]
        %v2858 = vld [vmem:[%s12 + $0x40] sm:$0xff]
        %v2859 = vld [vmem:[%s12 + $0x48] sm:$0xff]
        %v2860 = vld [vmem:[%s12 + $0x50] sm:$0xff]
        %v2861 = vld [vmem:[%s12 + $0x58] sm:$0xff]
        %v2862 = vld [vmem:[%s12 + $0x60] sm:$0xff]
        %v2863 = vld [vmem:[%s12 + $0x68] sm:$0xff]
        %v2864 = vld [vmem:[%s12 + $0x70] sm:$0xff]
        %v2865 = vld [vmem:[%s12 + $0x78] sm:$0xff]
        %2867 = vset.pattern.permute.xlu0 0
        %2868 = vperm.xlu0 %2867, %v2850
        %v2869 = vpop.permute.xlu0 %2868
        %2872 = vset.pattern.permute.xlu0 0
        %2873 = vperm.xlu0 %2872, %v2851
        %v2874 = vpop.permute.xlu0 %2873
        %2877 = vset.pattern.permute.xlu0 0
        %2878 = vperm.xlu0 %2877, %v2852
        %v2879 = vpop.permute.xlu0 %2878
        %2882 = vset.pattern.permute.xlu0 0
        %2883 = vperm.xlu0 %2882, %v2853
        %v2884 = vpop.permute.xlu0 %2883
        %2887 = vset.pattern.permute.xlu0 0
        %2888 = vperm.xlu0 %2887, %v2854
        %v2889 = vpop.permute.xlu0 %2888
        %2892 = vset.pattern.permute.xlu0 0
        %2893 = vperm.xlu0 %2892, %v2855
        %v2894 = vpop.permute.xlu0 %2893
        %2897 = vset.pattern.permute.xlu0 0
        %2898 = vperm.xlu0 %2897, %v2856
        %v2899 = vpop.permute.xlu0 %2898
        %2902 = vset.pattern.permute.xlu0 0
        %2903 = vperm.xlu0 %2902, %v2857
        %v2904 = vpop.permute.xlu0 %2903
        %2907 = vset.pattern.permute.xlu0 0
        %2908 = vperm.xlu0 %2907, %v2858
        %v2909 = vpop.permute.xlu0 %2908
        %2912 = vset.pattern.permute.xlu0 0
        %2913 = vperm.xlu0 %2912, %v2859
        %v2914 = vpop.permute.xlu0 %2913
        %2917 = vset.pattern.permute.xlu0 0
        %2918 = vperm.xlu0 %2917, %v2860
        %v2919 = vpop.permute.xlu0 %2918
        %2922 = vset.pattern.permute.xlu0 0
        %2923 = vperm.xlu0 %2922, %v2861
        %v2924 = vpop.permute.xlu0 %2923
        %2927 = vset.pattern.permute.xlu0 0
        %2928 = vperm.xlu0 %2927, %v2862
        %v2929 = vpop.permute.xlu0 %2928
        %2932 = vset.pattern.permute.xlu0 0
        %2933 = vperm.xlu0 %2932, %v2863
        %v2934 = vpop.permute.xlu0 %2933
        %2937 = vset.pattern.permute.xlu0 0
        %2938 = vperm.xlu0 %2937, %v2864
        %v2939 = vpop.permute.xlu0 %2938
        %2942 = vset.pattern.permute.xlu0 0
        %2943 = vperm.xlu0 %2942, %v2865
        %v2944 = vpop.permute.xlu0 %2943
        %v2962 = vunpack.c.l.b16 %v2834
        %v2963 = vunpack.c.l.b16 %v2835
        %v2964 = vunpack.c.l.b16 %v2836
        %v2965 = vunpack.c.l.b16 %v2837
        %v2966 = vunpack.c.l.b16 %v2838
        %v2967 = vunpack.c.l.b16 %v2839
        %v2968 = vunpack.c.l.b16 %v2840
        %v2969 = vunpack.c.l.b16 %v2841
        %v2970 = vunpack.c.l.b16 %v2842
        %v2971 = vunpack.c.l.b16 %v2843
        %v2972 = vunpack.c.l.b16 %v2844
        %v2973 = vunpack.c.l.b16 %v2845
        %v2974 = vunpack.c.l.b16 %v2846
        %v2975 = vunpack.c.l.b16 %v2847
        %v2976 = vunpack.c.l.b16 %v2848
        %v2977 = vunpack.c.l.b16 %v2849
        %v2978 = vpack.c.b16 %v2963, %v2962
        %v2979 = vpack.c.b16 %v2965, %v2964
        %v2980 = vpack.c.b16 %v2967, %v2966
        %v2981 = vpack.c.b16 %v2969, %v2968
        %v2982 = vpack.c.b16 %v2971, %v2970
        %v2983 = vpack.c.b16 %v2973, %v2972
        %v2984 = vpack.c.b16 %v2975, %v2974
        %v2985 = vpack.c.b16 %v2977, %v2976
        %2994 = vmatpush.bf16.msra.mxu0 %v2833
        %2995 = vmatpush.bf16.msra.mxu0 %v2832
        %2996 = vmatpush.bf16.msra.mxu0 %v2831
        %2997 = vmatpush.bf16.msra.mxu0 %v2830
        %2998 = vmatpush.bf16.msra.mxu0 %v2829
        %2999 = vmatpush.bf16.msra.mxu0 %v2828
        %3000 = vmatpush.bf16.msra.mxu0 %v2827
        %3001 = vmatpush.bf16.msra.mxu0 %v2826
        %3002 = vmatmul.bf16.gmra.mxu0 %v2978
        %v3003 = vpop.f32.mrf.mxu0
        %v3004 = vadd.f32 %v2869, %v3003
        %v3005 = vpop.f32.mrf.mxu0
        %v3006 = vadd.f32 %v2874, %v3005
        %3007 = vmatmul.bf16.gmra.mxu0 %v2979
        %v3008 = vpop.f32.mrf.mxu0
        %v3009 = vadd.f32 %v2879, %v3008
        %v3010 = vpop.f32.mrf.mxu0
        %v3011 = vadd.f32 %v2884, %v3010
        %3012 = vmatmul.bf16.gmra.mxu0 %v2980
        %v3013 = vpop.f32.mrf.mxu0
        %v3014 = vadd.f32 %v2889, %v3013
        %v3015 = vpop.f32.mrf.mxu0
        %v3016 = vadd.f32 %v2894, %v3015
        %3017 = vmatmul.bf16.gmra.mxu0 %v2981
        %v3018 = vpop.f32.mrf.mxu0
        %v3019 = vadd.f32 %v2899, %v3018
        %v3020 = vpop.f32.mrf.mxu0
        %v3021 = vadd.f32 %v2904, %v3020
        %3022 = vmatmul.bf16.gmra.mxu0 %v2982
        %v3023 = vpop.f32.mrf.mxu0
        %v3024 = vadd.f32 %v2909, %v3023
        %v3025 = vpop.f32.mrf.mxu0
        %v3026 = vadd.f32 %v2914, %v3025
        %3027 = vmatmul.bf16.gmra.mxu0 %v2983
        %v3028 = vpop.f32.mrf.mxu0
        %v3029 = vadd.f32 %v2919, %v3028
        %v3030 = vpop.f32.mrf.mxu0
        %v3031 = vadd.f32 %v2924, %v3030
        %3032 = vmatmul.bf16.gmra.mxu0 %v2984
        %v3033 = vpop.f32.mrf.mxu0
        %v3034 = vadd.f32 %v2929, %v3033
        %v3035 = vpop.f32.mrf.mxu0
        %v3036 = vadd.f32 %v2934, %v3035
        %3037 = vmatmul.bf16.gmra.mxu0 %v2985
        %v3038 = vpop.f32.mrf.mxu0
        %v3039 = vadd.f32 %v2939, %v3038
        %v3040 = vpop.f32.mrf.mxu0
        %v3041 = vadd.f32 %v2944, %v3040
        %3042 = vdwg.mxu0
        %v3043 = vadd.f32 %v1731, %v3004
        %v3044 = vadd.f32 %v1732, %v3006
        %v3045 = vadd.f32 %v1733, %v3009
        %v3046 = vadd.f32 %v1734, %v3011
        %v3047 = vadd.f32 %v1735, %v3014
        %v3048 = vadd.f32 %v1736, %v3016
        %v3049 = vadd.f32 %v1737, %v3019
        %v3050 = vadd.f32 %v1738, %v3021
        %v3051 = vadd.f32 %v1739, %v3024
        %v3052 = vadd.f32 %v1740, %v3026
        %v3053 = vadd.f32 %v1741, %v3029
        %v3054 = vadd.f32 %v1742, %v3031
        %v3055 = vadd.f32 %v1743, %v3034
        %v3056 = vadd.f32 %v1744, %v3036
        %v3057 = vadd.f32 %v1745, %v3039
        %v3058 = vadd.f32 %v1746, %v3041
        %3059 = vst [vmem:[%s474] sm:$0xff] %v3043
        %3060 = vst [vmem:[%s474 + $0x8] sm:$0xff] %v3044
        %3061 = vst [vmem:[%s474 + $0x10] sm:$0xff] %v3045
        %3062 = vst [vmem:[%s474 + $0x18] sm:$0xff] %v3046
        %3063 = vst [vmem:[%s474 + $0x20] sm:$0xff] %v3047
        %3064 = vst [vmem:[%s474 + $0x28] sm:$0xff] %v3048
        %3065 = vst [vmem:[%s474 + $0x30] sm:$0xff] %v3049
        %3066 = vst [vmem:[%s474 + $0x38] sm:$0xff] %v3050
        %3067 = vst [vmem:[%s474 + $0x40] sm:$0xff] %v3051
        %3068 = vst [vmem:[%s474 + $0x48] sm:$0xff] %v3052
        %3069 = vst [vmem:[%s474 + $0x50] sm:$0xff] %v3053
        %3070 = vst [vmem:[%s474 + $0x58] sm:$0xff] %v3054
        %3071 = vst [vmem:[%s474 + $0x60] sm:$0xff] %v3055
        %3072 = vst [vmem:[%s474 + $0x68] sm:$0xff] %v3056
        %3073 = vst [vmem:[%s474 + $0x70] sm:$0xff] %v3057
        %3074 = vst [vmem:[%s474 + $0x78] sm:$0xff] %v3058
        %s3075 = sand.u32 %s330, 1
        %s3076 = scalar_lea.sflag [#allocation8], %s3075
        %s3077 = sand.u32 %s330, 1
        %s3078 = smul.addr %s3077, 128
        %s3079 = scalar_lea.vmem [#allocation9], %s3078
        // Predicated region
        $region81: #{tpu_custom_call.1} parent=71 // pred_check
          %p3080 = pneg %p340
        $region82: #{tpu_custom_call.1} parent=71 // pred_check_branch
          %3082 = sbr.rel (%p3080) target = $region84
        $region83: #{tpu_custom_call.1} parent=71 // pred_region
          %3084 = vsyncadd %s3076, 0
          %s3085 = smul.addr %s34, 32
          %s3086 = sadd.s32 %s35, %s3085
          %s3087 = smul.addr %s3086, 8
          %s3088 = scalar_lea.hbm %s13, %s3087
          %s3089 = sshll.u32 %s3079, 4
          %s3090 = int_to_ptr.vmem [resolvable:$true] %s3089
          %s3091 = sshll.u32 %s3088, 4
          %s3092 = int_to_ptr.hbm [resolvable:$true] %s3091
          %3097 = dma.vmem_to_hbm [thread:$0]  %s3090, 2048, %s3092, %s3076, 128, 256, 8
        $region84: #{tpu_custom_call.1} parent=71 // pred_fallthru
          _
      $region72: #{tpu_custom_call.1} parent=5 // pred_fallthru
        _
      %p3098 = scmp.le.s32.totalorder 2, %s25
      // Predicated region
      $region85: #{tpu_custom_call.1} parent=5 // pred_check
        %p3099 = pneg %p3098
      $region86: #{tpu_custom_call.1} parent=5 // pred_check_branch
        %3101 = sbr.rel (%p3099) target = $region88
      $region87: #{tpu_custom_call.1} parent=5 // pred_region
        %s3102 = ssub.s32 %s25, 2
        // Predicated region
        $region89: #{tpu_custom_call.1} parent=87 // pred_check
          %p3103 = pneg %p346
        $region90: #{tpu_custom_call.1} parent=87 // pred_check_branch
          %3105 = sbr.rel (%p3103) target = $region92
        $region91: #{tpu_custom_call.1} parent=87 // pred_region
          %s3106 = sand.u32 %s331, 1
          %s3107 = scalar_lea.sflag [#allocation8], %s3106
          %s3108 = sand.u32 %s331, 1
          %s3109 = smul.addr %s3108, 128
          %s3110 = scalar_lea.vmem [#allocation9], %s3109
          %3112 = dma.done %s3107, 2048
        $region92: #{tpu_custom_call.1} parent=87 // pred_fallthru
          _
      $region88: #{tpu_custom_call.1} parent=5 // pred_fallthru
        _
    $region6: #{tpu_custom_call.1} parent=1 // loop_footer
      %s29 = sadd.s32 1, %s25
    $region7: #{tpu_custom_call.1} parent=1 // loop_footer_branch
      %24 = sbr.rel target = $region3
    $region8: #{tpu_custom_call.1} parent=1 // loop_exit
      _
    %3113 = vsyncpa [#allocation7], 1
    %s3114 = scalar_lea.sflag [#allocation7], 1
    %3115 = vsyncpa %s3114, 1
    %3116 = vsyncpa [#allocation8], 1
    %s3117 = scalar_lea.sflag [#allocation8], 1
    %3118 = vsyncpa %s3117, 1

// kernel: tpu_custom_call.1
$region0: #{tpu_custom_call.1}
  #allocation0 [shape = 'u32[]', space=smem, size = 0x4, offset = 0x4, fixed_abs, tag = 'smem constant byte address 0x4 - core index']
  #allocation1 [shape = 'u32[72,128]{1,0:T(1,128)}', space=vmem, size = 0x9000, scoped, tag = 'internal scratch']
  #allocation2 [shape = 'bf16[256,128]{1,0:T(8,128)(2,1)}', space=vmem, size = 0x10000, scoped, tag = 'scratch operand']
  #allocation3 [shape = 'bf16[128,256]{1,0:T(8,128)(2,1)}', space=vmem, size = 0x10000, scoped, tag = 'scratch operand']
  #allocation4 [shape = 'f32[128,1]{1,0:T(8,128)}', space=vmem, size = 0x10000, scoped, tag = 'scratch operand']
  #allocation5 [shape = 'f32[128,1]{1,0:T(8,128)}', space=vmem, size = 0x10000, scoped, tag = 'scratch operand']
  %s0 = inlined_call_operand.hbm [shape: f32[2,128,256], index: 0, kind: input, shape index: {}]
  %s1 = inlined_call_operand.vmem [shape: f32[128,1], index: 1, kind: input, shape index: {}]
  %s2 = inlined_call_operand.vmem [shape: f32[128,1], index: 2, kind: input, shape index: {}]
  %s3 = inlined_call_operand.vmem [shape: f32[1,128], index: 3, kind: input, shape index: {}]
  %s4 = inlined_call_operand.vmem [shape: f32[128,1], index: 4, kind: input, shape index: {}]
  %s5 = inlined_call_operand.vmem [shape: bf16[128,128], index: 5, kind: input, shape index: {}]
  %s6 = inlined_call_operand.vmem [shape: f32[128,1], index: 6, kind: input, shape index: {}]
  %s7 = inlined_call_operand.vmem [shape: bf16[128,128], index: 7, kind: input, shape index: {}]
  %s8 = inlined_call_operand.vmem [shape: f32[128,1], index: 8, kind: input, shape index: {}]
  %s9 = inlined_call_operand.vmem [shape: bf16[128,128], index: 9, kind: input, shape index: {}]
  %s10 = inlined_call_operand.vmem [shape: f32[128,1], index: 10, kind: input, shape index: {}]
  %s11 = inlined_call_operand.vmem [shape: bf16[128,128], index: 11, kind: input, shape index: {}]
  %s12 = inlined_call_operand.vmem [shape: f32[128,1], index: 12, kind: input, shape index: {}]
  %s13 = inlined_call_operand.hbm [shape: f32[2,128,256], index: 13, kind: output, shape index: {}]
  %s14 = sld [smem:[#allocation0]]
  $region93: #{tpu_custom_call.1} parent=0
    _
  %s16 = ssub.s32 1, %s14
  %s17 = scalar_select 0, %s16, %s14
  $region1: #{tpu_custom_call.1} parent=0
    #allocation6 [shape = 'u8[262144]{0}', space=vmem, size = 0x40000, scoped, tag = 'input window, operand 0']
    #allocation7 [shape = 's32[2]{0}', space=sflag, size = 0x8, scoped, tag = 'scoped memory for tpu_custom_call.1']
    #allocation8 [shape = 's32[2]{0}', space=sflag, size = 0x8, scoped, tag = 'scoped memory for tpu_custom_call.1']
    #allocation9 [shape = 'u8[131072]{0}', space=vmem, size = 0x20000, scoped, tag = 'output window, operand 0']
    %18 = vsyncpa [#allocation7], 0
    %s19 = scalar_lea.sflag [#allocation7], 1
    %20 = vsyncpa %s19, 0
    %21 = vsyncpa [#allocation8], 0
    %s22 = scalar_lea.sflag [#allocation8], 1
    %23 = vsyncpa %s22, 0
    loop: start=0, step=1, limit=6
    $region2: #{tpu_custom_call.1} parent=1 // loop_pre_header
      _
    $region3: #{tpu_custom_call.1} parent=1 // loop_header
      %s25 = sphi 0, %s29
      %p26 = scmp.ge.s32.totalorder %s25, 6
      %s32 = sphi 0, %s44
      %s33 = sphi 0, %s40
      %s34 = sphi 0, %s32
      %s35 = sphi 0, %s33
      %s36 = sphi 0, %s34
      %s37 = sphi 0, %s35
      %s47 = sphi 0, %s49
      %s50 = sphi 0, %s47
      %s51 = sphi 0, %s50
      %s67 = sphi 0, %s51
      %s71 = sphi 0, %s71
      %s73 = sphi 0, %s71
      %s74 = sphi 0, %s73
      %s88 = sphi 0, %s74
      %s92 = sphi 0, %s92
      %s94 = sphi 0, %s92
      %s95 = sphi 0, %s94
      %s109 = sphi 0, %s95
      %s113 = sphi 0, %s113
      %s115 = sphi 0, %s113
      %s116 = sphi 0, %s115
      %s130 = sphi 0, %s116
      %s134 = sphi 0, %s134
      %s136 = sphi 0, %s134
      %s137 = sphi 0, %s136
      %s151 = sphi 0, %s137
      %s155 = sphi 0, %s155
      %s157 = sphi 0, %s155
      %s158 = sphi 0, %s157
      %s172 = sphi 0, %s158
      %s176 = sphi 0, %s176
      %s178 = sphi 0, %s176
      %s179 = sphi 0, %s178
      %s193 = sphi 0, %s179
      %s197 = sphi 0, %s197
      %s199 = sphi 0, %s197
      %s200 = sphi 0, %s199
      %s214 = sphi 0, %s200
      %s218 = sphi 0, %s218
      %s220 = sphi 0, %s218
      %s221 = sphi 0, %s220
      %s235 = sphi 0, %s221
      %s239 = sphi 0, %s239
      %s241 = sphi 0, %s239
      %s242 = sphi 0, %s241
      %s256 = sphi 0, %s242
      %s260 = sphi 0, %s260
      %s262 = sphi 0, %s260
      %s263 = sphi 0, %s262
      %s277 = sphi 0, %s263
      %s281 = sphi 0, %s281
      %s283 = sphi 0, %s281
      %s284 = sphi 0, %s283
      %s298 = sphi 0, %s284
      %s302 = sphi 0, %s302
      %s304 = sphi 0, %s302
      %s305 = sphi 0, %s304
      %s319 = sphi 0, %s305
      %s327 = sphi 0, %s329
      %s330 = sphi 0, %s327
      %s331 = sphi 0, %s330
      %s347 = sphi 0, %s331
    $region4: #{tpu_custom_call.1} parent=1 // loop_header_branch
      %28 = sbr.rel (%p26) target = $region8
    $region5: #{tpu_custom_call.1} parent=1 // loop_body
      %s30 = ssub.s32 %s25, 1
      %s31 = ssub.s32 %s25, 2
      %s38 = sadd.s32 1, %s33
      %p39 = scmp.ge.s32.totalorder %s38, 2
      %s40 = scalar_select %p39, 0, %s38
      %s41 = sadd.s32 1, %s32
      %s42 = scalar_select %p39, %s41, %s32
      %p43 = scmp.ge.s32.totalorder %s42, 2
      %s44 = scalar_select %p43, 0, %s42
      %s45 = ssub.s32 %s32, %s44
      %p46 = scmp.eq.s32.totalorder %s45, 0
      %s48 = sadd.s32 %s47, 1
      %s49 = scalar_select %p46, %s47, %s48
      %p52 = pneg %p46
      %p53 = scmp.eq.s32.totalorder %s25, 3
      %p54 = por %p52, %p53
      %p55 = scmp.ne.s32.totalorder %s47, %s50
      %p56 = scmp.eq.s32.totalorder %s25, 0
      %p57 = por %p55, %p56
      %p58 = scmp.ne.s32.totalorder %s47, %s50
      %p59 = scmp.eq.s32.totalorder %s30, 3
      %p60 = por %p58, %p59
      %p61 = scmp.ne.s32.totalorder %s50, %s51
      %p62 = scmp.eq.s32.totalorder %s30, 0
      %p63 = por %p61, %p62
      %p64 = scmp.ne.s32.totalorder %s50, %s51
      %p65 = scmp.eq.s32.totalorder %s31, 3
      %p66 = por %p64, %p65
      %p68 = scmp.ne.s32.totalorder %s51, %s67
      %p69 = scmp.eq.s32.totalorder %s31, 0
      %p70 = por %p68, %p69
      %s72 = sadd.s32 %s71, 1
      %p75 = scmp.eq.s32.totalorder %s25, 3
      %p76 = scmp.ne.s32.totalorder %s71, %s73
      %p77 = scmp.eq.s32.totalorder %s25, 0
      %p78 = por %p76, %p77
      %p79 = scmp.ne.s32.totalorder %s71, %s73
      %p80 = scmp.eq.s32.totalorder %s30, 3
      %p81 = por %p79, %p80
      %p82 = scmp.ne.s32.totalorder %s73, %s74
      %p83 = scmp.eq.s32.totalorder %s30, 0
      %p84 = por %p82, %p83
      %p85 = scmp.ne.s32.totalorder %s73, %s74
      %p86 = scmp.eq.s32.totalorder %s31, 3
      %p87 = por %p85, %p86
      %p89 = scmp.ne.s32.totalorder %s74, %s88
      %p90 = scmp.eq.s32.totalorder %s31, 0
      %p91 = por %p89, %p90
      %s93 = sadd.s32 %s92, 1
      %p96 = scmp.eq.s32.totalorder %s25, 3
      %p97 = scmp.ne.s32.totalorder %s92, %s94
      %p98 = scmp.eq.s32.totalorder %s25, 0
      %p99 = por %p97, %p98
      %p100 = scmp.ne.s32.totalorder %s92, %s94
      %p101 = scmp.eq.s32.totalorder %s30, 3
      %p102 = por %p100, %p101
      %p103 = scmp.ne.s32.totalorder %s94, %s95
      %p104 = scmp.eq.s32.totalorder %s30, 0
      %p105 = por %p103, %p104
      %p106 = scmp.ne.s32.totalorder %s94, %s95
      %p107 = scmp.eq.s32.totalorder %s31, 3
      %p108 = por %p106, %p107
      %p110 = scmp.ne.s32.totalorder %s95, %s109
      %p111 = scmp.eq.s32.totalorder %s31, 0
      %p112 = por %p110, %p111
      %s114 = sadd.s32 %s113, 1
      %p117 = scmp.eq.s32.totalorder %s25, 3
      %p118 = scmp.ne.s32.totalorder %s113, %s115
      %p119 = scmp.eq.s32.totalorder %s25, 0
      %p120 = por %p118, %p119
      %p121 = scmp.ne.s32.totalorder %s113, %s115
      %p122 = scmp.eq.s32.totalorder %s30, 3
      %p123 = por %p121, %p122
      %p124 = scmp.ne.s32.totalorder %s115, %s116
      %p125 = scmp.eq.s32.totalorder %s30, 0
      %p126 = por %p124, %p125
      %p127 = scmp.ne.s32.totalorder %s115, %s116
      %p128 = scmp.eq.s32.totalorder %s31, 3
      %p129 = por %p127, %p128
      %p131 = scmp.ne.s32.totalorder %s116, %s130
      %p132 = scmp.eq.s32.totalorder %s31, 0
      %p133 = por %p131, %p132
      %s135 = sadd.s32 %s134, 1
      %p138 = scmp.eq.s32.totalorder %s25, 3
      %p139 = scmp.ne.s32.totalorder %s134, %s136
      %p140 = scmp.eq.s32.totalorder %s25, 0
      %p141 = por %p139, %p140
      %p142 = scmp.ne.s32.totalorder %s134, %s136
      %p143 = scmp.eq.s32.totalorder %s30, 3
      %p144 = por %p142, %p143
      %p145 = scmp.ne.s32.totalorder %s136, %s137
      %p146 = scmp.eq.s32.totalorder %s30, 0
      %p147 = por %p145, %p146
      %p148 = scmp.ne.s32.totalorder %s136, %s137
      %p149 = scmp.eq.s32.totalorder %s31, 3
      %p150 = por %p148, %p149
      %p152 = scmp.ne.s32.totalorder %s137, %s151
      %p153 = scmp.eq.s32.totalorder %s31, 0
      %p154 = por %p152, %p153
      %s156 = sadd.s32 %s155, 1
      %p159 = scmp.eq.s32.totalorder %s25, 3
      %p160 = scmp.ne.s32.totalorder %s155, %s157
      %p161 = scmp.eq.s32.totalorder %s25, 0
      %p162 = por %p160, %p161
      %p163 = scmp.ne.s32.totalorder %s155, %s157
      %p164 = scmp.eq.s32.totalorder %s30, 3
      %p165 = por %p163, %p164
      %p166 = scmp.ne.s32.totalorder %s157, %s158
      %p167 = scmp.eq.s32.totalorder %s30, 0
      %p168 = por %p166, %p167
      %p169 = scmp.ne.s32.totalorder %s157, %s158
      %p170 = scmp.eq.s32.totalorder %s31, 3
      %p171 = por %p169, %p170
      %p173 = scmp.ne.s32.totalorder %s158, %s172
      %p174 = scmp.eq.s32.totalorder %s31, 0
      %p175 = por %p173, %p174
      %s177 = sadd.s32 %s176, 1
      %p180 = scmp.eq.s32.totalorder %s25, 3
      %p181 = scmp.ne.s32.totalorder %s176, %s178
      %p182 = scmp.eq.s32.totalorder %s25, 0
      %p183 = por %p181, %p182
      %p184 = scmp.ne.s32.totalorder %s176, %s178
      %p185 = scmp.eq.s32.totalorder %s30, 3
      %p186 = por %p184, %p185
      %p187 = scmp.ne.s32.totalorder %s178, %s179
      %p188 = scmp.eq.s32.totalorder %s30, 0
      %p189 = por %p187, %p188
      %p190 = scmp.ne.s32.totalorder %s178, %s179
      %p191 = scmp.eq.s32.totalorder %s31, 3
      %p192 = por %p190, %p191
      %p194 = scmp.ne.s32.totalorder %s179, %s193
      %p195 = scmp.eq.s32.totalorder %s31, 0
      %p196 = por %p194, %p195
      %s198 = sadd.s32 %s197, 1
      %p201 = scmp.eq.s32.totalorder %s25, 3
      %p202 = scmp.ne.s32.totalorder %s197, %s199
      %p203 = scmp.eq.s32.totalorder %s25, 0
      %p204 = por %p202, %p203
      %p205 = scmp.ne.s32.totalorder %s197, %s199
      %p206 = scmp.eq.s32.totalorder %s30, 3
      %p207 = por %p205, %p206
      %p208 = scmp.ne.s32.totalorder %s199, %s200
      %p209 = scmp.eq.s32.totalorder %s30, 0
      %p210 = por %p208, %p209
      %p211 = scmp.ne.s32.totalorder %s199, %s200
      %p212 = scmp.eq.s32.totalorder %s31, 3
      %p213 = por %p211, %p212
      %p215 = scmp.ne.s32.totalorder %s200, %s214
      %p216 = scmp.eq.s32.totalorder %s31, 0
      %p217 = por %p215, %p216
      %s219 = sadd.s32 %s218, 1
      %p222 = scmp.eq.s32.totalorder %s25, 3
      %p223 = scmp.ne.s32.totalorder %s218, %s220
      %p224 = scmp.eq.s32.totalorder %s25, 0
      %p225 = por %p223, %p224
      %p226 = scmp.ne.s32.totalorder %s218, %s220
      %p227 = scmp.eq.s32.totalorder %s30, 3
      %p228 = por %p226, %p227
      %p229 = scmp.ne.s32.totalorder %s220, %s221
      %p230 = scmp.eq.s32.totalorder %s30, 0
      %p231 = por %p229, %p230
      %p232 = scmp.ne.s32.totalorder %s220, %s221
      %p233 = scmp.eq.s32.totalorder %s31, 3
      %p234 = por %p232, %p233
      %p236 = scmp.ne.s32.totalorder %s221, %s235
      %p237 = scmp.eq.s32.totalorder %s31, 0
      %p238 = por %p236, %p237
      %s240 = sadd.s32 %s239, 1
      %p243 = scmp.eq.s32.totalorder %s25, 3
      %p244 = scmp.ne.s32.totalorder %s239, %s241
      %p245 = scmp.eq.s32.totalorder %s25, 0
      %p246 = por %p244, %p245
      %p247 = scmp.ne.s32.totalorder %s239, %s241
      %p248 = scmp.eq.s32.totalorder %s30, 3
      %p249 = por %p247, %p248
      %p250 = scmp.ne.s32.totalorder %s241, %s242
      %p251 = scmp.eq.s32.totalorder %s30, 0
      %p252 = por %p250, %p251
      %p253 = scmp.ne.s32.totalorder %s241, %s242
      %p254 = scmp.eq.s32.totalorder %s31, 3
      %p255 = por %p253, %p254
      %p257 = scmp.ne.s32.totalorder %s242, %s256
      %p258 = scmp.eq.s32.totalorder %s31, 0
      %p259 = por %p257, %p258
      %s261 = sadd.s32 %s260, 1
      %p264 = scmp.eq.s32.totalorder %s25, 3
      %p265 = scmp.ne.s32.totalorder %s260, %s262
      %p266 = scmp.eq.s32.totalorder %s25, 0
      %p267 = por %p265, %p266
      %p268 = scmp.ne.s32.totalorder %s260, %s262
      %p269 = scmp.eq.s32.totalorder %s30, 3
      %p270 = por %p268, %p269
      %p271 = scmp.ne.s32.totalorder %s262, %s263
      %p272 = scmp.eq.s32.totalorder %s30, 0
      %p273 = por %p271, %p272
      %p274 = scmp.ne.s32.totalorder %s262, %s263
      %p275 = scmp.eq.s32.totalorder %s31, 3
      %p276 = por %p274, %p275
      %p278 = scmp.ne.s32.totalorder %s263, %s277
      %p279 = scmp.eq.s32.totalorder %s31, 0
      %p280 = por %p278, %p279
      %s282 = sadd.s32 %s281, 1
      %p285 = scmp.eq.s32.totalorder %s25, 3
      %p286 = scmp.ne.s32.totalorder %s281, %s283
      %p287 = scmp.eq.s32.totalorder %s25, 0
      %p288 = por %p286, %p287
      %p289 = scmp.ne.s32.totalorder %s281, %s283
      %p290 = scmp.eq.s32.totalorder %s30, 3
      %p291 = por %p289, %p290
      %p292 = scmp.ne.s32.totalorder %s283, %s284
      %p293 = scmp.eq.s32.totalorder %s30, 0
      %p294 = por %p292, %p293
      %p295 = scmp.ne.s32.totalorder %s283, %s284
      %p296 = scmp.eq.s32.totalorder %s31, 3
      %p297 = por %p295, %p296
      %p299 = scmp.ne.s32.totalorder %s284, %s298
      %p300 = scmp.eq.s32.totalorder %s31, 0
      %p301 = por %p299, %p300
      %s303 = sadd.s32 %s302, 1
      %p306 = scmp.eq.s32.totalorder %s25, 3
      %p307 = scmp.ne.s32.totalorder %s302, %s304
      %p308 = scmp.eq.s32.totalorder %s25, 0
      %p309 = por %p307, %p308
      %p310 = scmp.ne.s32.totalorder %s302, %s304
      %p311 = scmp.eq.s32.totalorder %s30, 3
      %p312 = por %p310, %p311
      %p313 = scmp.ne.s32.totalorder %s304, %s305
      %p314 = scmp.eq.s32.totalorder %s30, 0
      %p315 = por %p313, %p314
      %p316 = scmp.ne.s32.totalorder %s304, %s305
      %p317 = scmp.eq.s32.totalorder %s31, 3
      %p318 = por %p316, %p317
      %p320 = scmp.ne.s32.totalorder %s305, %s319
      %p321 = scmp.eq.s32.totalorder %s31, 0
      %p322 = por %p320, %p321
      %s323 = ssub.s32 %s32, %s44
      %s324 = ssub.s32 %s33, %s40
      %s325 = sor.u32 %s323, %s324
      %p326 = scmp.eq.s32.totalorder %s325, 0
      %s328 = sadd.s32 %s327, 1
      %s329 = scalar_select %p326, %s327, %s328
      %p332 = pneg %p326
      %p333 = scmp.eq.s32.totalorder %s25, 3
      %p334 = por %p332, %p333
      %p335 = scmp.ne.s32.totalorder %s327, %s330
      %p336 = scmp.eq.s32.totalorder %s25, 0
      %p337 = por %p335, %p336
      %p338 = scmp.ne.s32.totalorder %s327, %s330
      %p339 = scmp.eq.s32.totalorder %s30, 3
      %p340 = por %p338, %p339
      %p341 = scmp.ne.s32.totalorder %s330, %s331
      %p342 = scmp.eq.s32.totalorder %s30, 0
      %p343 = por %p341, %p342
      %p344 = scmp.ne.s32.totalorder %s330, %s331
      %p345 = scmp.eq.s32.totalorder %s31, 3
      %p346 = por %p344, %p345
      %p348 = scmp.ne.s32.totalorder %s331, %s347
      %p349 = scmp.eq.s32.totalorder %s31, 0
      %p350 = por %p348, %p349
      %p351 = scmp.le.s32.totalorder 1, %s25
      %p352 = scmp.lt.s32.totalorder %s25, 5
      %p353 = pnand %p351, %p352
      %p354 = pneg %p353
      // Predicated region
      $region9: #{tpu_custom_call.1} parent=5 // pred_check
        _
      $region10: #{tpu_custom_call.1} parent=5 // pred_check_branch
        %356 = sbr.rel (%p353) target = $region12
      $region11: #{tpu_custom_call.1} parent=5 // pred_region
        %s357 = ssub.s32 %s25, 1
        // Predicated region
        $region13: #{tpu_custom_call.1} parent=11 // pred_check
          %p358 = pneg %p84
        $region14: #{tpu_custom_call.1} parent=11 // pred_check_branch
          %360 = sbr.rel (%p358) target = $region16
        $region15: #{tpu_custom_call.1} parent=11 // pred_region
          _
        $region16: #{tpu_custom_call.1} parent=11 // pred_fallthru
          _
        // Predicated region
        $region17: #{tpu_custom_call.1} parent=11 // pred_check
          %p361 = pneg %p105
        $region18: #{tpu_custom_call.1} parent=11 // pred_check_branch
          %363 = sbr.rel (%p361) target = $region20
        $region19: #{tpu_custom_call.1} parent=11 // pred_region
          _
        $region20: #{tpu_custom_call.1} parent=11 // pred_fallthru
          _
        // Predicated region
        $region21: #{tpu_custom_call.1} parent=11 // pred_check
          %p364 = pneg %p126
        $region22: #{tpu_custom_call.1} parent=11 // pred_check_branch
          %366 = sbr.rel (%p364) target = $region24
        $region23: #{tpu_custom_call.1} parent=11 // pred_region
          _
        $region24: #{tpu_custom_call.1} parent=11 // pred_fallthru
          _
        // Predicated region
        $region25: #{tpu_custom_call.1} parent=11 // pred_check
          %p367 = pneg %p147
        $region26: #{tpu_custom_call.1} parent=11 // pred_check_branch
          %369 = sbr.rel (%p367) target = $region28
        $region27: #{tpu_custom_call.1} parent=11 // pred_region
          _
        $region28: #{tpu_custom_call.1} parent=11 // pred_fallthru
          _
        // Predicated region
        $region29: #{tpu_custom_call.1} parent=11 // pred_check
          %p370 = pneg %p168
        $region30: #{tpu_custom_call.1} parent=11 // pred_check_branch
          %372 = sbr.rel (%p370) target = $region32
        $region31: #{tpu_custom_call.1} parent=11 // pred_region
          _
        $region32: #{tpu_custom_call.1} parent=11 // pred_fallthru
          _
        // Predicated region
        $region33: #{tpu_custom_call.1} parent=11 // pred_check
          %p373 = pneg %p189
        $region34: #{tpu_custom_call.1} parent=11 // pred_check_branch
          %375 = sbr.rel (%p373) target = $region36
        $region35: #{tpu_custom_call.1} parent=11 // pred_region
          _
        $region36: #{tpu_custom_call.1} parent=11 // pred_fallthru
          _
        // Predicated region
        $region37: #{tpu_custom_call.1} parent=11 // pred_check
          %p376 = pneg %p210
        $region38: #{tpu_custom_call.1} parent=11 // pred_check_branch
          %378 = sbr.rel (%p376) target = $region40
        $region39: #{tpu_custom_call.1} parent=11 // pred_region
          _
        $region40: #{tpu_custom_call.1} parent=11 // pred_fallthru
          _
        // Predicated region
        $region41: #{tpu_custom_call.1} parent=11 // pred_check
          %p379 = pneg %p231
        $region42: #{tpu_custom_call.1} parent=11 // pred_check_branch
          %381 = sbr.rel (%p379) target = $region44
        $region43: #{tpu_custom_call.1} parent=11 // pred_region
          _
        $region44: #{tpu_custom_call.1} parent=11 // pred_fallthru
          _
        // Predicated region
        $region45: #{tpu_custom_call.1} parent=11 // pred_check
          %p382 = pneg %p252
        $region46: #{tpu_custom_call.1} parent=11 // pred_check_branch
          %384 = sbr.rel (%p382) target = $region48
        $region47: #{tpu_custom_call.1} parent=11 // pred_region
          _
        $region48: #{tpu_custom_call.1} parent=11 // pred_fallthru
          _
        // Predicated region
        $region49: #{tpu_custom_call.1} parent=11 // pred_check
          %p385 = pneg %p273
        $region50: #{tpu_custom_call.1} parent=11 // pred_check_branch
          %387 = sbr.rel (%p385) target = $region52
        $region51: #{tpu_custom_call.1} parent=11 // pred_region
          _
        $region52: #{tpu_custom_call.1} parent=11 // pred_fallthru
          _
        // Predicated region
        $region53: #{tpu_custom_call.1} parent=11 // pred_check
          %p388 = pneg %p294
        $region54: #{tpu_custom_call.1} parent=11 // pred_check_branch
          %390 = sbr.rel (%p388) target = $region56
        $region55: #{tpu_custom_call.1} parent=11 // pred_region
          _
        $region56: #{tpu_custom_call.1} parent=11 // pred_fallthru
          _
        // Predicated region
        $region57: #{tpu_custom_call.1} parent=11 // pred_check
          %p391 = pneg %p315
        $region58: #{tpu_custom_call.1} parent=11 // pred_check_branch
          %393 = sbr.rel (%p391) target = $region60
        $region59: #{tpu_custom_call.1} parent=11 // pred_region
          _
        $region60: #{tpu_custom_call.1} parent=11 // pred_fallthru
          _
      $region12: #{tpu_custom_call.1} parent=5 // pred_fallthru
        _
      %p394 = scmp.lt.s32.totalorder %s25, 4
      // Predicated region
      $region61: #{tpu_custom_call.1} parent=5 // pred_check
        %p395 = pneg %p394
      $region62: #{tpu_custom_call.1} parent=5 // pred_check_branch
        %397 = sbr.rel (%p395) target = $region64
      $region63: #{tpu_custom_call.1} parent=5 // pred_region
        // Predicated region
        $region65: #{tpu_custom_call.1} parent=63 // pred_check
          %p398 = pneg %p57
        $region66: #{tpu_custom_call.1} parent=63 // pred_check_branch
          %400 = sbr.rel (%p398) target = $region68
        $region67: #{tpu_custom_call.1} parent=63 // pred_region
          %s401 = sand.u32 %s47, 1
          %s402 = scalar_lea.sflag [#allocation7], %s401
          %s403 = sand.u32 %s47, 1
          %s404 = smul.addr %s403, 256
          %s405 = scalar_lea.vmem [#allocation6], %s404
          %407 = vsyncadd %s402, 0
          %s408 = smul.addr %s32, 32
          %s409 = smul.addr %s408, 8
          %s410 = scalar_lea.hbm %s0, %s409
          %s411 = sshll.u32 %s410, 4
          %s412 = int_to_ptr.hbm [resolvable:$true] %s411
          %s413 = sshll.u32 %s405, 4
          %s414 = int_to_ptr.vmem [resolvable:$true] %s413
          %419 = dma.hbm_to_vmem [thread:$0]  %s412, 4096, %s414, %s402, 256, 256, 16
        $region68: #{tpu_custom_call.1} parent=63 // pred_fallthru
          _
      $region64: #{tpu_custom_call.1} parent=5 // pred_fallthru
        _
      %p420 = scmp.le.s32.totalorder 1, %s25
      %p421 = scmp.lt.s32.totalorder %s25, 5
      %p422 = pnand %p420, %p421
      %p423 = pneg %p422
      // Predicated region
      $region69: #{tpu_custom_call.1} parent=5 // pred_check
        _
      $region70: #{tpu_custom_call.1} parent=5 // pred_check_branch
        %425 = sbr.rel (%p422) target = $region72
      $region71: #{tpu_custom_call.1} parent=5 // pred_region
        %s426 = ssub.s32 %s25, 1
        %s427 = sand.u32 %s50, 1
        %s428 = scalar_lea.sflag [#allocation7], %s427
        %s429 = sand.u32 %s50, 1
        %s430 = smul.addr %s429, 256
        %s431 = scalar_lea.vmem [#allocation6], %s430
        // Predicated region
        $region73: #{tpu_custom_call.1} parent=71 // pred_check
          %p432 = pneg %p63
        $region74: #{tpu_custom_call.1} parent=71 // pred_check_branch
          %434 = sbr.rel (%p432) target = $region76
        $region75: #{tpu_custom_call.1} parent=71 // pred_region
          %436 = dma.done %s428, 4096
        $region76: #{tpu_custom_call.1} parent=71 // pred_fallthru
          _
        %s437 = sand.u32 %s50, 1
        %s438 = scalar_lea.sflag [#allocation7], %s437
        %s439 = sand.u32 %s50, 1
        %s440 = smul.addr %s439, 256
        %s441 = scalar_lea.vmem [#allocation6], %s440
        %p442 = pneg %p63
        %p443 = pneg %p60
        %p444 = pneg %p84
        %p445 = pneg %p81
        %p446 = pneg %p105
        %p447 = pneg %p102
        %p448 = pneg %p126
        %p449 = pneg %p123
        %p450 = pneg %p147
        %p451 = pneg %p144
        %p452 = pneg %p168
        %p453 = pneg %p165
        %p454 = pneg %p189
        %p455 = pneg %p186
        %p456 = pneg %p210
        %p457 = pneg %p207
        %p458 = pneg %p231
        %p459 = pneg %p228
        %p460 = pneg %p252
        %p461 = pneg %p249
        %p462 = pneg %p273
        %p463 = pneg %p270
        %p464 = pneg %p294
        %p465 = pneg %p291
        %p466 = pneg %p315
        %p467 = pneg %p312
        %p468 = pneg %p343
        %p469 = pneg %p340
        %s470 = sand.u32 %s330, 1
        %s471 = scalar_lea.sflag [#allocation8], %s470
        %s472 = sand.u32 %s330, 1
        %s473 = smul.addr %s472, 128
        %s474 = scalar_lea.vmem [#allocation9], %s473
        %p475 = scmp.eq.s32.totalorder %s35, 0
        // Predicated region
        $region77: #{tpu_custom_call.1} parent=71 // pred_check
          %p476 = pneg %p475
        $region78: #{tpu_custom_call.1} parent=71 // pred_check_branch
          %478 = sbr.rel (%p476) target = $region80
        $region79: #{tpu_custom_call.1} parent=71 // pred_region
          %v479 = vld [vmem:[%s431] sm:$0xff]
          %v480 = vld [vmem:[%s431 + $0x8] sm:$0xff]
          %v481 = vld [vmem:[%s431 + $0x10] sm:$0xff]
          %v482 = vld [vmem:[%s431 + $0x18] sm:$0xff]
          %v483 = vld [vmem:[%s431 + $0x20] sm:$0xff]
          %v484 = vld [vmem:[%s431 + $0x28] sm:$0xff]
          %v485 = vld [vmem:[%s431 + $0x30] sm:$0xff]
          %v486 = vld [vmem:[%s431 + $0x38] sm:$0xff]
          %v487 = vld [vmem:[%s431 + $0x40] sm:$0xff]
          %v488 = vld [vmem:[%s431 + $0x48] sm:$0xff]
          %v489 = vld [vmem:[%s431 + $0x50] sm:$0xff]
          %v490 = vld [vmem:[%s431 + $0x58] sm:$0xff]
          %v491 = vld [vmem:[%s431 + $0x60] sm:$0xff]
          %v492 = vld [vmem:[%s431 + $0x68] sm:$0xff]
          %v493 = vld [vmem:[%s431 + $0x70] sm:$0xff]
          %v494 = vld [vmem:[%s431 + $0x78] sm:$0xff]
          %v495 = vld [vmem:[%s431 + $0x80] sm:$0xff]
          %v496 = vld [vmem:[%s431 + $0x88] sm:$0xff]
          %v497 = vld [vmem:[%s431 + $0x90] sm:$0xff]
          %v498 = vld [vmem:[%s431 + $0x98] sm:$0xff]
          %v499 = vld [vmem:[%s431 + $0xa0] sm:$0xff]
          %v500 = vld [vmem:[%s431 + $0xa8] sm:$0xff]
          %v501 = vld [vmem:[%s431 + $0xb0] sm:$0xff]
          %v502 = vld [vmem:[%s431 + $0xb8] sm:$0xff]
          %v503 = vld [vmem:[%s431 + $0xc0] sm:$0xff]
          %v504 = vld [vmem:[%s431 + $0xc8] sm:$0xff]
          %v505 = vld [vmem:[%s431 + $0xd0] sm:$0xff]
          %v506 = vld [vmem:[%s431 + $0xd8] sm:$0xff]
          %v507 = vld [vmem:[%s431 + $0xe0] sm:$0xff]
          %v508 = vld [vmem:[%s431 + $0xe8] sm:$0xff]
          %v509 = vld [vmem:[%s431 + $0xf0] sm:$0xff]
          %v510 = vld [vmem:[%s431 + $0xf8] sm:$0xff]
          %v511 = vadd.f32 %v479, %v480
          %512 = vadd.xlane.f32.xlu0 %v511
          %v513 = vpop.xlane.xlu0 %512
          %v514 = vadd.f32 %v481, %v482
          %515 = vadd.xlane.f32.xlu0 %v514
          %v516 = vpop.xlane.xlu0 %515
          %v517 = vadd.f32 %v483, %v484
          %518 = vadd.xlane.f32.xlu0 %v517
          %v519 = vpop.xlane.xlu0 %518
          %v520 = vadd.f32 %v485, %v486
          %521 = vadd.xlane.f32.xlu0 %v520
          %v522 = vpop.xlane.xlu0 %521
          %v523 = vadd.f32 %v487, %v488
          %524 = vadd.xlane.f32.xlu0 %v523
          %v525 = vpop.xlane.xlu0 %524
          %v526 = vadd.f32 %v489, %v490
          %527 = vadd.xlane.f32.xlu0 %v526
          %v528 = vpop.xlane.xlu0 %527
          %v529 = vadd.f32 %v491, %v492
          %530 = vadd.xlane.f32.xlu0 %v529
          %v531 = vpop.xlane.xlu0 %530
          %v532 = vadd.f32 %v493, %v494
          %533 = vadd.xlane.f32.xlu0 %v532
          %v534 = vpop.xlane.xlu0 %533
          %v535 = vadd.f32 %v495, %v496
          %536 = vadd.xlane.f32.xlu0 %v535
          %v537 = vpop.xlane.xlu0 %536
          %v538 = vadd.f32 %v497, %v498
          %539 = vadd.xlane.f32.xlu0 %v538
          %v540 = vpop.xlane.xlu0 %539
          %v541 = vadd.f32 %v499, %v500
          %542 = vadd.xlane.f32.xlu0 %v541
          %v543 = vpop.xlane.xlu0 %542
          %v544 = vadd.f32 %v501, %v502
          %545 = vadd.xlane.f32.xlu0 %v544
          %v546 = vpop.xlane.xlu0 %545
          %v547 = vadd.f32 %v503, %v504
          %548 = vadd.xlane.f32.xlu0 %v547
          %v549 = vpop.xlane.xlu0 %548
          %v550 = vadd.f32 %v505, %v506
          %551 = vadd.xlane.f32.xlu0 %v550
          %v552 = vpop.xlane.xlu0 %551
          %v553 = vadd.f32 %v507, %v508
          %554 = vadd.xlane.f32.xlu0 %v553
          %v555 = vpop.xlane.xlu0 %554
          %v556 = vadd.f32 %v509, %v510
          %557 = vadd.xlane.f32.xlu0 %v556
          %v558 = vpop.xlane.xlu0 %557
          %v559 = vmul.f32 %v479, %v479
          %v560 = vmul.f32 %v480, %v480
          %v561 = vmul.f32 %v481, %v481
          %v562 = vmul.f32 %v482, %v482
          %v563 = vmul.f32 %v483, %v483
          %v564 = vmul.f32 %v484, %v484
          %v565 = vmul.f32 %v485, %v485
          %v566 = vmul.f32 %v486, %v486
          %v567 = vmul.f32 %v487, %v487
          %v568 = vmul.f32 %v488, %v488
          %v569 = vmul.f32 %v489, %v489
          %v570 = vmul.f32 %v490, %v490
          %v571 = vmul.f32 %v491, %v491
          %v572 = vmul.f32 %v492, %v492
          %v573 = vmul.f32 %v493, %v493
          %v574 = vmul.f32 %v494, %v494
          %v575 = vmul.f32 %v495, %v495
          %v576 = vmul.f32 %v496, %v496
          %v577 = vmul.f32 %v497, %v497
          %v578 = vmul.f32 %v498, %v498
          %v579 = vmul.f32 %v499, %v499
          %v580 = vmul.f32 %v500, %v500
          %v581 = vmul.f32 %v501, %v501
          %v582 = vmul.f32 %v502, %v502
          %v583 = vmul.f32 %v503, %v503
          %v584 = vmul.f32 %v504, %v504
          %v585 = vmul.f32 %v505, %v505
          %v586 = vmul.f32 %v506, %v506
          %v587 = vmul.f32 %v507, %v507
          %v588 = vmul.f32 %v508, %v508
          %v589 = vmul.f32 %v509, %v509
          %v590 = vmul.f32 %v510, %v510
          %v591 = vadd.f32 %v559, %v560
          %592 = vadd.xlane.f32.xlu0 %v591
          %v593 = vpop.xlane.xlu0 %592
          %v594 = vadd.f32 %v561, %v562
          %595 = vadd.xlane.f32.xlu0 %v594
          %v596 = vpop.xlane.xlu0 %595
          %v597 = vadd.f32 %v563, %v564
          %598 = vadd.xlane.f32.xlu0 %v597
          %v599 = vpop.xlane.xlu0 %598
          %v600 = vadd.f32 %v565, %v566
          %601 = vadd.xlane.f32.xlu0 %v600
          %v602 = vpop.xlane.xlu0 %601
          %v603 = vadd.f32 %v567, %v568
          %604 = vadd.xlane.f32.xlu0 %v603
          %v605 = vpop.xlane.xlu0 %604
          %v606 = vadd.f32 %v569, %v570
          %607 = vadd.xlane.f32.xlu0 %v606
          %v608 = vpop.xlane.xlu0 %607
          %v609 = vadd.f32 %v571, %v572
          %610 = vadd.xlane.f32.xlu0 %v609
          %v611 = vpop.xlane.xlu0 %610
          %v612 = vadd.f32 %v573, %v574
          %613 = vadd.xlane.f32.xlu0 %v612
          %v614 = vpop.xlane.xlu0 %613
          %v615 = vadd.f32 %v575, %v576
          %616 = vadd.xlane.f32.xlu0 %v615
          %v617 = vpop.xlane.xlu0 %616
          %v618 = vadd.f32 %v577, %v578
          %619 = vadd.xlane.f32.xlu0 %v618
          %v620 = vpop.xlane.xlu0 %619
          %v621 = vadd.f32 %v579, %v580
          %622 = vadd.xlane.f32.xlu0 %v621
          %v623 = vpop.xlane.xlu0 %622
          %v624 = vadd.f32 %v581, %v582
          %625 = vadd.xlane.f32.xlu0 %v624
          %v626 = vpop.xlane.xlu0 %625
          %v627 = vadd.f32 %v583, %v584
          %628 = vadd.xlane.f32.xlu0 %v627
          %v629 = vpop.xlane.xlu0 %628
          %v630 = vadd.f32 %v585, %v586
          %631 = vadd.xlane.f32.xlu0 %v630
          %v632 = vpop.xlane.xlu0 %631
          %v633 = vadd.f32 %v587, %v588
          %634 = vadd.xlane.f32.xlu0 %v633
          %v635 = vpop.xlane.xlu0 %634
          %v636 = vadd.f32 %v589, %v590
          %637 = vadd.xlane.f32.xlu0 %v636
          %v638 = vpop.xlane.xlu0 %637
          %v639 = vadd.f32 %v513, %v516
          %v640 = vadd.f32 %v639, %v519
          %v641 = vadd.f32 %v640, %v522
          %v642 = vadd.f32 %v641, %v525
          %v643 = vadd.f32 %v642, %v528
          %v644 = vadd.f32 %v643, %v531
          %v645 = vadd.f32 %v644, %v534
          %v646 = vadd.f32 %v645, %v537
          %v647 = vadd.f32 %v646, %v540
          %v648 = vadd.f32 %v647, %v543
          %v649 = vadd.f32 %v648, %v546
          %v650 = vadd.f32 %v649, %v549
          %v651 = vadd.f32 %v650, %v552
          %v652 = vadd.f32 %v651, %v555
          %v653 = vadd.f32 %v652, %v558
          %v654 = vrot.slane %v653, 4
          %v655 = vadd.f32 %v653, %v654
          %v656 = vrot.slane %v655, 2
          %v657 = vadd.f32 %v655, %v656
          %v658 = vrot.slane %v657, 1
          %v659 = vadd.f32 %v657, %v658
          %v660 = vmul.f32 %v659, 0.0009765625
          %v661 = vadd.f32 %v593, %v596
          %v662 = vadd.f32 %v661, %v599
          %v663 = vadd.f32 %v662, %v602
          %v664 = vadd.f32 %v663, %v605
          %v665 = vadd.f32 %v664, %v608
          %v666 = vadd.f32 %v665, %v611
          %v667 = vadd.f32 %v666, %v614
          %v668 = vadd.f32 %v667, %v617
          %v669 = vadd.f32 %v668, %v620
          %v670 = vadd.f32 %v669, %v623
          %v671 = vadd.f32 %v670, %v626
          %v672 = vadd.f32 %v671, %v629
          %v673 = vadd.f32 %v672, %v632
          %v674 = vadd.f32 %v673, %v635
          %v675 = vadd.f32 %v674, %v638
          %v676 = vrot.slane %v675, 4
          %v677 = vadd.f32 %v675, %v676
          %v678 = vrot.slane %v677, 2
          %v679 = vadd.f32 %v677, %v678
          %v680 = vrot.slane %v679, 1
          %v681 = vadd.f32 %v679, %v680
          %v682 = vmul.f32 %v681, 0.0009765625
          %v683 = vmul.f32 %v660, %v660
          %v684 = vsub.f32 %v682, %v683
          %v685 = vmax.f32 %v684, 0.0
          %v686 = vadd.f32 %v685, 1e-06
          %v687 = vrsqrt.pop %v686
          %v688 = vmul.f32 %v687, %v686
          %v689 = vmul.f32 %v688, %v687
          %v690 = vmul.f32 0.5, %v689
          %v691 = vsub.f32 1.5, %v690
          %v692 = vmul.f32 %v687, %v691
          %vm693 = vweird.f32 %v686
          %vm694 = vweird.f32 %v687
          %vm695 = vmor %vm693, %vm694
          %v696 = vsel %vm695, %v687, %v692
          %v697 = vld [vmem:[%s1] sm:$0xff]
          %v698 = vld [vmem:[%s1 + $0x8] sm:$0xff]
          %v699 = vld [vmem:[%s1 + $0x10] sm:$0xff]
          %v700 = vld [vmem:[%s1 + $0x18] sm:$0xff]
          %v701 = vld [vmem:[%s1 + $0x20] sm:$0xff]
          %v702 = vld [vmem:[%s1 + $0x28] sm:$0xff]
          %v703 = vld [vmem:[%s1 + $0x30] sm:$0xff]
          %v704 = vld [vmem:[%s1 + $0x38] sm:$0xff]
          %v705 = vld [vmem:[%s1 + $0x40] sm:$0xff]
          %v706 = vld [vmem:[%s1 + $0x48] sm:$0xff]
          %v707 = vld [vmem:[%s1 + $0x50] sm:$0xff]
          %v708 = vld [vmem:[%s1 + $0x58] sm:$0xff]
          %v709 = vld [vmem:[%s1 + $0x60] sm:$0xff]
          %v710 = vld [vmem:[%s1 + $0x68] sm:$0xff]
          %v711 = vld [vmem:[%s1 + $0x70] sm:$0xff]
          %v712 = vld [vmem:[%s1 + $0x78] sm:$0xff]
          %v713 = vmul.f32 %v697, %v696
          %v714 = vmul.f32 %v698, %v696
          %v715 = vmul.f32 %v699, %v696
          %v716 = vmul.f32 %v700, %v696
          %v717 = vmul.f32 %v701, %v696
          %v718 = vmul.f32 %v702, %v696
          %v719 = vmul.f32 %v703, %v696
          %v720 = vmul.f32 %v704, %v696
          %v721 = vmul.f32 %v705, %v696
          %v722 = vmul.f32 %v706, %v696
          %v723 = vmul.f32 %v707, %v696
          %v724 = vmul.f32 %v708, %v696
          %v725 = vmul.f32 %v709, %v696
          %v726 = vmul.f32 %v710, %v696
          %v727 = vmul.f32 %v711, %v696
          %v728 = vmul.f32 %v712, %v696
          %v729 = vld [vmem:[%s2] sm:$0xff]
          %v730 = vld [vmem:[%s2 + $0x8] sm:$0xff]
          %v731 = vld [vmem:[%s2 + $0x10] sm:$0xff]
          %v732 = vld [vmem:[%s2 + $0x18] sm:$0xff]
          %v733 = vld [vmem:[%s2 + $0x20] sm:$0xff]
          %v734 = vld [vmem:[%s2 + $0x28] sm:$0xff]
          %v735 = vld [vmem:[%s2 + $0x30] sm:$0xff]
          %v736 = vld [vmem:[%s2 + $0x38] sm:$0xff]
          %v737 = vld [vmem:[%s2 + $0x40] sm:$0xff]
          %v738 = vld [vmem:[%s2 + $0x48] sm:$0xff]
          %v739 = vld [vmem:[%s2 + $0x50] sm:$0xff]
          %v740 = vld [vmem:[%s2 + $0x58] sm:$0xff]
          %v741 = vld [vmem:[%s2 + $0x60] sm:$0xff]
          %v742 = vld [vmem:[%s2 + $0x68] sm:$0xff]
          %v743 = vld [vmem:[%s2 + $0x70] sm:$0xff]
          %v744 = vld [vmem:[%s2 + $0x78] sm:$0xff]
          %v745 = vmul.f32 %v660, %v713
          %v746 = vmul.f32 %v660, %v714
          %v747 = vmul.f32 %v660, %v715
          %v748 = vmul.f32 %v660, %v716
          %v749 = vmul.f32 %v660, %v717
          %v750 = vmul.f32 %v660, %v718
          %v751 = vmul.f32 %v660, %v719
          %v752 = vmul.f32 %v660, %v720
          %v753 = vmul.f32 %v660, %v721
          %v754 = vmul.f32 %v660, %v722
          %v755 = vmul.f32 %v660, %v723
          %v756 = vmul.f32 %v660, %v724
          %v757 = vmul.f32 %v660, %v725
          %v758 = vmul.f32 %v660, %v726
          %v759 = vmul.f32 %v660, %v727
          %v760 = vmul.f32 %v660, %v728
          %v761 = vsub.f32 %v729, %v745
          %v762 = vsub.f32 %v730, %v746
          %v763 = vsub.f32 %v731, %v747
          %v764 = vsub.f32 %v732, %v748
          %v765 = vsub.f32 %v733, %v749
          %v766 = vsub.f32 %v734, %v750
          %v767 = vsub.f32 %v735, %v751
          %v768 = vsub.f32 %v736, %v752
          %v769 = vsub.f32 %v737, %v753
          %v770 = vsub.f32 %v738, %v754
          %v771 = vsub.f32 %v739, %v755
          %v772 = vsub.f32 %v740, %v756
          %v773 = vsub.f32 %v741, %v757
          %v774 = vsub.f32 %v742, %v758
          %v775 = vsub.f32 %v743, %v759
          %v776 = vsub.f32 %v744, %v760
          %vm777 = vcmask 7168
          %778 = vst.msk [vmem:[#allocation4] sm:$0xff] %vm777, %v713
          %779 = vst.msk [vmem:[#allocation4 + $0x8] sm:$0xff] %vm777, %v714
          %780 = vst.msk [vmem:[#allocation4 + $0x10] sm:$0xff] %vm777, %v715
          %781 = vst.msk [vmem:[#allocation4 + $0x18] sm:$0xff] %vm777, %v716
          %782 = vst.msk [vmem:[#allocation4 + $0x20] sm:$0xff] %vm777, %v717
          %783 = vst.msk [vmem:[#allocation4 + $0x28] sm:$0xff] %vm777, %v718
          %784 = vst.msk [vmem:[#allocation4 + $0x30] sm:$0xff] %vm777, %v719
          %785 = vst.msk [vmem:[#allocation4 + $0x38] sm:$0xff] %vm777, %v720
          %786 = vst.msk [vmem:[#allocation4 + $0x40] sm:$0xff] %vm777, %v721
          %787 = vst.msk [vmem:[#allocation4 + $0x48] sm:$0xff] %vm777, %v722
          %788 = vst.msk [vmem:[#allocation4 + $0x50] sm:$0xff] %vm777, %v723
          %789 = vst.msk [vmem:[#allocation4 + $0x58] sm:$0xff] %vm777, %v724
          %790 = vst.msk [vmem:[#allocation4 + $0x60] sm:$0xff] %vm777, %v725
          %791 = vst.msk [vmem:[#allocation4 + $0x68] sm:$0xff] %vm777, %v726
          %792 = vst.msk [vmem:[#allocation4 + $0x70] sm:$0xff] %vm777, %v727
          %793 = vst.msk [vmem:[#allocation4 + $0x78] sm:$0xff] %vm777, %v728
          %794 = vst.msk [vmem:[#allocation5] sm:$0xff] %vm777, %v761
          %795 = vst.msk [vmem:[#allocation5 + $0x8] sm:$0xff] %vm777, %v762
          %796 = vst.msk [vmem:[#allocation5 + $0x10] sm:$0xff] %vm777, %v763
          %797 = vst.msk [vmem:[#allocation5 + $0x18] sm:$0xff] %vm777, %v764
          %798 = vst.msk [vmem:[#allocation5 + $0x20] sm:$0xff] %vm777, %v765
          %799 = vst.msk [vmem:[#allocation5 + $0x28] sm:$0xff] %vm777, %v766
          %800 = vst.msk [vmem:[#allocation5 + $0x30] sm:$0xff] %vm777, %v767
          %801 = vst.msk [vmem:[#allocation5 + $0x38] sm:$0xff] %vm777, %v768
          %802 = vst.msk [vmem:[#allocation5 + $0x40] sm:$0xff] %vm777, %v769
          %803 = vst.msk [vmem:[#allocation5 + $0x48] sm:$0xff] %vm777, %v770
          %804 = vst.msk [vmem:[#allocation5 + $0x50] sm:$0xff] %vm777, %v771
          %805 = vst.msk [vmem:[#allocation5 + $0x58] sm:$0xff] %vm777, %v772
          %806 = vst.msk [vmem:[#allocation5 + $0x60] sm:$0xff] %vm777, %v773
          %807 = vst.msk [vmem:[#allocation5 + $0x68] sm:$0xff] %vm777, %v774
          %808 = vst.msk [vmem:[#allocation5 + $0x70] sm:$0xff] %vm777, %v775
          %809 = vst.msk [vmem:[#allocation5 + $0x78] sm:$0xff] %vm777, %v776
          %811 = vset.pattern.permute.xlu0 0
          %812 = vperm.xlu0 %811, %v713
          %v813 = vpop.permute.xlu0 %812
          %816 = vset.pattern.permute.xlu0 0
          %817 = vperm.xlu0 %816, %v714
          %v818 = vpop.permute.xlu0 %817
          %821 = vset.pattern.permute.xlu0 0
          %822 = vperm.xlu0 %821, %v715
          %v823 = vpop.permute.xlu0 %822
          %826 = vset.pattern.permute.xlu0 0
          %827 = vperm.xlu0 %826, %v716
          %v828 = vpop.permute.xlu0 %827
          %831 = vset.pattern.permute.xlu0 0
          %832 = vperm.xlu0 %831, %v717
          %v833 = vpop.permute.xlu0 %832
          %836 = vset.pattern.permute.xlu0 0
          %837 = vperm.xlu0 %836, %v718
          %v838 = vpop.permute.xlu0 %837
          %841 = vset.pattern.permute.xlu0 0
          %842 = vperm.xlu0 %841, %v719
          %v843 = vpop.permute.xlu0 %842
          %846 = vset.pattern.permute.xlu0 0
          %847 = vperm.xlu0 %846, %v720
          %v848 = vpop.permute.xlu0 %847
          %851 = vset.pattern.permute.xlu0 0
          %852 = vperm.xlu0 %851, %v721
          %v853 = vpop.permute.xlu0 %852
          %856 = vset.pattern.permute.xlu0 0
          %857 = vperm.xlu0 %856, %v722
          %v858 = vpop.permute.xlu0 %857
          %861 = vset.pattern.permute.xlu0 0
          %862 = vperm.xlu0 %861, %v723
          %v863 = vpop.permute.xlu0 %862
          %866 = vset.pattern.permute.xlu0 0
          %867 = vperm.xlu0 %866, %v724
          %v868 = vpop.permute.xlu0 %867
          %871 = vset.pattern.permute.xlu0 0
          %872 = vperm.xlu0 %871, %v725
          %v873 = vpop.permute.xlu0 %872
          %876 = vset.pattern.permute.xlu0 0
          %877 = vperm.xlu0 %876, %v726
          %v878 = vpop.permute.xlu0 %877
          %881 = vset.pattern.permute.xlu0 0
          %882 = vperm.xlu0 %881, %v727
          %v883 = vpop.permute.xlu0 %882
          %886 = vset.pattern.permute.xlu0 0
          %887 = vperm.xlu0 %886, %v728
          %v888 = vpop.permute.xlu0 %887
          %v890 = vmul.f32 %v479, %v813
          %v891 = vmul.f32 %v480, %v813
          %v892 = vmul.f32 %v481, %v818
          %v893 = vmul.f32 %v482, %v818
          %v894 = vmul.f32 %v483, %v823
          %v895 = vmul.f32 %v484, %v823
          %v896 = vmul.f32 %v485, %v828
          %v897 = vmul.f32 %v486, %v828
          %v898 = vmul.f32 %v487, %v833
          %v899 = vmul.f32 %v488, %v833
          %v900 = vmul.f32 %v489, %v838
          %v901 = vmul.f32 %v490, %v838
          %v902 = vmul.f32 %v491, %v843
          %v903 = vmul.f32 %v492, %v843
          %v904 = vmul.f32 %v493, %v848
          %v905 = vmul.f32 %v494, %v848
          %v906 = vmul.f32 %v495, %v853
          %v907 = vmul.f32 %v496, %v853
          %v908 = vmul.f32 %v497, %v858
          %v909 = vmul.f32 %v498, %v858
          %v910 = vmul.f32 %v499, %v863
          %v911 = vmul.f32 %v500, %v863
          %v912 = vmul.f32 %v501, %v868
          %v913 = vmul.f32 %v502, %v868
          %v914 = vmul.f32 %v503, %v873
          %v915 = vmul.f32 %v504, %v873
          %v916 = vmul.f32 %v505, %v878
          %v917 = vmul.f32 %v506, %v878
          %v918 = vmul.f32 %v507, %v883
          %v919 = vmul.f32 %v508, %v883
          %v920 = vmul.f32 %v509, %v888
          %v921 = vmul.f32 %v510, %v888
          %923 = vset.pattern.permute.xlu0 0
          %924 = vperm.xlu0 %923, %v761
          %v925 = vpop.permute.xlu0 %924
          %928 = vset.pattern.permute.xlu0 0
          %929 = vperm.xlu0 %928, %v762
          %v930 = vpop.permute.xlu0 %929
          %933 = vset.pattern.permute.xlu0 0
          %934 = vperm.xlu0 %933, %v763
          %v935 = vpop.permute.xlu0 %934
          %938 = vset.pattern.permute.xlu0 0
          %939 = vperm.xlu0 %938, %v764
          %v940 = vpop.permute.xlu0 %939
          %943 = vset.pattern.permute.xlu0 0
          %944 = vperm.xlu0 %943, %v765
          %v945 = vpop.permute.xlu0 %944
          %948 = vset.pattern.permute.xlu0 0
          %949 = vperm.xlu0 %948, %v766
          %v950 = vpop.permute.xlu0 %949
          %953 = vset.pattern.permute.xlu0 0
          %954 = vperm.xlu0 %953, %v767
          %v955 = vpop.permute.xlu0 %954
          %958 = vset.pattern.permute.xlu0 0
          %959 = vperm.xlu0 %958, %v768
          %v960 = vpop.permute.xlu0 %959
          %963 = vset.pattern.permute.xlu0 0
          %964 = vperm.xlu0 %963, %v769
          %v965 = vpop.permute.xlu0 %964
          %968 = vset.pattern.permute.xlu0 0
          %969 = vperm.xlu0 %968, %v770
          %v970 = vpop.permute.xlu0 %969
          %973 = vset.pattern.permute.xlu0 0
          %974 = vperm.xlu0 %973, %v771
          %v975 = vpop.permute.xlu0 %974
          %978 = vset.pattern.permute.xlu0 0
          %979 = vperm.xlu0 %978, %v772
          %v980 = vpop.permute.xlu0 %979
          %983 = vset.pattern.permute.xlu0 0
          %984 = vperm.xlu0 %983, %v773
          %v985 = vpop.permute.xlu0 %984
          %988 = vset.pattern.permute.xlu0 0
          %989 = vperm.xlu0 %988, %v774
          %v990 = vpop.permute.xlu0 %989
          %993 = vset.pattern.permute.xlu0 0
          %994 = vperm.xlu0 %993, %v775
          %v995 = vpop.permute.xlu0 %994
          %998 = vset.pattern.permute.xlu0 0
          %999 = vperm.xlu0 %998, %v776
          %v1000 = vpop.permute.xlu0 %999
          %v1002 = vadd.f32 %v890, %v925
          %v1003 = vadd.f32 %v891, %v925
          %v1004 = vadd.f32 %v892, %v930
          %v1005 = vadd.f32 %v893, %v930
          %v1006 = vadd.f32 %v894, %v935
          %v1007 = vadd.f32 %v895, %v935
          %v1008 = vadd.f32 %v896, %v940
          %v1009 = vadd.f32 %v897, %v940
          %v1010 = vadd.f32 %v898, %v945
          %v1011 = vadd.f32 %v899, %v945
          %v1012 = vadd.f32 %v900, %v950
          %v1013 = vadd.f32 %v901, %v950
          %v1014 = vadd.f32 %v902, %v955
          %v1015 = vadd.f32 %v903, %v955
          %v1016 = vadd.f32 %v904, %v960
          %v1017 = vadd.f32 %v905, %v960
          %v1018 = vadd.f32 %v906, %v965
          %v1019 = vadd.f32 %v907, %v965
          %v1020 = vadd.f32 %v908, %v970
          %v1021 = vadd.f32 %v909, %v970
          %v1022 = vadd.f32 %v910, %v975
          %v1023 = vadd.f32 %v911, %v975
          %v1024 = vadd.f32 %v912, %v980
          %v1025 = vadd.f32 %v913, %v980
          %v1026 = vadd.f32 %v914, %v985
          %v1027 = vadd.f32 %v915, %v985
          %v1028 = vadd.f32 %v916, %v990
          %v1029 = vadd.f32 %v917, %v990
          %v1030 = vadd.f32 %v918, %v995
          %v1031 = vadd.f32 %v919, %v995
          %v1032 = vadd.f32 %v920, %v1000
          %v1033 = vadd.f32 %v921, %v1000
          %v1034 = vpack.c.bf16 %v1004, %v1002
          %v1035 = vpack.c.bf16 %v1005, %v1003
          %v1036 = vpack.c.bf16 %v1008, %v1006
          %v1037 = vpack.c.bf16 %v1009, %v1007
          %v1038 = vpack.c.bf16 %v1012, %v1010
          %v1039 = vpack.c.bf16 %v1013, %v1011
          %v1040 = vpack.c.bf16 %v1016, %v1014
          %v1041 = vpack.c.bf16 %v1017, %v1015
          %v1042 = vpack.c.bf16 %v1020, %v1018
          %v1043 = vpack.c.bf16 %v1021, %v1019
          %v1044 = vpack.c.bf16 %v1024, %v1022
          %v1045 = vpack.c.bf16 %v1025, %v1023
          %v1046 = vpack.c.bf16 %v1028, %v1026
          %v1047 = vpack.c.bf16 %v1029, %v1027
          %v1048 = vpack.c.bf16 %v1032, %v1030
          %v1049 = vpack.c.bf16 %v1033, %v1031
          %v1050 = vld [vmem:[%s7] sm:$0xf]
          %v1051 = vld [vmem:[%s7 + $0x4] sm:$0xf]
          %v1052 = vld [vmem:[%s7 + $0x8] sm:$0xf]
          %v1053 = vld [vmem:[%s7 + $0xc] sm:$0xf]
          %v1054 = vld [vmem:[%s7 + $0x10] sm:$0xf]
          %v1055 = vld [vmem:[%s7 + $0x14] sm:$0xf]
          %v1056 = vld [vmem:[%s7 + $0x18] sm:$0xf]
          %v1057 = vld [vmem:[%s7 + $0x1c] sm:$0xf]
          %v1058 = vld [vmem:[%s7 + $0x20] sm:$0xf]
          %v1059 = vld [vmem:[%s7 + $0x24] sm:$0xf]
          %v1060 = vld [vmem:[%s7 + $0x28] sm:$0xf]
          %v1061 = vld [vmem:[%s7 + $0x2c] sm:$0xf]
          %v1062 = vld [vmem:[%s7 + $0x30] sm:$0xf]
          %v1063 = vld [vmem:[%s7 + $0x34] sm:$0xf]
          %v1064 = vld [vmem:[%s7 + $0x38] sm:$0xf]
          %v1065 = vld [vmem:[%s7 + $0x3c] sm:$0xf]
          %v1066 = vld [vmem:[%s8] sm:$0xff]
          %v1067 = vld [vmem:[%s8 + $0x8] sm:$0xff]
          %v1068 = vld [vmem:[%s8 + $0x10] sm:$0xff]
          %v1069 = vld [vmem:[%s8 + $0x18] sm:$0xff]
          %v1070 = vld [vmem:[%s8 + $0x20] sm:$0xff]
          %v1071 = vld [vmem:[%s8 + $0x28] sm:$0xff]
          %v1072 = vld [vmem:[%s8 + $0x30] sm:$0xff]
          %v1073 = vld [vmem:[%s8 + $0x38] sm:$0xff]
          %v1074 = vld [vmem:[%s8 + $0x40] sm:$0xff]
          %v1075 = vld [vmem:[%s8 + $0x48] sm:$0xff]
          %v1076 = vld [vmem:[%s8 + $0x50] sm:$0xff]
          %v1077 = vld [vmem:[%s8 + $0x58] sm:$0xff]
          %v1078 = vld [vmem:[%s8 + $0x60] sm:$0xff]
          %v1079 = vld [vmem:[%s8 + $0x68] sm:$0xff]
          %v1080 = vld [vmem:[%s8 + $0x70] sm:$0xff]
          %v1081 = vld [vmem:[%s8 + $0x78] sm:$0xff]
          %1083 = vset.pattern.permute.xlu0 0
          %1084 = vperm.xlu0 %1083, %v1066
          %v1085 = vpop.permute.xlu0 %1084
          %1088 = vset.pattern.permute.xlu0 0
          %1089 = vperm.xlu0 %1088, %v1067
          %v1090 = vpop.permute.xlu0 %1089
          %1093 = vset.pattern.permute.xlu0 0
          %1094 = vperm.xlu0 %1093, %v1068
          %v1095 = vpop.permute.xlu0 %1094
          %1098 = vset.pattern.permute.xlu0 0
          %1099 = vperm.xlu0 %1098, %v1069
          %v1100 = vpop.permute.xlu0 %1099
          %1103 = vset.pattern.permute.xlu0 0
          %1104 = vperm.xlu0 %1103, %v1070
          %v1105 = vpop.permute.xlu0 %1104
          %1108 = vset.pattern.permute.xlu0 0
          %1109 = vperm.xlu0 %1108, %v1071
          %v1110 = vpop.permute.xlu0 %1109
          %1113 = vset.pattern.permute.xlu0 0
          %1114 = vperm.xlu0 %1113, %v1072
          %v1115 = vpop.permute.xlu0 %1114
          %1118 = vset.pattern.permute.xlu0 0
          %1119 = vperm.xlu0 %1118, %v1073
          %v1120 = vpop.permute.xlu0 %1119
          %1123 = vset.pattern.permute.xlu0 0
          %1124 = vperm.xlu0 %1123, %v1074
          %v1125 = vpop.permute.xlu0 %1124
          %1128 = vset.pattern.permute.xlu0 0
          %1129 = vperm.xlu0 %1128, %v1075
          %v1130 = vpop.permute.xlu0 %1129
          %1133 = vset.pattern.permute.xlu0 0
          %1134 = vperm.xlu0 %1133, %v1076
          %v1135 = vpop.permute.xlu0 %1134
          %1138 = vset.pattern.permute.xlu0 0
          %1139 = vperm.xlu0 %1138, %v1077
          %v1140 = vpop.permute.xlu0 %1139
          %1143 = vset.pattern.permute.xlu0 0
          %1144 = vperm.xlu0 %1143, %v1078
          %v1145 = vpop.permute.xlu0 %1144
          %1148 = vset.pattern.permute.xlu0 0
          %1149 = vperm.xlu0 %1148, %v1079
          %v1150 = vpop.permute.xlu0 %1149
          %1153 = vset.pattern.permute.xlu0 0
          %1154 = vperm.xlu0 %1153, %v1080
          %v1155 = vpop.permute.xlu0 %1154
          %1158 = vset.pattern.permute.xlu0 0
          %1159 = vperm.xlu0 %1158, %v1081
          %v1160 = vpop.permute.xlu0 %1159
          %v1178 = vunpack.c.l.b16 %v1050
          %v1179 = vunpack.c.l.b16 %v1051
          %v1180 = vunpack.c.l.b16 %v1052
          %v1181 = vunpack.c.l.b16 %v1053
          %v1182 = vunpack.c.l.b16 %v1054
          %v1183 = vunpack.c.l.b16 %v1055
          %v1184 = vunpack.c.l.b16 %v1056
          %v1185 = vunpack.c.l.b16 %v1057
          %v1186 = vunpack.c.l.b16 %v1058
          %v1187 = vunpack.c.l.b16 %v1059
          %v1188 = vunpack.c.l.b16 %v1060
          %v1189 = vunpack.c.l.b16 %v1061
          %v1190 = vunpack.c.l.b16 %v1062
          %v1191 = vunpack.c.l.b16 %v1063
          %v1192 = vunpack.c.l.b16 %v1064
          %v1193 = vunpack.c.l.b16 %v1065
          %v1194 = vpack.c.b16 %v1179, %v1178
          %v1195 = vpack.c.b16 %v1181, %v1180
          %v1196 = vpack.c.b16 %v1183, %v1182
          %v1197 = vpack.c.b16 %v1185, %v1184
          %v1198 = vpack.c.b16 %v1187, %v1186
          %v1199 = vpack.c.b16 %v1189, %v1188
          %v1200 = vpack.c.b16 %v1191, %v1190
          %v1201 = vpack.c.b16 %v1193, %v1192
          %1210 = vmatpush.bf16.msra.mxu0 %v1048
          %1211 = vmatpush.bf16.msra.mxu0 %v1046
          %1212 = vmatpush.bf16.msra.mxu0 %v1044
          %1213 = vmatpush.bf16.msra.mxu0 %v1042
          %1214 = vmatpush.bf16.msra.mxu0 %v1040
          %1215 = vmatpush.bf16.msra.mxu0 %v1038
          %1216 = vmatpush.bf16.msra.mxu0 %v1036
          %1217 = vmatpush.bf16.msra.mxu0 %v1034
          %1218 = vmatmul.bf16.gmra.mxu0 %v1194
          %v1219 = vpop.f32.mrf.mxu0
          %v1220 = vadd.f32 %v1085, %v1219
          %v1221 = vpop.f32.mrf.mxu0
          %v1222 = vadd.f32 %v1090, %v1221
          %1223 = vmatmul.bf16.gmra.mxu0 %v1195
          %v1224 = vpop.f32.mrf.mxu0
          %v1225 = vadd.f32 %v1095, %v1224
          %v1226 = vpop.f32.mrf.mxu0
          %v1227 = vadd.f32 %v1100, %v1226
          %1228 = vmatmul.bf16.gmra.mxu0 %v1196
          %v1229 = vpop.f32.mrf.mxu0
          %v1230 = vadd.f32 %v1105, %v1229
          %v1231 = vpop.f32.mrf.mxu0
          %v1232 = vadd.f32 %v1110, %v1231
          %1233 = vmatmul.bf16.gmra.mxu0 %v1197
          %v1234 = vpop.f32.mrf.mxu0
          %v1235 = vadd.f32 %v1115, %v1234
          %v1236 = vpop.f32.mrf.mxu0
          %v1237 = vadd.f32 %v1120, %v1236
          %1238 = vmatmul.bf16.gmra.mxu0 %v1198
          %v1239 = vpop.f32.mrf.mxu0
          %v1240 = vadd.f32 %v1125, %v1239
          %v1241 = vpop.f32.mrf.mxu0
          %v1242 = vadd.f32 %v1130, %v1241
          %1243 = vmatmul.bf16.gmra.mxu0 %v1199
          %v1244 = vpop.f32.mrf.mxu0
          %v1245 = vadd.f32 %v1135, %v1244
          %v1246 = vpop.f32.mrf.mxu0
          %v1247 = vadd.f32 %v1140, %v1246
          %1248 = vmatmul.bf16.gmra.mxu0 %v1200
          %v1249 = vpop.f32.mrf.mxu0
          %v1250 = vadd.f32 %v1145, %v1249
          %v1251 = vpop.f32.mrf.mxu0
          %v1252 = vadd.f32 %v1150, %v1251
          %1253 = vmatmul.bf16.gmra.mxu0 %v1201
          %v1254 = vpop.f32.mrf.mxu0
          %v1255 = vadd.f32 %v1155, %v1254
          %v1256 = vpop.f32.mrf.mxu0
          %v1257 = vadd.f32 %v1160, %v1256
          %1258 = vdwg.mxu0
          %1259 = vmatpush.bf16.msra.mxu0 %v1049
          %1260 = vmatpush.bf16.msra.mxu0 %v1047
          %1261 = vmatpush.bf16.msra.mxu0 %v1045
          %1262 = vmatpush.bf16.msra.mxu0 %v1043
          %1263 = vmatpush.bf16.msra.mxu0 %v1041
          %1264 = vmatpush.bf16.msra.mxu0 %v1039
          %1265 = vmatpush.bf16.msra.mxu0 %v1037
          %1266 = vmatpush.bf16.msra.mxu0 %v1035
          %1267 = vmatmul.bf16.gmra.mxu0 %v1194
          %v1268 = vpop.f32.mrf.mxu0
          %v1269 = vadd.f32 %v1085, %v1268
          %v1270 = vpop.f32.mrf.mxu0
          %v1271 = vadd.f32 %v1090, %v1270
          %1272 = vmatmul.bf16.gmra.mxu0 %v1195
          %v1273 = vpop.f32.mrf.mxu0
          %v1274 = vadd.f32 %v1095, %v1273
          %v1275 = vpop.f32.mrf.mxu0
          %v1276 = vadd.f32 %v1100, %v1275
          %1277 = vmatmul.bf16.gmra.mxu0 %v1196
          %v1278 = vpop.f32.mrf.mxu0
          %v1279 = vadd.f32 %v1105, %v1278
          %v1280 = vpop.f32.mrf.mxu0
          %v1281 = vadd.f32 %v1110, %v1280
          %1282 = vmatmul.bf16.gmra.mxu0 %v1197
          %v1283 = vpop.f32.mrf.mxu0
          %v1284 = vadd.f32 %v1115, %v1283
          %v1285 = vpop.f32.mrf.mxu0
          %v1286 = vadd.f32 %v1120, %v1285
          %1287 = vmatmul.bf16.gmra.mxu0 %v1198
          %v1288 = vpop.f32.mrf.mxu0
          %v1289 = vadd.f32 %v1125, %v1288
          %v1290 = vpop.f32.mrf.mxu0
          %v1291 = vadd.f32 %v1130, %v1290
          %1292 = vmatmul.bf16.gmra.mxu0 %v1199
          %v1293 = vpop.f32.mrf.mxu0
          %v1294 = vadd.f32 %v1135, %v1293
          %v1295 = vpop.f32.mrf.mxu0
          %v1296 = vadd.f32 %v1140, %v1295
          %1297 = vmatmul.bf16.gmra.mxu0 %v1200
          %v1298 = vpop.f32.mrf.mxu0
          %v1299 = vadd.f32 %v1145, %v1298
          %v1300 = vpop.f32.mrf.mxu0
          %v1301 = vadd.f32 %v1150, %v1300
          %1302 = vmatmul.bf16.gmra.mxu0 %v1201
          %v1303 = vpop.f32.mrf.mxu0
          %v1304 = vadd.f32 %v1155, %v1303
          %v1305 = vpop.f32.mrf.mxu0
          %v1306 = vadd.f32 %v1160, %v1305
          %1307 = vdwg.mxu0
          %1308 = vxpose.xlu0.b32.start [1/16] %v1220, 128
          %1309 = vxpose.xlu0.b32.cont [2/16] %v1222, 128
          %1310 = vxpose.xlu0.b32.cont [3/16] %v1225, 128
          %1311 = vxpose.xlu0.b32.cont [4/16] %v1227, 128
          %1312 = vxpose.xlu0.b32.cont [5/16] %v1230, 128
          %1313 = vxpose.xlu0.b32.cont [6/16] %v1232, 128
          %1314 = vxpose.xlu0.b32.cont [7/16] %v1235, 128
          %1315 = vxpose.xlu0.b32.cont [8/16] %v1237, 128
          %1316 = vxpose.xlu0.b32.cont [9/16] %v1240, 128
          %1317 = vxpose.xlu0.b32.cont [10/16] %v1242, 128
          %1318 = vxpose.xlu0.b32.cont [11/16] %v1245, 128
          %1319 = vxpose.xlu0.b32.cont [12/16] %v1247, 128
          %1320 = vxpose.xlu0.b32.cont [13/16] %v1250, 128
          %1321 = vxpose.xlu0.b32.cont [14/16] %v1252, 128
          %1322 = vxpose.xlu0.b32.cont [15/16] %v1255, 128
          %1323 = vxpose.xlu0.b32.end [16/16] %v1257, 128
          %v1324 = vpop.trf.xlu0
          %v1325 = vpop.trf.xlu0
          %v1326 = vpop.trf.xlu0
          %v1327 = vpop.trf.xlu0
          %v1328 = vpop.trf.xlu0
          %v1329 = vpop.trf.xlu0
          %v1330 = vpop.trf.xlu0
          %v1331 = vpop.trf.xlu0
          %v1332 = vpop.trf.xlu0
          %v1333 = vpop.trf.xlu0
          %v1334 = vpop.trf.xlu0
          %v1335 = vpop.trf.xlu0
          %v1336 = vpop.trf.xlu0
          %v1337 = vpop.trf.xlu0
          %v1338 = vpop.trf.xlu0
          %v1339 = vpop.trf.xlu0
          %1340 = vxpose.xlu0.b32.start [1/16] %v1269, 128
          %1341 = vxpose.xlu0.b32.cont [2/16] %v1271, 128
          %1342 = vxpose.xlu0.b32.cont [3/16] %v1274, 128
          %1343 = vxpose.xlu0.b32.cont [4/16] %v1276, 128
          %1344 = vxpose.xlu0.b32.cont [5/16] %v1279, 128
          %1345 = vxpose.xlu0.b32.cont [6/16] %v1281, 128
          %1346 = vxpose.xlu0.b32.cont [7/16] %v1284, 128
          %1347 = vxpose.xlu0.b32.cont [8/16] %v1286, 128
          %1348 = vxpose.xlu0.b32.cont [9/16] %v1289, 128
          %1349 = vxpose.xlu0.b32.cont [10/16] %v1291, 128
          %1350 = vxpose.xlu0.b32.cont [11/16] %v1294, 128
          %1351 = vxpose.xlu0.b32.cont [12/16] %v1296, 128
          %1352 = vxpose.xlu0.b32.cont [13/16] %v1299, 128
          %1353 = vxpose.xlu0.b32.cont [14/16] %v1301, 128
          %1354 = vxpose.xlu0.b32.cont [15/16] %v1304, 128
          %1355 = vxpose.xlu0.b32.end [16/16] %v1306, 128
          %v1356 = vpop.trf.xlu0
          %v1357 = vpop.trf.xlu0
          %v1358 = vpop.trf.xlu0
          %v1359 = vpop.trf.xlu0
          %v1360 = vpop.trf.xlu0
          %v1361 = vpop.trf.xlu0
          %v1362 = vpop.trf.xlu0
          %v1363 = vpop.trf.xlu0
          %v1364 = vpop.trf.xlu0
          %v1365 = vpop.trf.xlu0
          %v1366 = vpop.trf.xlu0
          %v1367 = vpop.trf.xlu0
          %v1368 = vpop.trf.xlu0
          %v1369 = vpop.trf.xlu0
          %v1370 = vpop.trf.xlu0
          %v1371 = vpop.trf.xlu0
          %v1372 = vpack.c.bf16 %v1324, %v1324
          %v1373 = vpack.c.bf16 %v1325, %v1325
          %v1374 = vpack.c.bf16 %v1326, %v1326
          %v1375 = vpack.c.bf16 %v1327, %v1327
          %v1376 = vpack.c.bf16 %v1328, %v1328
          %v1377 = vpack.c.bf16 %v1329, %v1329
          %v1378 = vpack.c.bf16 %v1330, %v1330
          %v1379 = vpack.c.bf16 %v1331, %v1331
          %v1380 = vpack.c.bf16 %v1332, %v1332
          %v1381 = vpack.c.bf16 %v1333, %v1333
          %v1382 = vpack.c.bf16 %v1334, %v1334
          %v1383 = vpack.c.bf16 %v1335, %v1335
          %v1384 = vpack.c.bf16 %v1336, %v1336
          %v1385 = vpack.c.bf16 %v1337, %v1337
          %v1386 = vpack.c.bf16 %v1338, %v1338
          %v1387 = vpack.c.bf16 %v1339, %v1339
          %v1388 = vpack.c.bf16 %v1356, %v1356
          %v1389 = vpack.c.bf16 %v1357, %v1357
          %v1390 = vpack.c.bf16 %v1358, %v1358
          %v1391 = vpack.c.bf16 %v1359, %v1359
          %v1392 = vpack.c.bf16 %v1360, %v1360
          %v1393 = vpack.c.bf16 %v1361, %v1361
          %v1394 = vpack.c.bf16 %v1362, %v1362
          %v1395 = vpack.c.bf16 %v1363, %v1363
          %v1396 = vpack.c.bf16 %v1364, %v1364
          %v1397 = vpack.c.bf16 %v1365, %v1365
          %v1398 = vpack.c.bf16 %v1366, %v1366
          %v1399 = vpack.c.bf16 %v1367, %v1367
          %v1400 = vpack.c.bf16 %v1368, %v1368
          %v1401 = vpack.c.bf16 %v1369, %v1369
          %v1402 = vpack.c.bf16 %v1370, %v1370
          %v1403 = vpack.c.bf16 %v1371, %v1371
          %1404 = vst [vmem:[#allocation2] sm:$0xf] %v1372
          %1405 = vst [vmem:[#allocation2 + $0x4] sm:$0xf] %v1373
          %1406 = vst [vmem:[#allocation2 + $0x8] sm:$0xf] %v1374
          %1407 = vst [vmem:[#allocation2 + $0xc] sm:$0xf] %v1375
          %1408 = vst [vmem:[#allocation2 + $0x10] sm:$0xf] %v1376
          %1409 = vst [vmem:[#allocation2 + $0x14] sm:$0xf] %v1377
          %1410 = vst [vmem:[#allocation2 + $0x18] sm:$0xf] %v1378
          %1411 = vst [vmem:[#allocation2 + $0x1c] sm:$0xf] %v1379
          %1412 = vst [vmem:[#allocation2 + $0x20] sm:$0xf] %v1380
          %1413 = vst [vmem:[#allocation2 + $0x24] sm:$0xf] %v1381
          %1414 = vst [vmem:[#allocation2 + $0x28] sm:$0xf] %v1382
          %1415 = vst [vmem:[#allocation2 + $0x2c] sm:$0xf] %v1383
          %1416 = vst [vmem:[#allocation2 + $0x30] sm:$0xf] %v1384
          %1417 = vst [vmem:[#allocation2 + $0x34] sm:$0xf] %v1385
          %1418 = vst [vmem:[#allocation2 + $0x38] sm:$0xf] %v1386
          %1419 = vst [vmem:[#allocation2 + $0x3c] sm:$0xf] %v1387
          %1420 = vst [vmem:[#allocation2 + $0x40] sm:$0xf] %v1388
          %1421 = vst [vmem:[#allocation2 + $0x44] sm:$0xf] %v1389
          %1422 = vst [vmem:[#allocation2 + $0x48] sm:$0xf] %v1390
          %1423 = vst [vmem:[#allocation2 + $0x4c] sm:$0xf] %v1391
          %1424 = vst [vmem:[#allocation2 + $0x50] sm:$0xf] %v1392
          %1425 = vst [vmem:[#allocation2 + $0x54] sm:$0xf] %v1393
          %1426 = vst [vmem:[#allocation2 + $0x58] sm:$0xf] %v1394
          %1427 = vst [vmem:[#allocation2 + $0x5c] sm:$0xf] %v1395
          %1428 = vst [vmem:[#allocation2 + $0x60] sm:$0xf] %v1396
          %1429 = vst [vmem:[#allocation2 + $0x64] sm:$0xf] %v1397
          %1430 = vst [vmem:[#allocation2 + $0x68] sm:$0xf] %v1398
          %1431 = vst [vmem:[#allocation2 + $0x6c] sm:$0xf] %v1399
          %1432 = vst [vmem:[#allocation2 + $0x70] sm:$0xf] %v1400
          %1433 = vst [vmem:[#allocation2 + $0x74] sm:$0xf] %v1401
          %1434 = vst [vmem:[#allocation2 + $0x78] sm:$0xf] %v1402
          %1435 = vst [vmem:[#allocation2 + $0x7c] sm:$0xf] %v1403
          %v1436 = vld [vmem:[%s9] sm:$0xf]
          %v1437 = vld [vmem:[%s9 + $0x4] sm:$0xf]
          %v1438 = vld [vmem:[%s9 + $0x8] sm:$0xf]
          %v1439 = vld [vmem:[%s9 + $0xc] sm:$0xf]
          %v1440 = vld [vmem:[%s9 + $0x10] sm:$0xf]
          %v1441 = vld [vmem:[%s9 + $0x14] sm:$0xf]
          %v1442 = vld [vmem:[%s9 + $0x18] sm:$0xf]
          %v1443 = vld [vmem:[%s9 + $0x1c] sm:$0xf]
          %v1444 = vld [vmem:[%s9 + $0x20] sm:$0xf]
          %v1445 = vld [vmem:[%s9 + $0x24] sm:$0xf]
          %v1446 = vld [vmem:[%s9 + $0x28] sm:$0xf]
          %v1447 = vld [vmem:[%s9 + $0x2c] sm:$0xf]
          %v1448 = vld [vmem:[%s9 + $0x30] sm:$0xf]
          %v1449 = vld [vmem:[%s9 + $0x34] sm:$0xf]
          %v1450 = vld [vmem:[%s9 + $0x38] sm:$0xf]
          %v1451 = vld [vmem:[%s9 + $0x3c] sm:$0xf]
          %v1452 = vld [vmem:[%s10] sm:$0xff]
          %v1453 = vld [vmem:[%s10 + $0x8] sm:$0xff]
          %v1454 = vld [vmem:[%s10 + $0x10] sm:$0xff]
          %v1455 = vld [vmem:[%s10 + $0x18] sm:$0xff]
          %v1456 = vld [vmem:[%s10 + $0x20] sm:$0xff]
          %v1457 = vld [vmem:[%s10 + $0x28] sm:$0xff]
          %v1458 = vld [vmem:[%s10 + $0x30] sm:$0xff]
          %v1459 = vld [vmem:[%s10 + $0x38] sm:$0xff]
          %v1460 = vld [vmem:[%s10 + $0x40] sm:$0xff]
          %v1461 = vld [vmem:[%s10 + $0x48] sm:$0xff]
          %v1462 = vld [vmem:[%s10 + $0x50] sm:$0xff]
          %v1463 = vld [vmem:[%s10 + $0x58] sm:$0xff]
          %v1464 = vld [vmem:[%s10 + $0x60] sm:$0xff]
          %v1465 = vld [vmem:[%s10 + $0x68] sm:$0xff]
          %v1466 = vld [vmem:[%s10 + $0x70] sm:$0xff]
          %v1467 = vld [vmem:[%s10 + $0x78] sm:$0xff]
          %1469 = vset.pattern.permute.xlu0 0
          %1470 = vperm.xlu0 %1469, %v1452
          %v1471 = vpop.permute.xlu0 %1470
          %1474 = vset.pattern.permute.xlu0 0
          %1475 = vperm.xlu0 %1474, %v1453
          %v1476 = vpop.permute.xlu0 %1475
          %1479 = vset.pattern.permute.xlu0 0
          %1480 = vperm.xlu0 %1479, %v1454
          %v1481 = vpop.permute.xlu0 %1480
          %1484 = vset.pattern.permute.xlu0 0
          %1485 = vperm.xlu0 %1484, %v1455
          %v1486 = vpop.permute.xlu0 %1485
          %1489 = vset.pattern.permute.xlu0 0
          %1490 = vperm.xlu0 %1489, %v1456
          %v1491 = vpop.permute.xlu0 %1490
          %1494 = vset.pattern.permute.xlu0 0
          %1495 = vperm.xlu0 %1494, %v1457
          %v1496 = vpop.permute.xlu0 %1495
          %1499 = vset.pattern.permute.xlu0 0
          %1500 = vperm.xlu0 %1499, %v1458
          %v1501 = vpop.permute.xlu0 %1500
          %1504 = vset.pattern.permute.xlu0 0
          %1505 = vperm.xlu0 %1504, %v1459
          %v1506 = vpop.permute.xlu0 %1505
          %1509 = vset.pattern.permute.xlu0 0
          %1510 = vperm.xlu0 %1509, %v1460
          %v1511 = vpop.permute.xlu0 %1510
          %1514 = vset.pattern.permute.xlu0 0
          %1515 = vperm.xlu0 %1514, %v1461
          %v1516 = vpop.permute.xlu0 %1515
          %1519 = vset.pattern.permute.xlu0 0
          %1520 = vperm.xlu0 %1519, %v1462
          %v1521 = vpop.permute.xlu0 %1520
          %1524 = vset.pattern.permute.xlu0 0
          %1525 = vperm.xlu0 %1524, %v1463
          %v1526 = vpop.permute.xlu0 %1525
          %1529 = vset.pattern.permute.xlu0 0
          %1530 = vperm.xlu0 %1529, %v1464
          %v1531 = vpop.permute.xlu0 %1530
          %1534 = vset.pattern.permute.xlu0 0
          %1535 = vperm.xlu0 %1534, %v1465
          %v1536 = vpop.permute.xlu0 %1535
          %1539 = vset.pattern.permute.xlu0 0
          %1540 = vperm.xlu0 %1539, %v1466
          %v1541 = vpop.permute.xlu0 %1540
          %1544 = vset.pattern.permute.xlu0 0
          %1545 = vperm.xlu0 %1544, %v1467
          %v1546 = vpop.permute.xlu0 %1545
          %v1564 = vunpack.c.l.b16 %v1436
          %v1565 = vunpack.c.l.b16 %v1437
          %v1566 = vunpack.c.l.b16 %v1438
          %v1567 = vunpack.c.l.b16 %v1439
          %v1568 = vunpack.c.l.b16 %v1440
          %v1569 = vunpack.c.l.b16 %v1441
          %v1570 = vunpack.c.l.b16 %v1442
          %v1571 = vunpack.c.l.b16 %v1443
          %v1572 = vunpack.c.l.b16 %v1444
          %v1573 = vunpack.c.l.b16 %v1445
          %v1574 = vunpack.c.l.b16 %v1446
          %v1575 = vunpack.c.l.b16 %v1447
          %v1576 = vunpack.c.l.b16 %v1448
          %v1577 = vunpack.c.l.b16 %v1449
          %v1578 = vunpack.c.l.b16 %v1450
          %v1579 = vunpack.c.l.b16 %v1451
          %v1580 = vpack.c.b16 %v1565, %v1564
          %v1581 = vpack.c.b16 %v1567, %v1566
          %v1582 = vpack.c.b16 %v1569, %v1568
          %v1583 = vpack.c.b16 %v1571, %v1570
          %v1584 = vpack.c.b16 %v1573, %v1572
          %v1585 = vpack.c.b16 %v1575, %v1574
          %v1586 = vpack.c.b16 %v1577, %v1576
          %v1587 = vpack.c.b16 %v1579, %v1578
          %1596 = vmatpush.bf16.msra.mxu0 %v1048
          %1597 = vmatpush.bf16.msra.mxu0 %v1046
          %1598 = vmatpush.bf16.msra.mxu0 %v1044
          %1599 = vmatpush.bf16.msra.mxu0 %v1042
          %1600 = vmatpush.bf16.msra.mxu0 %v1040
          %1601 = vmatpush.bf16.msra.mxu0 %v1038
          %1602 = vmatpush.bf16.msra.mxu0 %v1036
          %1603 = vmatpush.bf16.msra.mxu0 %v1034
          %1604 = vmatmul.bf16.gmra.mxu0 %v1580
          %v1605 = vpop.f32.mrf.mxu0
          %v1606 = vadd.f32 %v1471, %v1605
          %v1607 = vpop.f32.mrf.mxu0
          %v1608 = vadd.f32 %v1476, %v1607
          %1609 = vmatmul.bf16.gmra.mxu0 %v1581
          %v1610 = vpop.f32.mrf.mxu0
          %v1611 = vadd.f32 %v1481, %v1610
          %v1612 = vpop.f32.mrf.mxu0
          %v1613 = vadd.f32 %v1486, %v1612
          %1614 = vmatmul.bf16.gmra.mxu0 %v1582
          %v1615 = vpop.f32.mrf.mxu0
          %v1616 = vadd.f32 %v1491, %v1615
          %v1617 = vpop.f32.mrf.mxu0
          %v1618 = vadd.f32 %v1496, %v1617
          %1619 = vmatmul.bf16.gmra.mxu0 %v1583
          %v1620 = vpop.f32.mrf.mxu0
          %v1621 = vadd.f32 %v1501, %v1620
          %v1622 = vpop.f32.mrf.mxu0
          %v1623 = vadd.f32 %v1506, %v1622
          %1624 = vmatmul.bf16.gmra.mxu0 %v1584
          %v1625 = vpop.f32.mrf.mxu0
          %v1626 = vadd.f32 %v1511, %v1625
          %v1627 = vpop.f32.mrf.mxu0
          %v1628 = vadd.f32 %v1516, %v1627
          %1629 = vmatmul.bf16.gmra.mxu0 %v1585
          %v1630 = vpop.f32.mrf.mxu0
          %v1631 = vadd.f32 %v1521, %v1630
          %v1632 = vpop.f32.mrf.mxu0
          %v1633 = vadd.f32 %v1526, %v1632
          %1634 = vmatmul.bf16.gmra.mxu0 %v1586
          %v1635 = vpop.f32.mrf.mxu0
          %v1636 = vadd.f32 %v1531, %v1635
          %v1637 = vpop.f32.mrf.mxu0
          %v1638 = vadd.f32 %v1536, %v1637
          %1639 = vmatmul.bf16.gmra.mxu0 %v1587
          %v1640 = vpop.f32.mrf.mxu0
          %v1641 = vadd.f32 %v1541, %v1640
          %v1642 = vpop.f32.mrf.mxu0
          %v1643 = vadd.f32 %v1546, %v1642
          %1644 = vdwg.mxu0
          %1645 = vmatpush.bf16.msra.mxu0 %v1049
          %1646 = vmatpush.bf16.msra.mxu0 %v1047
          %1647 = vmatpush.bf16.msra.mxu0 %v1045
          %1648 = vmatpush.bf16.msra.mxu0 %v1043
          %1649 = vmatpush.bf16.msra.mxu0 %v1041
          %1650 = vmatpush.bf16.msra.mxu0 %v1039
          %1651 = vmatpush.bf16.msra.mxu0 %v1037
          %1652 = vmatpush.bf16.msra.mxu0 %v1035
          %1653 = vmatmul.bf16.gmra.mxu0 %v1580
          %v1654 = vpop.f32.mrf.mxu0
          %v1655 = vadd.f32 %v1471, %v1654
          %v1656 = vpop.f32.mrf.mxu0
          %v1657 = vadd.f32 %v1476, %v1656
          %1658 = vmatmul.bf16.gmra.mxu0 %v1581
          %v1659 = vpop.f32.mrf.mxu0
          %v1660 = vadd.f32 %v1481, %v1659
          %v1661 = vpop.f32.mrf.mxu0
          %v1662 = vadd.f32 %v1486, %v1661
          %1663 = vmatmul.bf16.gmra.mxu0 %v1582
          %v1664 = vpop.f32.mrf.mxu0
          %v1665 = vadd.f32 %v1491, %v1664
          %v1666 = vpop.f32.mrf.mxu0
          %v1667 = vadd.f32 %v1496, %v1666
          %1668 = vmatmul.bf16.gmra.mxu0 %v1583
          %v1669 = vpop.f32.mrf.mxu0
          %v1670 = vadd.f32 %v1501, %v1669
          %v1671 = vpop.f32.mrf.mxu0
          %v1672 = vadd.f32 %v1506, %v1671
          %1673 = vmatmul.bf16.gmra.mxu0 %v1584
          %v1674 = vpop.f32.mrf.mxu0
          %v1675 = vadd.f32 %v1511, %v1674
          %v1676 = vpop.f32.mrf.mxu0
          %v1677 = vadd.f32 %v1516, %v1676
          %1678 = vmatmul.bf16.gmra.mxu0 %v1585
          %v1679 = vpop.f32.mrf.mxu0
          %v1680 = vadd.f32 %v1521, %v1679
          %v1681 = vpop.f32.mrf.mxu0
          %v1682 = vadd.f32 %v1526, %v1681
          %1683 = vmatmul.bf16.gmra.mxu0 %v1586
          %v1684 = vpop.f32.mrf.mxu0
          %v1685 = vadd.f32 %v1531, %v1684
          %v1686 = vpop.f32.mrf.mxu0
          %v1687 = vadd.f32 %v1536, %v1686
          %1688 = vmatmul.bf16.gmra.mxu0 %v1587
          %v1689 = vpop.f32.mrf.mxu0
          %v1690 = vadd.f32 %v1541, %v1689
          %v1691 = vpop.f32.mrf.mxu0
          %v1692 = vadd.f32 %v1546, %v1691
          %1693 = vdwg.mxu0
          %v1694 = vpack.c.bf16 %v1655, %v1606
          %v1695 = vpack.c.bf16 %v1657, %v1608
          %v1696 = vpack.c.bf16 %v1660, %v1611
          %v1697 = vpack.c.bf16 %v1662, %v1613
          %v1698 = vpack.c.bf16 %v1665, %v1616
          %v1699 = vpack.c.bf16 %v1667, %v1618
          %v1700 = vpack.c.bf16 %v1670, %v1621
          %v1701 = vpack.c.bf16 %v1672, %v1623
          %v1702 = vpack.c.bf16 %v1675, %v1626
          %v1703 = vpack.c.bf16 %v1677, %v1628
          %v1704 = vpack.c.bf16 %v1680, %v1631
          %v1705 = vpack.c.bf16 %v1682, %v1633
          %v1706 = vpack.c.bf16 %v1685, %v1636
          %v1707 = vpack.c.bf16 %v1687, %v1638
          %v1708 = vpack.c.bf16 %v1690, %v1641
          %v1709 = vpack.c.bf16 %v1692, %v1643
          %1710 = vst [vmem:[#allocation3] sm:$0xff] %v1694
          %1711 = vst [vmem:[#allocation3 + $0x8] sm:$0xff] %v1695
          %1712 = vst [vmem:[#allocation3 + $0x10] sm:$0xff] %v1696
          %1713 = vst [vmem:[#allocation3 + $0x18] sm:$0xff] %v1697
          %1714 = vst [vmem:[#allocation3 + $0x20] sm:$0xff] %v1698
          %1715 = vst [vmem:[#allocation3 + $0x28] sm:$0xff] %v1699
          %1716 = vst [vmem:[#allocation3 + $0x30] sm:$0xff] %v1700
          %1717 = vst [vmem:[#allocation3 + $0x38] sm:$0xff] %v1701
          %1718 = vst [vmem:[#allocation3 + $0x40] sm:$0xff] %v1702
          %1719 = vst [vmem:[#allocation3 + $0x48] sm:$0xff] %v1703
          %1720 = vst [vmem:[#allocation3 + $0x50] sm:$0xff] %v1704
          %1721 = vst [vmem:[#allocation3 + $0x58] sm:$0xff] %v1705
          %1722 = vst [vmem:[#allocation3 + $0x60] sm:$0xff] %v1706
          %1723 = vst [vmem:[#allocation3 + $0x68] sm:$0xff] %v1707
          %1724 = vst [vmem:[#allocation3 + $0x70] sm:$0xff] %v1708
          %1725 = vst [vmem:[#allocation3 + $0x78] sm:$0xff] %v1709
        $region80: #{tpu_custom_call.1} parent=71 // pred_fallthru
          _
        %s1726 = smul.u32 %s35, 128
        %s1727 = sshra.s32 %s1726, 7
        %s1728 = sand.u32 %s1726, 127
        %s1729 = smul.addr %s1727, 8
        %s1730 = scalar_lea.vmem %s431, %s1729 [#allocation6]
        %v1731 = vld [vmem:[%s1730] sm:$0xff]
        %v1732 = vld [vmem:[%s1730 + $0x10] sm:$0xff]
        %v1733 = vld [vmem:[%s1730 + $0x20] sm:$0xff]
        %v1734 = vld [vmem:[%s1730 + $0x30] sm:$0xff]
        %v1735 = vld [vmem:[%s1730 + $0x40] sm:$0xff]
        %v1736 = vld [vmem:[%s1730 + $0x50] sm:$0xff]
        %v1737 = vld [vmem:[%s1730 + $0x60] sm:$0xff]
        %v1738 = vld [vmem:[%s1730 + $0x70] sm:$0xff]
        %v1739 = vld [vmem:[%s1730 + $0x80] sm:$0xff]
        %v1740 = vld [vmem:[%s1730 + $0x90] sm:$0xff]
        %v1741 = vld [vmem:[%s1730 + $0xa0] sm:$0xff]
        %v1742 = vld [vmem:[%s1730 + $0xb0] sm:$0xff]
        %v1743 = vld [vmem:[%s1730 + $0xc0] sm:$0xff]
        %v1744 = vld [vmem:[%s1730 + $0xd0] sm:$0xff]
        %v1745 = vld [vmem:[%s1730 + $0xe0] sm:$0xff]
        %v1746 = vld [vmem:[%s1730 + $0xf0] sm:$0xff]
        %v1747 = vld [vmem:[#allocation4] sm:$0xff]
        %v1748 = vld [vmem:[#allocation4 + $0x8] sm:$0xff]
        %v1749 = vld [vmem:[#allocation4 + $0x10] sm:$0xff]
        %v1750 = vld [vmem:[#allocation4 + $0x18] sm:$0xff]
        %v1751 = vld [vmem:[#allocation4 + $0x20] sm:$0xff]
        %v1752 = vld [vmem:[#allocation4 + $0x28] sm:$0xff]
        %v1753 = vld [vmem:[#allocation4 + $0x30] sm:$0xff]
        %v1754 = vld [vmem:[#allocation4 + $0x38] sm:$0xff]
        %v1755 = vld [vmem:[#allocation4 + $0x40] sm:$0xff]
        %v1756 = vld [vmem:[#allocation4 + $0x48] sm:$0xff]
        %v1757 = vld [vmem:[#allocation4 + $0x50] sm:$0xff]
        %v1758 = vld [vmem:[#allocation4 + $0x58] sm:$0xff]
        %v1759 = vld [vmem:[#allocation4 + $0x60] sm:$0xff]
        %v1760 = vld [vmem:[#allocation4 + $0x68] sm:$0xff]
        %v1761 = vld [vmem:[#allocation4 + $0x70] sm:$0xff]
        %v1762 = vld [vmem:[#allocation4 + $0x78] sm:$0xff]
        %1764 = vset.pattern.permute.xlu0 0
        %1765 = vperm.xlu0 %1764, %v1747
        %v1766 = vpop.permute.xlu0 %1765
        %1769 = vset.pattern.permute.xlu0 0
        %1770 = vperm.xlu0 %1769, %v1748
        %v1771 = vpop.permute.xlu0 %1770
        %1774 = vset.pattern.permute.xlu0 0
        %1775 = vperm.xlu0 %1774, %v1749
        %v1776 = vpop.permute.xlu0 %1775
        %1779 = vset.pattern.permute.xlu0 0
        %1780 = vperm.xlu0 %1779, %v1750
        %v1781 = vpop.permute.xlu0 %1780
        %1784 = vset.pattern.permute.xlu0 0
        %1785 = vperm.xlu0 %1784, %v1751
        %v1786 = vpop.permute.xlu0 %1785
        %1789 = vset.pattern.permute.xlu0 0
        %1790 = vperm.xlu0 %1789, %v1752
        %v1791 = vpop.permute.xlu0 %1790
        %1794 = vset.pattern.permute.xlu0 0
        %1795 = vperm.xlu0 %1794, %v1753
        %v1796 = vpop.permute.xlu0 %1795
        %1799 = vset.pattern.permute.xlu0 0
        %1800 = vperm.xlu0 %1799, %v1754
        %v1801 = vpop.permute.xlu0 %1800
        %1804 = vset.pattern.permute.xlu0 0
        %1805 = vperm.xlu0 %1804, %v1755
        %v1806 = vpop.permute.xlu0 %1805
        %1809 = vset.pattern.permute.xlu0 0
        %1810 = vperm.xlu0 %1809, %v1756
        %v1811 = vpop.permute.xlu0 %1810
        %1814 = vset.pattern.permute.xlu0 0
        %1815 = vperm.xlu0 %1814, %v1757
        %v1816 = vpop.permute.xlu0 %1815
        %1819 = vset.pattern.permute.xlu0 0
        %1820 = vperm.xlu0 %1819, %v1758
        %v1821 = vpop.permute.xlu0 %1820
        %1824 = vset.pattern.permute.xlu0 0
        %1825 = vperm.xlu0 %1824, %v1759
        %v1826 = vpop.permute.xlu0 %1825
        %1829 = vset.pattern.permute.xlu0 0
        %1830 = vperm.xlu0 %1829, %v1760
        %v1831 = vpop.permute.xlu0 %1830
        %1834 = vset.pattern.permute.xlu0 0
        %1835 = vperm.xlu0 %1834, %v1761
        %v1836 = vpop.permute.xlu0 %1835
        %1839 = vset.pattern.permute.xlu0 0
        %1840 = vperm.xlu0 %1839, %v1762
        %v1841 = vpop.permute.xlu0 %1840
        %v1843 = vmul.f32 %v1731, %v1766
        %v1844 = vmul.f32 %v1732, %v1771
        %v1845 = vmul.f32 %v1733, %v1776
        %v1846 = vmul.f32 %v1734, %v1781
        %v1847 = vmul.f32 %v1735, %v1786
        %v1848 = vmul.f32 %v1736, %v1791
        %v1849 = vmul.f32 %v1737, %v1796
        %v1850 = vmul.f32 %v1738, %v1801
        %v1851 = vmul.f32 %v1739, %v1806
        %v1852 = vmul.f32 %v1740, %v1811
        %v1853 = vmul.f32 %v1741, %v1816
        %v1854 = vmul.f32 %v1742, %v1821
        %v1855 = vmul.f32 %v1743, %v1826
        %v1856 = vmul.f32 %v1744, %v1831
        %v1857 = vmul.f32 %v1745, %v1836
        %v1858 = vmul.f32 %v1746, %v1841
        %v1859 = vld [vmem:[#allocation5] sm:$0xff]
        %v1860 = vld [vmem:[#allocation5 + $0x8] sm:$0xff]
        %v1861 = vld [vmem:[#allocation5 + $0x10] sm:$0xff]
        %v1862 = vld [vmem:[#allocation5 + $0x18] sm:$0xff]
        %v1863 = vld [vmem:[#allocation5 + $0x20] sm:$0xff]
        %v1864 = vld [vmem:[#allocation5 + $0x28] sm:$0xff]
        %v1865 = vld [vmem:[#allocation5 + $0x30] sm:$0xff]
        %v1866 = vld [vmem:[#allocation5 + $0x38] sm:$0xff]
        %v1867 = vld [vmem:[#allocation5 + $0x40] sm:$0xff]
        %v1868 = vld [vmem:[#allocation5 + $0x48] sm:$0xff]
        %v1869 = vld [vmem:[#allocation5 + $0x50] sm:$0xff]
        %v1870 = vld [vmem:[#allocation5 + $0x58] sm:$0xff]
        %v1871 = vld [vmem:[#allocation5 + $0x60] sm:$0xff]
        %v1872 = vld [vmem:[#allocation5 + $0x68] sm:$0xff]
        %v1873 = vld [vmem:[#allocation5 + $0x70] sm:$0xff]
        %v1874 = vld [vmem:[#allocation5 + $0x78] sm:$0xff]
        %1876 = vset.pattern.permute.xlu0 0
        %1877 = vperm.xlu0 %1876, %v1859
        %v1878 = vpop.permute.xlu0 %1877
        %1881 = vset.pattern.permute.xlu0 0
        %1882 = vperm.xlu0 %1881, %v1860
        %v1883 = vpop.permute.xlu0 %1882
        %1886 = vset.pattern.permute.xlu0 0
        %1887 = vperm.xlu0 %1886, %v1861
        %v1888 = vpop.permute.xlu0 %1887
        %1891 = vset.pattern.permute.xlu0 0
        %1892 = vperm.xlu0 %1891, %v1862
        %v1893 = vpop.permute.xlu0 %1892
        %1896 = vset.pattern.permute.xlu0 0
        %1897 = vperm.xlu0 %1896, %v1863
        %v1898 = vpop.permute.xlu0 %1897
        %1901 = vset.pattern.permute.xlu0 0
        %1902 = vperm.xlu0 %1901, %v1864
        %v1903 = vpop.permute.xlu0 %1902
        %1906 = vset.pattern.permute.xlu0 0
        %1907 = vperm.xlu0 %1906, %v1865
        %v1908 = vpop.permute.xlu0 %1907
        %1911 = vset.pattern.permute.xlu0 0
        %1912 = vperm.xlu0 %1911, %v1866
        %v1913 = vpop.permute.xlu0 %1912
        %1916 = vset.pattern.permute.xlu0 0
        %1917 = vperm.xlu0 %1916, %v1867
        %v1918 = vpop.permute.xlu0 %1917
        %1921 = vset.pattern.permute.xlu0 0
        %1922 = vperm.xlu0 %1921, %v1868
        %v1923 = vpop.permute.xlu0 %1922
        %1926 = vset.pattern.permute.xlu0 0
        %1927 = vperm.xlu0 %1926, %v1869
        %v1928 = vpop.permute.xlu0 %1927
        %1931 = vset.pattern.permute.xlu0 0
        %1932 = vperm.xlu0 %1931, %v1870
        %v1933 = vpop.permute.xlu0 %1932
        %1936 = vset.pattern.permute.xlu0 0
        %1937 = vperm.xlu0 %1936, %v1871
        %v1938 = vpop.permute.xlu0 %1937
        %1941 = vset.pattern.permute.xlu0 0
        %1942 = vperm.xlu0 %1941, %v1872
        %v1943 = vpop.permute.xlu0 %1942
        %1946 = vset.pattern.permute.xlu0 0
        %1947 = vperm.xlu0 %1946, %v1873
        %v1948 = vpop.permute.xlu0 %1947
        %1951 = vset.pattern.permute.xlu0 0
        %1952 = vperm.xlu0 %1951, %v1874
        %v1953 = vpop.permute.xlu0 %1952
        %v1955 = vadd.f32 %v1843, %v1878
        %v1956 = vadd.f32 %v1844, %v1883
        %v1957 = vadd.f32 %v1845, %v1888
        %v1958 = vadd.f32 %v1846, %v1893
        %v1959 = vadd.f32 %v1847, %v1898
        %v1960 = vadd.f32 %v1848, %v1903
        %v1961 = vadd.f32 %v1849, %v1908
        %v1962 = vadd.f32 %v1850, %v1913
        %v1963 = vadd.f32 %v1851, %v1918
        %v1964 = vadd.f32 %v1852, %v1923
        %v1965 = vadd.f32 %v1853, %v1928
        %v1966 = vadd.f32 %v1854, %v1933
        %v1967 = vadd.f32 %v1855, %v1938
        %v1968 = vadd.f32 %v1856, %v1943
        %v1969 = vadd.f32 %v1857, %v1948
        %v1970 = vadd.f32 %v1858, %v1953
        %v1971 = vpack.c.bf16 %v1956, %v1955
        %v1972 = vpack.c.bf16 %v1958, %v1957
        %v1973 = vpack.c.bf16 %v1960, %v1959
        %v1974 = vpack.c.bf16 %v1962, %v1961
        %v1975 = vpack.c.bf16 %v1964, %v1963
        %v1976 = vpack.c.bf16 %v1966, %v1965
        %v1977 = vpack.c.bf16 %v1968, %v1967
        %v1978 = vpack.c.bf16 %v1970, %v1969
        %v1979 = vld [vmem:[%s5] sm:$0xf]
        %v1980 = vld [vmem:[%s5 + $0x4] sm:$0xf]
        %v1981 = vld [vmem:[%s5 + $0x8] sm:$0xf]
        %v1982 = vld [vmem:[%s5 + $0xc] sm:$0xf]
        %v1983 = vld [vmem:[%s5 + $0x10] sm:$0xf]
        %v1984 = vld [vmem:[%s5 + $0x14] sm:$0xf]
        %v1985 = vld [vmem:[%s5 + $0x18] sm:$0xf]
        %v1986 = vld [vmem:[%s5 + $0x1c] sm:$0xf]
        %v1987 = vld [vmem:[%s5 + $0x20] sm:$0xf]
        %v1988 = vld [vmem:[%s5 + $0x24] sm:$0xf]
        %v1989 = vld [vmem:[%s5 + $0x28] sm:$0xf]
        %v1990 = vld [vmem:[%s5 + $0x2c] sm:$0xf]
        %v1991 = vld [vmem:[%s5 + $0x30] sm:$0xf]
        %v1992 = vld [vmem:[%s5 + $0x34] sm:$0xf]
        %v1993 = vld [vmem:[%s5 + $0x38] sm:$0xf]
        %v1994 = vld [vmem:[%s5 + $0x3c] sm:$0xf]
        %v1995 = vld [vmem:[%s6] sm:$0xff]
        %v1996 = vld [vmem:[%s6 + $0x8] sm:$0xff]
        %v1997 = vld [vmem:[%s6 + $0x10] sm:$0xff]
        %v1998 = vld [vmem:[%s6 + $0x18] sm:$0xff]
        %v1999 = vld [vmem:[%s6 + $0x20] sm:$0xff]
        %v2000 = vld [vmem:[%s6 + $0x28] sm:$0xff]
        %v2001 = vld [vmem:[%s6 + $0x30] sm:$0xff]
        %v2002 = vld [vmem:[%s6 + $0x38] sm:$0xff]
        %v2003 = vld [vmem:[%s6 + $0x40] sm:$0xff]
        %v2004 = vld [vmem:[%s6 + $0x48] sm:$0xff]
        %v2005 = vld [vmem:[%s6 + $0x50] sm:$0xff]
        %v2006 = vld [vmem:[%s6 + $0x58] sm:$0xff]
        %v2007 = vld [vmem:[%s6 + $0x60] sm:$0xff]
        %v2008 = vld [vmem:[%s6 + $0x68] sm:$0xff]
        %v2009 = vld [vmem:[%s6 + $0x70] sm:$0xff]
        %v2010 = vld [vmem:[%s6 + $0x78] sm:$0xff]
        %2012 = vset.pattern.permute.xlu0 0
        %2013 = vperm.xlu0 %2012, %v1995
        %v2014 = vpop.permute.xlu0 %2013
        %2017 = vset.pattern.permute.xlu0 0
        %2018 = vperm.xlu0 %2017, %v1996
        %v2019 = vpop.permute.xlu0 %2018
        %2022 = vset.pattern.permute.xlu0 0
        %2023 = vperm.xlu0 %2022, %v1997
        %v2024 = vpop.permute.xlu0 %2023
        %2027 = vset.pattern.permute.xlu0 0
        %2028 = vperm.xlu0 %2027, %v1998
        %v2029 = vpop.permute.xlu0 %2028
        %2032 = vset.pattern.permute.xlu0 0
        %2033 = vperm.xlu0 %2032, %v1999
        %v2034 = vpop.permute.xlu0 %2033
        %2037 = vset.pattern.permute.xlu0 0
        %2038 = vperm.xlu0 %2037, %v2000
        %v2039 = vpop.permute.xlu0 %2038
        %2042 = vset.pattern.permute.xlu0 0
        %2043 = vperm.xlu0 %2042, %v2001
        %v2044 = vpop.permute.xlu0 %2043
        %2047 = vset.pattern.permute.xlu0 0
        %2048 = vperm.xlu0 %2047, %v2002
        %v2049 = vpop.permute.xlu0 %2048
        %2052 = vset.pattern.permute.xlu0 0
        %2053 = vperm.xlu0 %2052, %v2003
        %v2054 = vpop.permute.xlu0 %2053
        %2057 = vset.pattern.permute.xlu0 0
        %2058 = vperm.xlu0 %2057, %v2004
        %v2059 = vpop.permute.xlu0 %2058
        %2062 = vset.pattern.permute.xlu0 0
        %2063 = vperm.xlu0 %2062, %v2005
        %v2064 = vpop.permute.xlu0 %2063
        %2067 = vset.pattern.permute.xlu0 0
        %2068 = vperm.xlu0 %2067, %v2006
        %v2069 = vpop.permute.xlu0 %2068
        %2072 = vset.pattern.permute.xlu0 0
        %2073 = vperm.xlu0 %2072, %v2007
        %v2074 = vpop.permute.xlu0 %2073
        %2077 = vset.pattern.permute.xlu0 0
        %2078 = vperm.xlu0 %2077, %v2008
        %v2079 = vpop.permute.xlu0 %2078
        %2082 = vset.pattern.permute.xlu0 0
        %2083 = vperm.xlu0 %2082, %v2009
        %v2084 = vpop.permute.xlu0 %2083
        %2087 = vset.pattern.permute.xlu0 0
        %2088 = vperm.xlu0 %2087, %v2010
        %v2089 = vpop.permute.xlu0 %2088
        %v2107 = vunpack.c.l.b16 %v1979
        %v2108 = vunpack.c.l.b16 %v1980
        %v2109 = vunpack.c.l.b16 %v1981
        %v2110 = vunpack.c.l.b16 %v1982
        %v2111 = vunpack.c.l.b16 %v1983
        %v2112 = vunpack.c.l.b16 %v1984
        %v2113 = vunpack.c.l.b16 %v1985
        %v2114 = vunpack.c.l.b16 %v1986
        %v2115 = vunpack.c.l.b16 %v1987
        %v2116 = vunpack.c.l.b16 %v1988
        %v2117 = vunpack.c.l.b16 %v1989
        %v2118 = vunpack.c.l.b16 %v1990
        %v2119 = vunpack.c.l.b16 %v1991
        %v2120 = vunpack.c.l.b16 %v1992
        %v2121 = vunpack.c.l.b16 %v1993
        %v2122 = vunpack.c.l.b16 %v1994
        %v2123 = vpack.c.b16 %v2108, %v2107
        %v2124 = vpack.c.b16 %v2110, %v2109
        %v2125 = vpack.c.b16 %v2112, %v2111
        %v2126 = vpack.c.b16 %v2114, %v2113
        %v2127 = vpack.c.b16 %v2116, %v2115
        %v2128 = vpack.c.b16 %v2118, %v2117
        %v2129 = vpack.c.b16 %v2120, %v2119
        %v2130 = vpack.c.b16 %v2122, %v2121
        %2139 = vmatpush.bf16.msra.mxu0 %v1978
        %2140 = vmatpush.bf16.msra.mxu0 %v1977
        %2141 = vmatpush.bf16.msra.mxu0 %v1976
        %2142 = vmatpush.bf16.msra.mxu0 %v1975
        %2143 = vmatpush.bf16.msra.mxu0 %v1974
        %2144 = vmatpush.bf16.msra.mxu0 %v1973
        %2145 = vmatpush.bf16.msra.mxu0 %v1972
        %2146 = vmatpush.bf16.msra.mxu0 %v1971
        %2147 = vmatmul.bf16.gmra.mxu0 %v2123
        %v2148 = vpop.f32.mrf.mxu0
        %v2149 = vadd.f32 %v2014, %v2148
        %v2150 = vpop.f32.mrf.mxu0
        %v2151 = vadd.f32 %v2019, %v2150
        %2152 = vmatmul.bf16.gmra.mxu0 %v2124
        %v2153 = vpop.f32.mrf.mxu0
        %v2154 = vadd.f32 %v2024, %v2153
        %v2155 = vpop.f32.mrf.mxu0
        %v2156 = vadd.f32 %v2029, %v2155
        %2157 = vmatmul.bf16.gmra.mxu0 %v2125
        %v2158 = vpop.f32.mrf.mxu0
        %v2159 = vadd.f32 %v2034, %v2158
        %v2160 = vpop.f32.mrf.mxu0
        %v2161 = vadd.f32 %v2039, %v2160
        %2162 = vmatmul.bf16.gmra.mxu0 %v2126
        %v2163 = vpop.f32.mrf.mxu0
        %v2164 = vadd.f32 %v2044, %v2163
        %v2165 = vpop.f32.mrf.mxu0
        %v2166 = vadd.f32 %v2049, %v2165
        %2167 = vmatmul.bf16.gmra.mxu0 %v2127
        %v2168 = vpop.f32.mrf.mxu0
        %v2169 = vadd.f32 %v2054, %v2168
        %v2170 = vpop.f32.mrf.mxu0
        %v2171 = vadd.f32 %v2059, %v2170
        %2172 = vmatmul.bf16.gmra.mxu0 %v2128
        %v2173 = vpop.f32.mrf.mxu0
        %v2174 = vadd.f32 %v2064, %v2173
        %v2175 = vpop.f32.mrf.mxu0
        %v2176 = vadd.f32 %v2069, %v2175
        %2177 = vmatmul.bf16.gmra.mxu0 %v2129
        %v2178 = vpop.f32.mrf.mxu0
        %v2179 = vadd.f32 %v2074, %v2178
        %v2180 = vpop.f32.mrf.mxu0
        %v2181 = vadd.f32 %v2079, %v2180
        %2182 = vmatmul.bf16.gmra.mxu0 %v2130
        %v2183 = vpop.f32.mrf.mxu0
        %v2184 = vadd.f32 %v2084, %v2183
        %v2185 = vpop.f32.mrf.mxu0
        %v2186 = vadd.f32 %v2089, %v2185
        %2187 = vdwg.mxu0
        %v2188 = vpack.c.bf16 %v2151, %v2149
        %v2189 = vpack.c.bf16 %v2156, %v2154
        %v2190 = vpack.c.bf16 %v2161, %v2159
        %v2191 = vpack.c.bf16 %v2166, %v2164
        %v2192 = vpack.c.bf16 %v2171, %v2169
        %v2193 = vpack.c.bf16 %v2176, %v2174
        %v2194 = vpack.c.bf16 %v2181, %v2179
        %v2195 = vpack.c.bf16 %v2186, %v2184
        %v2196 = vld [vmem:[#allocation2] sm:$0xf]
        %v2197 = vld [vmem:[#allocation2 + $0x4] sm:$0xf]
        %v2198 = vld [vmem:[#allocation2 + $0x8] sm:$0xf]
        %v2199 = vld [vmem:[#allocation2 + $0xc] sm:$0xf]
        %v2200 = vld [vmem:[#allocation2 + $0x10] sm:$0xf]
        %v2201 = vld [vmem:[#allocation2 + $0x14] sm:$0xf]
        %v2202 = vld [vmem:[#allocation2 + $0x18] sm:$0xf]
        %v2203 = vld [vmem:[#allocation2 + $0x1c] sm:$0xf]
        %v2204 = vld [vmem:[#allocation2 + $0x20] sm:$0xf]
        %v2205 = vld [vmem:[#allocation2 + $0x24] sm:$0xf]
        %v2206 = vld [vmem:[#allocation2 + $0x28] sm:$0xf]
        %v2207 = vld [vmem:[#allocation2 + $0x2c] sm:$0xf]
        %v2208 = vld [vmem:[#allocation2 + $0x30] sm:$0xf]
        %v2209 = vld [vmem:[#allocation2 + $0x34] sm:$0xf]
        %v2210 = vld [vmem:[#allocation2 + $0x38] sm:$0xf]
        %v2211 = vld [vmem:[#allocation2 + $0x3c] sm:$0xf]
        %v2212 = vld [vmem:[#allocation2 + $0x40] sm:$0xf]
        %v2213 = vld [vmem:[#allocation2 + $0x44] sm:$0xf]
        %v2214 = vld [vmem:[#allocation2 + $0x48] sm:$0xf]
        %v2215 = vld [vmem:[#allocation2 + $0x4c] sm:$0xf]
        %v2216 = vld [vmem:[#allocation2 + $0x50] sm:$0xf]
        %v2217 = vld [vmem:[#allocation2 + $0x54] sm:$0xf]
        %v2218 = vld [vmem:[#allocation2 + $0x58] sm:$0xf]
        %v2219 = vld [vmem:[#allocation2 + $0x5c] sm:$0xf]
        %v2220 = vld [vmem:[#allocation2 + $0x60] sm:$0xf]
        %v2221 = vld [vmem:[#allocation2 + $0x64] sm:$0xf]
        %v2222 = vld [vmem:[#allocation2 + $0x68] sm:$0xf]
        %v2223 = vld [vmem:[#allocation2 + $0x6c] sm:$0xf]
        %v2224 = vld [vmem:[#allocation2 + $0x70] sm:$0xf]
        %v2225 = vld [vmem:[#allocation2 + $0x74] sm:$0xf]
        %v2226 = vld [vmem:[#allocation2 + $0x78] sm:$0xf]
        %v2227 = vld [vmem:[#allocation2 + $0x7c] sm:$0xf]
        %v2260 = vunpack.c.l.b16 %v2196
        %v2261 = vunpack.c.l.b16 %v2197
        %v2262 = vunpack.c.l.b16 %v2198
        %v2263 = vunpack.c.l.b16 %v2199
        %v2264 = vunpack.c.l.b16 %v2200
        %v2265 = vunpack.c.l.b16 %v2201
        %v2266 = vunpack.c.l.b16 %v2202
        %v2267 = vunpack.c.l.b16 %v2203
        %v2268 = vunpack.c.l.b16 %v2204
        %v2269 = vunpack.c.l.b16 %v2205
        %v2270 = vunpack.c.l.b16 %v2206
        %v2271 = vunpack.c.l.b16 %v2207
        %v2272 = vunpack.c.l.b16 %v2208
        %v2273 = vunpack.c.l.b16 %v2209
        %v2274 = vunpack.c.l.b16 %v2210
        %v2275 = vunpack.c.l.b16 %v2211
        %v2276 = vunpack.c.l.b16 %v2212
        %v2277 = vunpack.c.l.b16 %v2213
        %v2278 = vunpack.c.l.b16 %v2214
        %v2279 = vunpack.c.l.b16 %v2215
        %v2280 = vunpack.c.l.b16 %v2216
        %v2281 = vunpack.c.l.b16 %v2217
        %v2282 = vunpack.c.l.b16 %v2218
        %v2283 = vunpack.c.l.b16 %v2219
        %v2284 = vunpack.c.l.b16 %v2220
        %v2285 = vunpack.c.l.b16 %v2221
        %v2286 = vunpack.c.l.b16 %v2222
        %v2287 = vunpack.c.l.b16 %v2223
        %v2288 = vunpack.c.l.b16 %v2224
        %v2289 = vunpack.c.l.b16 %v2225
        %v2290 = vunpack.c.l.b16 %v2226
        %v2291 = vunpack.c.l.b16 %v2227
        %v2292 = vpack.c.b16 %v2261, %v2260
        %v2293 = vpack.c.b16 %v2263, %v2262
        %v2294 = vpack.c.b16 %v2265, %v2264
        %v2295 = vpack.c.b16 %v2267, %v2266
        %v2296 = vpack.c.b16 %v2269, %v2268
        %v2297 = vpack.c.b16 %v2271, %v2270
        %v2298 = vpack.c.b16 %v2273, %v2272
        %v2299 = vpack.c.b16 %v2275, %v2274
        %v2300 = vpack.c.b16 %v2277, %v2276
        %v2301 = vpack.c.b16 %v2279, %v2278
        %v2302 = vpack.c.b16 %v2281, %v2280
        %v2303 = vpack.c.b16 %v2283, %v2282
        %v2304 = vpack.c.b16 %v2285, %v2284
        %v2305 = vpack.c.b16 %v2287, %v2286
        %v2306 = vpack.c.b16 %v2289, %v2288
        %v2307 = vpack.c.b16 %v2291, %v2290
        %2324 = vmatpush.bf16.msra.mxu0 %v2195
        %2325 = vmatpush.bf16.msra.mxu0 %v2194
        %2326 = vmatpush.bf16.msra.mxu0 %v2193
        %2327 = vmatpush.bf16.msra.mxu0 %v2192
        %2328 = vmatpush.bf16.msra.mxu0 %v2191
        %2329 = vmatpush.bf16.msra.mxu0 %v2190
        %2330 = vmatpush.bf16.msra.mxu0 %v2189
        %2331 = vmatpush.bf16.msra.mxu0 %v2188
        %2332 = vmatmul.bf16.gmra.mxu0 %v2292
        %v2333 = vpop.f32.mrf.mxu0
        %v2334 = vadd.f32 0.0, %v2333
        %v2335 = vpop.f32.mrf.mxu0
        %v2336 = vadd.f32 0.0, %v2335
        %2337 = vmatmul.bf16.gmra.mxu0 %v2293
        %v2338 = vpop.f32.mrf.mxu0
        %v2339 = vadd.f32 0.0, %v2338
        %v2340 = vpop.f32.mrf.mxu0
        %v2341 = vadd.f32 0.0, %v2340
        %2342 = vmatmul.bf16.gmra.mxu0 %v2294
        %v2343 = vpop.f32.mrf.mxu0
        %v2344 = vadd.f32 0.0, %v2343
        %v2345 = vpop.f32.mrf.mxu0
        %v2346 = vadd.f32 0.0, %v2345
        %2347 = vmatmul.bf16.gmra.mxu0 %v2295
        %v2348 = vpop.f32.mrf.mxu0
        %v2349 = vadd.f32 0.0, %v2348
        %v2350 = vpop.f32.mrf.mxu0
        %v2351 = vadd.f32 0.0, %v2350
        %2352 = vmatmul.bf16.gmra.mxu0 %v2296
        %v2353 = vpop.f32.mrf.mxu0
        %v2354 = vadd.f32 0.0, %v2353
        %v2355 = vpop.f32.mrf.mxu0
        %v2356 = vadd.f32 0.0, %v2355
        %2357 = vmatmul.bf16.gmra.mxu0 %v2297
        %v2358 = vpop.f32.mrf.mxu0
        %v2359 = vadd.f32 0.0, %v2358
        %v2360 = vpop.f32.mrf.mxu0
        %v2361 = vadd.f32 0.0, %v2360
        %2362 = vmatmul.bf16.gmra.mxu0 %v2298
        %v2363 = vpop.f32.mrf.mxu0
        %v2364 = vadd.f32 0.0, %v2363
        %v2365 = vpop.f32.mrf.mxu0
        %v2366 = vadd.f32 0.0, %v2365
        %2367 = vmatmul.bf16.gmra.mxu0 %v2299
        %v2368 = vpop.f32.mrf.mxu0
        %v2369 = vadd.f32 0.0, %v2368
        %v2370 = vpop.f32.mrf.mxu0
        %v2371 = vadd.f32 0.0, %v2370
        %2372 = vmatmul.bf16.gmra.mxu0 %v2300
        %v2373 = vpop.f32.mrf.mxu0
        %v2374 = vadd.f32 0.0, %v2373
        %v2375 = vpop.f32.mrf.mxu0
        %v2376 = vadd.f32 0.0, %v2375
        %2377 = vmatmul.bf16.gmra.mxu0 %v2301
        %v2378 = vpop.f32.mrf.mxu0
        %v2379 = vadd.f32 0.0, %v2378
        %v2380 = vpop.f32.mrf.mxu0
        %v2381 = vadd.f32 0.0, %v2380
        %2382 = vmatmul.bf16.gmra.mxu0 %v2302
        %v2383 = vpop.f32.mrf.mxu0
        %v2384 = vadd.f32 0.0, %v2383
        %v2385 = vpop.f32.mrf.mxu0
        %v2386 = vadd.f32 0.0, %v2385
        %2387 = vmatmul.bf16.gmra.mxu0 %v2303
        %v2388 = vpop.f32.mrf.mxu0
        %v2389 = vadd.f32 0.0, %v2388
        %v2390 = vpop.f32.mrf.mxu0
        %v2391 = vadd.f32 0.0, %v2390
        %2392 = vmatmul.bf16.gmra.mxu0 %v2304
        %v2393 = vpop.f32.mrf.mxu0
        %v2394 = vadd.f32 0.0, %v2393
        %v2395 = vpop.f32.mrf.mxu0
        %v2396 = vadd.f32 0.0, %v2395
        %2397 = vmatmul.bf16.gmra.mxu0 %v2305
        %v2398 = vpop.f32.mrf.mxu0
        %v2399 = vadd.f32 0.0, %v2398
        %v2400 = vpop.f32.mrf.mxu0
        %v2401 = vadd.f32 0.0, %v2400
        %2402 = vmatmul.bf16.gmra.mxu0 %v2306
        %v2403 = vpop.f32.mrf.mxu0
        %v2404 = vadd.f32 0.0, %v2403
        %v2405 = vpop.f32.mrf.mxu0
        %v2406 = vadd.f32 0.0, %v2405
        %2407 = vmatmul.bf16.gmra.mxu0 %v2307
        %v2408 = vpop.f32.mrf.mxu0
        %v2409 = vadd.f32 0.0, %v2408
        %v2410 = vpop.f32.mrf.mxu0
        %v2411 = vadd.f32 0.0, %v2410
        %2412 = vdwg.mxu0
        %v2413 = vmax.f32 %v2334, %v2344
        %v2414 = vmax.f32 %v2336, %v2346
        %v2415 = vmax.f32 %v2339, %v2349
        %v2416 = vmax.f32 %v2341, %v2351
        %v2417 = vmax.f32 %v2413, %v2354
        %v2418 = vmax.f32 %v2414, %v2356
        %v2419 = vmax.f32 %v2415, %v2359
        %v2420 = vmax.f32 %v2416, %v2361
        %v2421 = vmax.f32 %v2417, %v2364
        %v2422 = vmax.f32 %v2418, %v2366
        %v2423 = vmax.f32 %v2419, %v2369
        %v2424 = vmax.f32 %v2420, %v2371
        %v2425 = vmax.f32 %v2421, %v2374
        %v2426 = vmax.f32 %v2422, %v2376
        %v2427 = vmax.f32 %v2423, %v2379
        %v2428 = vmax.f32 %v2424, %v2381
        %v2429 = vmax.f32 %v2425, %v2384
        %v2430 = vmax.f32 %v2426, %v2386
        %v2431 = vmax.f32 %v2427, %v2389
        %v2432 = vmax.f32 %v2428, %v2391
        %v2433 = vmax.f32 %v2429, %v2394
        %v2434 = vmax.f32 %v2430, %v2396
        %v2435 = vmax.f32 %v2431, %v2399
        %v2436 = vmax.f32 %v2432, %v2401
        %v2437 = vmax.f32 %v2433, %v2404
        %v2438 = vmax.f32 %v2434, %v2406
        %v2439 = vmax.f32 %v2435, %v2409
        %v2440 = vmax.f32 %v2436, %v2411
        %v2441 = vmax.f32 %v2437, %v2438
        %v2442 = vmax.f32 %v2439, %v2440
        %v2443 = vmax.f32 %v2441, %v2442
        %v2444 = vrot.slane %v2443, 4
        %v2445 = vmax.f32 %v2443, %v2444
        %v2446 = vrot.slane %v2445, 2
        %v2447 = vmax.f32 %v2445, %v2446
        %v2448 = vrot.slane %v2447, 1
        %v2449 = vmax.f32 %v2447, %v2448
        %v2450 = vsub.f32 %v2334, %v2449
        %v2451 = vsub.f32 %v2336, %v2449
        %v2452 = vsub.f32 %v2339, %v2449
        %v2453 = vsub.f32 %v2341, %v2449
        %v2454 = vsub.f32 %v2344, %v2449
        %v2455 = vsub.f32 %v2346, %v2449
        %v2456 = vsub.f32 %v2349, %v2449
        %v2457 = vsub.f32 %v2351, %v2449
        %v2458 = vsub.f32 %v2354, %v2449
        %v2459 = vsub.f32 %v2356, %v2449
        %v2460 = vsub.f32 %v2359, %v2449
        %v2461 = vsub.f32 %v2361, %v2449
        %v2462 = vsub.f32 %v2364, %v2449
        %v2463 = vsub.f32 %v2366, %v2449
        %v2464 = vsub.f32 %v2369, %v2449
        %v2465 = vsub.f32 %v2371, %v2449
        %v2466 = vsub.f32 %v2374, %v2449
        %v2467 = vsub.f32 %v2376, %v2449
        %v2468 = vsub.f32 %v2379, %v2449
        %v2469 = vsub.f32 %v2381, %v2449
        %v2470 = vsub.f32 %v2384, %v2449
        %v2471 = vsub.f32 %v2386, %v2449
        %v2472 = vsub.f32 %v2389, %v2449
        %v2473 = vsub.f32 %v2391, %v2449
        %v2474 = vsub.f32 %v2394, %v2449
        %v2475 = vsub.f32 %v2396, %v2449
        %v2476 = vsub.f32 %v2399, %v2449
        %v2477 = vsub.f32 %v2401, %v2449
        %v2478 = vsub.f32 %v2404, %v2449
        %v2479 = vsub.f32 %v2406, %v2449
        %v2480 = vsub.f32 %v2409, %v2449
        %v2481 = vsub.f32 %v2411, %v2449
        %v2482 = vmul.f32 %v2450, 1.442695
        %v2483 = vpow.pop %v2482
        %v2484 = vmul.f32 %v2451, 1.442695
        %v2485 = vpow.pop %v2484
        %v2486 = vmul.f32 %v2452, 1.442695
        %v2487 = vpow.pop %v2486
        %v2488 = vmul.f32 %v2453, 1.442695
        %v2489 = vpow.pop %v2488
        %v2490 = vmul.f32 %v2454, 1.442695
        %v2491 = vpow.pop %v2490
        %v2492 = vmul.f32 %v2455, 1.442695
        %v2493 = vpow.pop %v2492
        %v2494 = vmul.f32 %v2456, 1.442695
        %v2495 = vpow.pop %v2494
        %v2496 = vmul.f32 %v2457, 1.442695
        %v2497 = vpow.pop %v2496
        %v2498 = vmul.f32 %v2458, 1.442695
        %v2499 = vpow.pop %v2498
        %v2500 = vmul.f32 %v2459, 1.442695
        %v2501 = vpow.pop %v2500
        %v2502 = vmul.f32 %v2460, 1.442695
        %v2503 = vpow.pop %v2502
        %v2504 = vmul.f32 %v2461, 1.442695
        %v2505 = vpow.pop %v2504
        %v2506 = vmul.f32 %v2462, 1.442695
        %v2507 = vpow.pop %v2506
        %v2508 = vmul.f32 %v2463, 1.442695
        %v2509 = vpow.pop %v2508
        %v2510 = vmul.f32 %v2464, 1.442695
        %v2511 = vpow.pop %v2510
        %v2512 = vmul.f32 %v2465, 1.442695
        %v2513 = vpow.pop %v2512
        %v2514 = vmul.f32 %v2466, 1.442695
        %v2515 = vpow.pop %v2514
        %v2516 = vmul.f32 %v2467, 1.442695
        %v2517 = vpow.pop %v2516
        %v2518 = vmul.f32 %v2468, 1.442695
        %v2519 = vpow.pop %v2518
        %v2520 = vmul.f32 %v2469, 1.442695
        %v2521 = vpow.pop %v2520
        %v2522 = vmul.f32 %v2470, 1.442695
        %v2523 = vpow.pop %v2522
        %v2524 = vmul.f32 %v2471, 1.442695
        %v2525 = vpow.pop %v2524
        %v2526 = vmul.f32 %v2472, 1.442695
        %v2527 = vpow.pop %v2526
        %v2528 = vmul.f32 %v2473, 1.442695
        %v2529 = vpow.pop %v2528
        %v2530 = vmul.f32 %v2474, 1.442695
        %v2531 = vpow.pop %v2530
        %v2532 = vmul.f32 %v2475, 1.442695
        %v2533 = vpow.pop %v2532
        %v2534 = vmul.f32 %v2476, 1.442695
        %v2535 = vpow.pop %v2534
        %v2536 = vmul.f32 %v2477, 1.442695
        %v2537 = vpow.pop %v2536
        %v2538 = vmul.f32 %v2478, 1.442695
        %v2539 = vpow.pop %v2538
        %v2540 = vmul.f32 %v2479, 1.442695
        %v2541 = vpow.pop %v2540
        %v2542 = vmul.f32 %v2480, 1.442695
        %v2543 = vpow.pop %v2542
        %v2544 = vmul.f32 %v2481, 1.442695
        %v2545 = vpow.pop %v2544
        %v2546 = vadd.f32 %v2483, %v2485
        %v2547 = vadd.f32 %v2546, %v2487
        %v2548 = vadd.f32 %v2547, %v2489
        %v2549 = vadd.f32 %v2548, %v2491
        %v2550 = vadd.f32 %v2549, %v2493
        %v2551 = vadd.f32 %v2550, %v2495
        %v2552 = vadd.f32 %v2551, %v2497
        %v2553 = vadd.f32 %v2552, %v2499
        %v2554 = vadd.f32 %v2553, %v2501
        %v2555 = vadd.f32 %v2554, %v2503
        %v2556 = vadd.f32 %v2555, %v2505
        %v2557 = vadd.f32 %v2556, %v2507
        %v2558 = vadd.f32 %v2557, %v2509
        %v2559 = vadd.f32 %v2558, %v2511
        %v2560 = vadd.f32 %v2559, %v2513
        %v2561 = vadd.f32 %v2560, %v2515
        %v2562 = vadd.f32 %v2561, %v2517
        %v2563 = vadd.f32 %v2562, %v2519
        %v2564 = vadd.f32 %v2563, %v2521
        %v2565 = vadd.f32 %v2564, %v2523
        %v2566 = vadd.f32 %v2565, %v2525
        %v2567 = vadd.f32 %v2566, %v2527
        %v2568 = vadd.f32 %v2567, %v2529
        %v2569 = vadd.f32 %v2568, %v2531
        %v2570 = vadd.f32 %v2569, %v2533
        %v2571 = vadd.f32 %v2570, %v2535
        %v2572 = vadd.f32 %v2571, %v2537
        %v2573 = vadd.f32 %v2572, %v2539
        %v2574 = vadd.f32 %v2573, %v2541
        %v2575 = vadd.f32 %v2574, %v2543
        %v2576 = vadd.f32 %v2575, %v2545
        %v2577 = vrot.slane %v2576, 4
        %v2578 = vadd.f32 %v2576, %v2577
        %v2579 = vrot.slane %v2578, 2
        %v2580 = vadd.f32 %v2578, %v2579
        %v2581 = vrot.slane %v2580, 1
        %v2582 = vadd.f32 %v2580, %v2581
        %v2583 = vrcp.pop %v2582
        %v2584 = vmul.f32 %v2483, %v2583
        %v2585 = vmul.f32 %v2485, %v2583
        %v2586 = vmul.f32 %v2487, %v2583
        %v2587 = vmul.f32 %v2489, %v2583
        %v2588 = vmul.f32 %v2491, %v2583
        %v2589 = vmul.f32 %v2493, %v2583
        %v2590 = vmul.f32 %v2495, %v2583
        %v2591 = vmul.f32 %v2497, %v2583
        %v2592 = vmul.f32 %v2499, %v2583
        %v2593 = vmul.f32 %v2501, %v2583
        %v2594 = vmul.f32 %v2503, %v2583
        %v2595 = vmul.f32 %v2505, %v2583
        %v2596 = vmul.f32 %v2507, %v2583
        %v2597 = vmul.f32 %v2509, %v2583
        %v2598 = vmul.f32 %v2511, %v2583
        %v2599 = vmul.f32 %v2513, %v2583
        %v2600 = vmul.f32 %v2515, %v2583
        %v2601 = vmul.f32 %v2517, %v2583
        %v2602 = vmul.f32 %v2519, %v2583
        %v2603 = vmul.f32 %v2521, %v2583
        %v2604 = vmul.f32 %v2523, %v2583
        %v2605 = vmul.f32 %v2525, %v2583
        %v2606 = vmul.f32 %v2527, %v2583
        %v2607 = vmul.f32 %v2529, %v2583
        %v2608 = vmul.f32 %v2531, %v2583
        %v2609 = vmul.f32 %v2533, %v2583
        %v2610 = vmul.f32 %v2535, %v2583
        %v2611 = vmul.f32 %v2537, %v2583
        %v2612 = vmul.f32 %v2539, %v2583
        %v2613 = vmul.f32 %v2541, %v2583
        %v2614 = vmul.f32 %v2543, %v2583
        %v2615 = vmul.f32 %v2545, %v2583
        %v2616 = vpack.c.bf16 %v2585, %v2584
        %v2617 = vpack.c.bf16 %v2587, %v2586
        %v2618 = vpack.c.bf16 %v2589, %v2588
        %v2619 = vpack.c.bf16 %v2591, %v2590
        %v2620 = vpack.c.bf16 %v2593, %v2592
        %v2621 = vpack.c.bf16 %v2595, %v2594
        %v2622 = vpack.c.bf16 %v2597, %v2596
        %v2623 = vpack.c.bf16 %v2599, %v2598
        %v2624 = vpack.c.bf16 %v2601, %v2600
        %v2625 = vpack.c.bf16 %v2603, %v2602
        %v2626 = vpack.c.bf16 %v2605, %v2604
        %v2627 = vpack.c.bf16 %v2607, %v2606
        %v2628 = vpack.c.bf16 %v2609, %v2608
        %v2629 = vpack.c.bf16 %v2611, %v2610
        %v2630 = vpack.c.bf16 %v2613, %v2612
        %v2631 = vpack.c.bf16 %v2615, %v2614
        %v2632 = vld [vmem:[#allocation3] sm:$0xff]
        %v2633 = vld [vmem:[#allocation3 + $0x8] sm:$0xff]
        %v2634 = vld [vmem:[#allocation3 + $0x10] sm:$0xff]
        %v2635 = vld [vmem:[#allocation3 + $0x18] sm:$0xff]
        %v2636 = vld [vmem:[#allocation3 + $0x20] sm:$0xff]
        %v2637 = vld [vmem:[#allocation3 + $0x28] sm:$0xff]
        %v2638 = vld [vmem:[#allocation3 + $0x30] sm:$0xff]
        %v2639 = vld [vmem:[#allocation3 + $0x38] sm:$0xff]
        %v2640 = vld [vmem:[#allocation3 + $0x40] sm:$0xff]
        %v2641 = vld [vmem:[#allocation3 + $0x48] sm:$0xff]
        %v2642 = vld [vmem:[#allocation3 + $0x50] sm:$0xff]
        %v2643 = vld [vmem:[#allocation3 + $0x58] sm:$0xff]
        %v2644 = vld [vmem:[#allocation3 + $0x60] sm:$0xff]
        %v2645 = vld [vmem:[#allocation3 + $0x68] sm:$0xff]
        %v2646 = vld [vmem:[#allocation3 + $0x70] sm:$0xff]
        %v2647 = vld [vmem:[#allocation3 + $0x78] sm:$0xff]
        %v2664 = vunpack.c.l.b16 %v2632
        %v2665 = vunpack.c.h.b16 %v2632
        %v2666 = vunpack.c.l.b16 %v2633
        %v2667 = vunpack.c.h.b16 %v2633
        %v2668 = vunpack.c.l.b16 %v2634
        %v2669 = vunpack.c.h.b16 %v2634
        %v2670 = vunpack.c.l.b16 %v2635
        %v2671 = vunpack.c.h.b16 %v2635
        %v2672 = vunpack.c.l.b16 %v2636
        %v2673 = vunpack.c.h.b16 %v2636
        %v2674 = vunpack.c.l.b16 %v2637
        %v2675 = vunpack.c.h.b16 %v2637
        %v2676 = vunpack.c.l.b16 %v2638
        %v2677 = vunpack.c.h.b16 %v2638
        %v2678 = vunpack.c.l.b16 %v2639
        %v2679 = vunpack.c.h.b16 %v2639
        %v2680 = vunpack.c.l.b16 %v2640
        %v2681 = vunpack.c.h.b16 %v2640
        %v2682 = vunpack.c.l.b16 %v2641
        %v2683 = vunpack.c.h.b16 %v2641
        %v2684 = vunpack.c.l.b16 %v2642
        %v2685 = vunpack.c.h.b16 %v2642
        %v2686 = vunpack.c.l.b16 %v2643
        %v2687 = vunpack.c.h.b16 %v2643
        %v2688 = vunpack.c.l.b16 %v2644
        %v2689 = vunpack.c.h.b16 %v2644
        %v2690 = vunpack.c.l.b16 %v2645
        %v2691 = vunpack.c.h.b16 %v2645
        %v2692 = vunpack.c.l.b16 %v2646
        %v2693 = vunpack.c.h.b16 %v2646
        %v2694 = vunpack.c.l.b16 %v2647
        %v2695 = vunpack.c.h.b16 %v2647
        %v2696 = vpack.c.b16 %v2666, %v2664
        %v2697 = vpack.c.b16 %v2667, %v2665
        %v2698 = vpack.c.b16 %v2670, %v2668
        %v2699 = vpack.c.b16 %v2671, %v2669
        %v2700 = vpack.c.b16 %v2674, %v2672
        %v2701 = vpack.c.b16 %v2675, %v2673
        %v2702 = vpack.c.b16 %v2678, %v2676
        %v2703 = vpack.c.b16 %v2679, %v2677
        %v2704 = vpack.c.b16 %v2682, %v2680
        %v2705 = vpack.c.b16 %v2683, %v2681
        %v2706 = vpack.c.b16 %v2686, %v2684
        %v2707 = vpack.c.b16 %v2687, %v2685
        %v2708 = vpack.c.b16 %v2690, %v2688
        %v2709 = vpack.c.b16 %v2691, %v2689
        %v2710 = vpack.c.b16 %v2694, %v2692
        %v2711 = vpack.c.b16 %v2695, %v2693
        %2728 = vmatpush.bf16.msra.mxu0 %v2623
        %2729 = vmatpush.bf16.msra.mxu0 %v2622
        %2730 = vmatpush.bf16.msra.mxu0 %v2621
        %2731 = vmatpush.bf16.msra.mxu0 %v2620
        %2732 = vmatpush.bf16.msra.mxu0 %v2619
        %2733 = vmatpush.bf16.msra.mxu0 %v2618
        %2734 = vmatpush.bf16.msra.mxu0 %v2617
        %2735 = vmatpush.bf16.msra.mxu0 %v2616
        %2736 = vmatmul.bf16.gmra.mxu0 %v2696
        %v2737 = vpop.f32.mrf.mxu0
        %v2738 = vadd.f32 0.0, %v2737
        %v2739 = vpop.f32.mrf.mxu0
        %v2740 = vadd.f32 0.0, %v2739
        %2741 = vmatmul.bf16.gmra.mxu0 %v2698
        %v2742 = vpop.f32.mrf.mxu0
        %v2743 = vadd.f32 0.0, %v2742
        %v2744 = vpop.f32.mrf.mxu0
        %v2745 = vadd.f32 0.0, %v2744
        %2746 = vmatmul.bf16.gmra.mxu0 %v2700
        %v2747 = vpop.f32.mrf.mxu0
        %v2748 = vadd.f32 0.0, %v2747
        %v2749 = vpop.f32.mrf.mxu0
        %v2750 = vadd.f32 0.0, %v2749
        %2751 = vmatmul.bf16.gmra.mxu0 %v2702
        %v2752 = vpop.f32.mrf.mxu0
        %v2753 = vadd.f32 0.0, %v2752
        %v2754 = vpop.f32.mrf.mxu0
        %v2755 = vadd.f32 0.0, %v2754
        %2756 = vmatmul.bf16.gmra.mxu0 %v2704
        %v2757 = vpop.f32.mrf.mxu0
        %v2758 = vadd.f32 0.0, %v2757
        %v2759 = vpop.f32.mrf.mxu0
        %v2760 = vadd.f32 0.0, %v2759
        %2761 = vmatmul.bf16.gmra.mxu0 %v2706
        %v2762 = vpop.f32.mrf.mxu0
        %v2763 = vadd.f32 0.0, %v2762
        %v2764 = vpop.f32.mrf.mxu0
        %v2765 = vadd.f32 0.0, %v2764
        %2766 = vmatmul.bf16.gmra.mxu0 %v2708
        %v2767 = vpop.f32.mrf.mxu0
        %v2768 = vadd.f32 0.0, %v2767
        %v2769 = vpop.f32.mrf.mxu0
        %v2770 = vadd.f32 0.0, %v2769
        %2771 = vmatmul.bf16.gmra.mxu0 %v2710
        %v2772 = vpop.f32.mrf.mxu0
        %v2773 = vadd.f32 0.0, %v2772
        %v2774 = vpop.f32.mrf.mxu0
        %v2775 = vadd.f32 0.0, %v2774
        %2776 = vdwg.mxu0
        %2777 = vmatpush.bf16.msra.mxu0 %v2631
        %2778 = vmatpush.bf16.msra.mxu0 %v2630
        %2779 = vmatpush.bf16.msra.mxu0 %v2629
        %2780 = vmatpush.bf16.msra.mxu0 %v2628
        %2781 = vmatpush.bf16.msra.mxu0 %v2627
        %2782 = vmatpush.bf16.msra.mxu0 %v2626
        %2783 = vmatpush.bf16.msra.mxu0 %v2625
        %2784 = vmatpush.bf16.msra.mxu0 %v2624
        %2785 = vmatmul.bf16.gmra.mxu0 %v2697
        %v2786 = vpop.f32.mrf.mxu0
        %v2787 = vadd.f32 %v2738, %v2786
        %v2788 = vpop.f32.mrf.mxu0
        %v2789 = vadd.f32 %v2740, %v2788
        %2790 = vmatmul.bf16.gmra.mxu0 %v2699
        %v2791 = vpop.f32.mrf.mxu0
        %v2792 = vadd.f32 %v2743, %v2791
        %v2793 = vpop.f32.mrf.mxu0
        %v2794 = vadd.f32 %v2745, %v2793
        %2795 = vmatmul.bf16.gmra.mxu0 %v2701
        %v2796 = vpop.f32.mrf.mxu0
        %v2797 = vadd.f32 %v2748, %v2796
        %v2798 = vpop.f32.mrf.mxu0
        %v2799 = vadd.f32 %v2750, %v2798
        %2800 = vmatmul.bf16.gmra.mxu0 %v2703
        %v2801 = vpop.f32.mrf.mxu0
        %v2802 = vadd.f32 %v2753, %v2801
        %v2803 = vpop.f32.mrf.mxu0
        %v2804 = vadd.f32 %v2755, %v2803
        %2805 = vmatmul.bf16.gmra.mxu0 %v2705
        %v2806 = vpop.f32.mrf.mxu0
        %v2807 = vadd.f32 %v2758, %v2806
        %v2808 = vpop.f32.mrf.mxu0
        %v2809 = vadd.f32 %v2760, %v2808
        %2810 = vmatmul.bf16.gmra.mxu0 %v2707
        %v2811 = vpop.f32.mrf.mxu0
        %v2812 = vadd.f32 %v2763, %v2811
        %v2813 = vpop.f32.mrf.mxu0
        %v2814 = vadd.f32 %v2765, %v2813
        %2815 = vmatmul.bf16.gmra.mxu0 %v2709
        %v2816 = vpop.f32.mrf.mxu0
        %v2817 = vadd.f32 %v2768, %v2816
        %v2818 = vpop.f32.mrf.mxu0
        %v2819 = vadd.f32 %v2770, %v2818
        %2820 = vmatmul.bf16.gmra.mxu0 %v2711
        %v2821 = vpop.f32.mrf.mxu0
        %v2822 = vadd.f32 %v2773, %v2821
        %v2823 = vpop.f32.mrf.mxu0
        %v2824 = vadd.f32 %v2775, %v2823
        %2825 = vdwg.mxu0
        %v2826 = vpack.c.bf16 %v2789, %v2787
        %v2827 = vpack.c.bf16 %v2794, %v2792
        %v2828 = vpack.c.bf16 %v2799, %v2797
        %v2829 = vpack.c.bf16 %v2804, %v2802
        %v2830 = vpack.c.bf16 %v2809, %v2807
        %v2831 = vpack.c.bf16 %v2814, %v2812
        %v2832 = vpack.c.bf16 %v2819, %v2817
        %v2833 = vpack.c.bf16 %v2824, %v2822
        %v2834 = vld [vmem:[%s11] sm:$0xf]
        %v2835 = vld [vmem:[%s11 + $0x4] sm:$0xf]
        %v2836 = vld [vmem:[%s11 + $0x8] sm:$0xf]
        %v2837 = vld [vmem:[%s11 + $0xc] sm:$0xf]
        %v2838 = vld [vmem:[%s11 + $0x10] sm:$0xf]
        %v2839 = vld [vmem:[%s11 + $0x14] sm:$0xf]
        %v2840 = vld [vmem:[%s11 + $0x18] sm:$0xf]
        %v2841 = vld [vmem:[%s11 + $0x1c] sm:$0xf]
        %v2842 = vld [vmem:[%s11 + $0x20] sm:$0xf]
        %v2843 = vld [vmem:[%s11 + $0x24] sm:$0xf]
        %v2844 = vld [vmem:[%s11 + $0x28] sm:$0xf]
        %v2845 = vld [vmem:[%s11 + $0x2c] sm:$0xf]
        %v2846 = vld [vmem:[%s11 + $0x30] sm:$0xf]
        %v2847 = vld [vmem:[%s11 + $0x34] sm:$0xf]
        %v2848 = vld [vmem:[%s11 + $0x38] sm:$0xf]
        %v2849 = vld [vmem:[%s11 + $0x3c] sm:$0xf]
        %v2850 = vld [vmem:[%s12] sm:$0xff]
        %v2851 = vld [vmem:[%s12 + $0x8] sm:$0xff]
        %v2852 = vld [vmem:[%s12 + $0x10] sm:$0xff]
        %v2853 = vld [vmem:[%s12 + $0x18] sm:$0xff]
        %v2854 = vld [vmem:[%s12 + $0x20] sm:$0xff]
        %v2855 = vld [vmem:[%s12 + $0x28] sm:$0xff]
        %v2856 = vld [vmem:[%s12 + $0x30] sm:$0xff]
        %v2857 = vld [vmem:[%s12 + $0x38] sm:$0xff]
        %v2858 = vld [vmem:[%s12 + $0x40] sm:$0xff]
        %v2859 = vld [vmem:[%s12 + $0x48] sm:$0xff]
        %v2860 = vld [vmem:[%s12 + $0x50] sm:$0xff]
        %v2861 = vld [vmem:[%s12 + $0x58] sm:$0xff]
        %v2862 = vld [vmem:[%s12 + $0x60] sm:$0xff]
        %v2863 = vld [vmem:[%s12 + $0x68] sm:$0xff]
        %v2864 = vld [vmem:[%s12 + $0x70] sm:$0xff]
        %v2865 = vld [vmem:[%s12 + $0x78] sm:$0xff]
        %2867 = vset.pattern.permute.xlu0 0
        %2868 = vperm.xlu0 %2867, %v2850
        %v2869 = vpop.permute.xlu0 %2868
        %2872 = vset.pattern.permute.xlu0 0
        %2873 = vperm.xlu0 %2872, %v2851
        %v2874 = vpop.permute.xlu0 %2873
        %2877 = vset.pattern.permute.xlu0 0
        %2878 = vperm.xlu0 %2877, %v2852
        %v2879 = vpop.permute.xlu0 %2878
        %2882 = vset.pattern.permute.xlu0 0
        %2883 = vperm.xlu0 %2882, %v2853
        %v2884 = vpop.permute.xlu0 %2883
        %2887 = vset.pattern.permute.xlu0 0
        %2888 = vperm.xlu0 %2887, %v2854
        %v2889 = vpop.permute.xlu0 %2888
        %2892 = vset.pattern.permute.xlu0 0
        %2893 = vperm.xlu0 %2892, %v2855
        %v2894 = vpop.permute.xlu0 %2893
        %2897 = vset.pattern.permute.xlu0 0
        %2898 = vperm.xlu0 %2897, %v2856
        %v2899 = vpop.permute.xlu0 %2898
        %2902 = vset.pattern.permute.xlu0 0
        %2903 = vperm.xlu0 %2902, %v2857
        %v2904 = vpop.permute.xlu0 %2903
        %2907 = vset.pattern.permute.xlu0 0
        %2908 = vperm.xlu0 %2907, %v2858
        %v2909 = vpop.permute.xlu0 %2908
        %2912 = vset.pattern.permute.xlu0 0
        %2913 = vperm.xlu0 %2912, %v2859
        %v2914 = vpop.permute.xlu0 %2913
        %2917 = vset.pattern.permute.xlu0 0
        %2918 = vperm.xlu0 %2917, %v2860
        %v2919 = vpop.permute.xlu0 %2918
        %2922 = vset.pattern.permute.xlu0 0
        %2923 = vperm.xlu0 %2922, %v2861
        %v2924 = vpop.permute.xlu0 %2923
        %2927 = vset.pattern.permute.xlu0 0
        %2928 = vperm.xlu0 %2927, %v2862
        %v2929 = vpop.permute.xlu0 %2928
        %2932 = vset.pattern.permute.xlu0 0
        %2933 = vperm.xlu0 %2932, %v2863
        %v2934 = vpop.permute.xlu0 %2933
        %2937 = vset.pattern.permute.xlu0 0
        %2938 = vperm.xlu0 %2937, %v2864
        %v2939 = vpop.permute.xlu0 %2938
        %2942 = vset.pattern.permute.xlu0 0
        %2943 = vperm.xlu0 %2942, %v2865
        %v2944 = vpop.permute.xlu0 %2943
        %v2962 = vunpack.c.l.b16 %v2834
        %v2963 = vunpack.c.l.b16 %v2835
        %v2964 = vunpack.c.l.b16 %v2836
        %v2965 = vunpack.c.l.b16 %v2837
        %v2966 = vunpack.c.l.b16 %v2838
        %v2967 = vunpack.c.l.b16 %v2839
        %v2968 = vunpack.c.l.b16 %v2840
        %v2969 = vunpack.c.l.b16 %v2841
        %v2970 = vunpack.c.l.b16 %v2842
        %v2971 = vunpack.c.l.b16 %v2843
        %v2972 = vunpack.c.l.b16 %v2844
        %v2973 = vunpack.c.l.b16 %v2845
        %v2974 = vunpack.c.l.b16 %v2846
        %v2975 = vunpack.c.l.b16 %v2847
        %v2976 = vunpack.c.l.b16 %v2848
        %v2977 = vunpack.c.l.b16 %v2849
        %v2978 = vpack.c.b16 %v2963, %v2962
        %v2979 = vpack.c.b16 %v2965, %v2964
        %v2980 = vpack.c.b16 %v2967, %v2966
        %v2981 = vpack.c.b16 %v2969, %v2968
        %v2982 = vpack.c.b16 %v2971, %v2970
        %v2983 = vpack.c.b16 %v2973, %v2972
        %v2984 = vpack.c.b16 %v2975, %v2974
        %v2985 = vpack.c.b16 %v2977, %v2976
        %2994 = vmatpush.bf16.msra.mxu0 %v2833
        %2995 = vmatpush.bf16.msra.mxu0 %v2832
        %2996 = vmatpush.bf16.msra.mxu0 %v2831
        %2997 = vmatpush.bf16.msra.mxu0 %v2830
        %2998 = vmatpush.bf16.msra.mxu0 %v2829
        %2999 = vmatpush.bf16.msra.mxu0 %v2828
        %3000 = vmatpush.bf16.msra.mxu0 %v2827
        %3001 = vmatpush.bf16.msra.mxu0 %v2826
        %3002 = vmatmul.bf16.gmra.mxu0 %v2978
        %v3003 = vpop.f32.mrf.mxu0
        %v3004 = vadd.f32 %v2869, %v3003
        %v3005 = vpop.f32.mrf.mxu0
        %v3006 = vadd.f32 %v2874, %v3005
        %3007 = vmatmul.bf16.gmra.mxu0 %v2979
        %v3008 = vpop.f32.mrf.mxu0
        %v3009 = vadd.f32 %v2879, %v3008
        %v3010 = vpop.f32.mrf.mxu0
        %v3011 = vadd.f32 %v2884, %v3010
        %3012 = vmatmul.bf16.gmra.mxu0 %v2980
        %v3013 = vpop.f32.mrf.mxu0
        %v3014 = vadd.f32 %v2889, %v3013
        %v3015 = vpop.f32.mrf.mxu0
        %v3016 = vadd.f32 %v2894, %v3015
        %3017 = vmatmul.bf16.gmra.mxu0 %v2981
        %v3018 = vpop.f32.mrf.mxu0
        %v3019 = vadd.f32 %v2899, %v3018
        %v3020 = vpop.f32.mrf.mxu0
        %v3021 = vadd.f32 %v2904, %v3020
        %3022 = vmatmul.bf16.gmra.mxu0 %v2982
        %v3023 = vpop.f32.mrf.mxu0
        %v3024 = vadd.f32 %v2909, %v3023
        %v3025 = vpop.f32.mrf.mxu0
        %v3026 = vadd.f32 %v2914, %v3025
        %3027 = vmatmul.bf16.gmra.mxu0 %v2983
        %v3028 = vpop.f32.mrf.mxu0
        %v3029 = vadd.f32 %v2919, %v3028
        %v3030 = vpop.f32.mrf.mxu0
        %v3031 = vadd.f32 %v2924, %v3030
        %3032 = vmatmul.bf16.gmra.mxu0 %v2984
        %v3033 = vpop.f32.mrf.mxu0
        %v3034 = vadd.f32 %v2929, %v3033
        %v3035 = vpop.f32.mrf.mxu0
        %v3036 = vadd.f32 %v2934, %v3035
        %3037 = vmatmul.bf16.gmra.mxu0 %v2985
        %v3038 = vpop.f32.mrf.mxu0
        %v3039 = vadd.f32 %v2939, %v3038
        %v3040 = vpop.f32.mrf.mxu0
        %v3041 = vadd.f32 %v2944, %v3040
        %3042 = vdwg.mxu0
        %v3043 = vadd.f32 %v1731, %v3004
        %v3044 = vadd.f32 %v1732, %v3006
        %v3045 = vadd.f32 %v1733, %v3009
        %v3046 = vadd.f32 %v1734, %v3011
        %v3047 = vadd.f32 %v1735, %v3014
        %v3048 = vadd.f32 %v1736, %v3016
        %v3049 = vadd.f32 %v1737, %v3019
        %v3050 = vadd.f32 %v1738, %v3021
        %v3051 = vadd.f32 %v1739, %v3024
        %v3052 = vadd.f32 %v1740, %v3026
        %v3053 = vadd.f32 %v1741, %v3029
        %v3054 = vadd.f32 %v1742, %v3031
        %v3055 = vadd.f32 %v1743, %v3034
        %v3056 = vadd.f32 %v1744, %v3036
        %v3057 = vadd.f32 %v1745, %v3039
        %v3058 = vadd.f32 %v1746, %v3041
        %3059 = vst [vmem:[%s474] sm:$0xff] %v3043
        %3060 = vst [vmem:[%s474 + $0x8] sm:$0xff] %v3044
        %3061 = vst [vmem:[%s474 + $0x10] sm:$0xff] %v3045
        %3062 = vst [vmem:[%s474 + $0x18] sm:$0xff] %v3046
        %3063 = vst [vmem:[%s474 + $0x20] sm:$0xff] %v3047
        %3064 = vst [vmem:[%s474 + $0x28] sm:$0xff] %v3048
        %3065 = vst [vmem:[%s474 + $0x30] sm:$0xff] %v3049
        %3066 = vst [vmem:[%s474 + $0x38] sm:$0xff] %v3050
        %3067 = vst [vmem:[%s474 + $0x40] sm:$0xff] %v3051
        %3068 = vst [vmem:[%s474 + $0x48] sm:$0xff] %v3052
        %3069 = vst [vmem:[%s474 + $0x50] sm:$0xff] %v3053
        %3070 = vst [vmem:[%s474 + $0x58] sm:$0xff] %v3054
        %3071 = vst [vmem:[%s474 + $0x60] sm:$0xff] %v3055
        %3072 = vst [vmem:[%s474 + $0x68] sm:$0xff] %v3056
        %3073 = vst [vmem:[%s474 + $0x70] sm:$0xff] %v3057
        %3074 = vst [vmem:[%s474 + $0x78] sm:$0xff] %v3058
        %s3075 = sand.u32 %s330, 1
        %s3076 = scalar_lea.sflag [#allocation8], %s3075
        %s3077 = sand.u32 %s330, 1
        %s3078 = smul.addr %s3077, 128
        %s3079 = scalar_lea.vmem [#allocation9], %s3078
        // Predicated region
        $region81: #{tpu_custom_call.1} parent=71 // pred_check
          %p3080 = pneg %p340
        $region82: #{tpu_custom_call.1} parent=71 // pred_check_branch
          %3082 = sbr.rel (%p3080) target = $region84
        $region83: #{tpu_custom_call.1} parent=71 // pred_region
          %3084 = vsyncadd %s3076, 0
          %s3085 = smul.addr %s34, 32
          %s3086 = sadd.s32 %s35, %s3085
          %s3087 = smul.addr %s3086, 8
          %s3088 = scalar_lea.hbm %s13, %s3087
          %s3089 = sshll.u32 %s3079, 4
          %s3090 = int_to_ptr.vmem [resolvable:$true] %s3089
          %s3091 = sshll.u32 %s3088, 4
          %s3092 = int_to_ptr.hbm [resolvable:$true] %s3091
          %3097 = dma.vmem_to_hbm [thread:$0]  %s3090, 2048, %s3092, %s3076, 128, 256, 8
        $region84: #{tpu_custom_call.1} parent=71 // pred_fallthru
          _
      $region72: #{tpu_custom_call.1} parent=5 // pred_fallthru
        _
      %p3098 = scmp.le.s32.totalorder 2, %s25
      // Predicated region
      $region85: #{tpu_custom_call.1} parent=5 // pred_check
        %p3099 = pneg %p3098
      $region86: #{tpu_custom_call.1} parent=5 // pred_check_branch
        %3101 = sbr.rel (%p3099) target = $region88
      $region87: #{tpu_custom_call.1} parent=5 // pred_region
        %s3102 = ssub.s32 %s25, 2
        // Predicated region
        $region89: #{tpu_custom_call.1} parent=87 // pred_check
          %p3103 = pneg %p346
        $region90: #{tpu_custom_call.1} parent=87 // pred_check_branch
          %3105 = sbr.rel (%p3103) target = $region92
        $region91: #{tpu_custom_call.1} parent=87 // pred_region
          %s3106 = sand.u32 %s331, 1
          %s3107 = scalar_lea.sflag [#allocation8], %s3106
          %s3108 = sand.u32 %s331, 1
          %s3109 = smul.addr %s3108, 128
          %s3110 = scalar_lea.vmem [#allocation9], %s3109
          %3112 = dma.done %s3107, 2048
        $region92: #{tpu_custom_call.1} parent=87 // pred_fallthru
          _
      $region88: #{tpu_custom_call.1} parent=5 // pred_fallthru
        _
    $region6: #{tpu_custom_call.1} parent=1 // loop_footer
      %s29 = sadd.s32 1, %s25
    $region7: #{tpu_custom_call.1} parent=1 // loop_footer_branch
      %24 = sbr.rel target = $region3
    $region8: #{tpu_custom_call.1} parent=1 // loop_exit
      _
    %3113 = vsyncpa [#allocation7], 1
    %s3114 = scalar_lea.sflag [#allocation7], 1
    %3115 = vsyncpa %s3114, 1
    %3116 = vsyncpa [#allocation8], 1
    %s3117 = scalar_lea.sflag [#allocation8], 1
    %3118 = vsyncpa %s3117, 1

</llo_original>
